<compile_context>
chip_gen: v7x
topology: tpu7x:2x2x1
jax: 0.10.0
libtpu: 0.0.40
codegen_flags: <defaults>
</compile_context>

<pallas_src>
import math
from functools import partial

import jax
import jax.numpy as jnp
from jax.experimental import pallas as pl
from jax.experimental.pallas import tpu as pltpu

BN_EPS = 1e-3
VMEM_LIMIT = 32 * 1024 * 1024   # conservative: fits v5e/v6e (128 MiB) and v7x (64 MiB)
MATMUL_TM = 256                 # max MXU-friendly row tile for 1x1-conv matmuls


# ----------------------------- helpers (glue) --------------------------------
def _make_divisible(ch, divisor=8, min_ch=None):
    if min_ch is None:
        min_ch = divisor
    new_ch = max(min_ch, int(ch + divisor / 2) // divisor * divisor)
    if new_ch < 0.9 * ch:
        new_ch += divisor
    return new_ch


def _adjust_channels(c, width_multi=1.0):
    return _make_divisible(c * width_multi, 8)


def _apply_act(x, act):
    if act == "relu":
        return jnp.maximum(x, 0.0)
    if act == "hardswish":
        return x * jnp.clip(x + 3.0, 0.0, 6.0) * (1.0 / 6.0)
    if act == "hardsigmoid":
        return jnp.clip(x + 3.0, 0.0, 6.0) * (1.0 / 6.0)
    return x  # identity


def _cparams(*sem):
    return pltpu.CompilerParams(dimension_semantics=sem,
                                vmem_limit_bytes=VMEM_LIMIT)


# ------------------------------ Pallas kernels --------------------------------
def _matmul_bias_act_kernel(x_ref, w_ref, b_ref, o_ref, *, act):
    # 1x1 conv / im2col conv == matmul over channels.  bf16 inputs, f32 acc.
    y = jnp.dot(x_ref[...], w_ref[...], preferred_element_type=jnp.float32)
    o_ref[...] = _apply_act(y + b_ref[...], act).astype(o_ref.dtype)


def _fused_block_kernel(*refs, K, stride, H, W, Ho, Wo, act,
                        has_expand, use_se, use_res):
    # One full InvertedResidual block for a single batch element:
    #   [expand 1x1 + act] -> dwconv KxK + act -> [SE] -> project 1x1 [+ residual]
    # Everything between the input load and the output store stays in VMEM.
    refs = list(refs)
    pad_ref = refs.pop()           # VMEM scratch: zero-padded expanded activation
    o_ref = refs.pop()
    it = iter(refs)
    x_ref = next(it)
    if has_expand:
        we_ref, be_ref = next(it), next(it)
    wd_ref, bd_ref = next(it), next(it)
    if use_se:
        w1_ref, b1_ref, w2_ref, b2_ref = next(it), next(it), next(it), next(it)
    wp_ref, bp_ref = next(it), next(it)

    Cin = x_ref.shape[-1]
    Cexp = wd_ref.shape[-1]
    Cout = wp_ref.shape[-1]
    pad = (K - 1) // 2

    xv = x_ref[0].reshape(H * W, Cin)                       # bf16 input block
    if has_expand:
        h = jnp.dot(xv, we_ref[...], preferred_element_type=jnp.float32)
        h = _apply_act(h + be_ref[...], act)
    else:
        h = xv.astype(jnp.float32)

    # Zero-pad the expanded activation in VMEM scratch (no wrapper-side jnp.pad,
    # so no extra HBM copy of the activation before the conv).
    pad_ref[...] = jnp.zeros(pad_ref.shape, jnp.float32)
    pad_ref[pad:pad + H, pad:pad + W, :] = h.reshape(H, W, Cexp)

    # Depthwise KxK conv on the VPU.  Weights arrive pre-shaped (K*K,1,1,C) and
    # the bias (1,1,C), so the unrolled tap loop does no reshape/broadcast work.
    acc = jnp.zeros((H, W, Cexp), jnp.float32)
    for kh in range(K):
        for kw in range(K):
            acc = acc + pad_ref[kh:kh + H, kw:kw + W, :] * wd_ref[kh * K + kw]
    acc = _apply_act(acc + bd_ref[...], act)

    if stride == 2:
        # Subsample the stride-1 result to the stride-2 grid using only
        # unit-stride slices (reshape is a pure row regroup).  Avoids strided
        # ref/value indexing, which the Pallas interpreter cannot discharge;
        # the 4x overcompute is all VMEM-resident and not the binding resource.
        acc = acc.reshape(Ho, 2, W, Cexp)[:, 0]             # every other row
        acc = acc.reshape(Ho, Wo, 2, Cexp)[:, :, 0, :]      # every other column

    if use_se:
        # SqueezeExcitation fused here: the full activation never leaves VMEM.
        pooled = jnp.mean(acc.reshape(Ho * Wo, Cexp), axis=0, keepdims=True)
        sc = jnp.dot(pooled, w1_ref[...], preferred_element_type=jnp.float32) + b1_ref[...]
        sc = jnp.maximum(sc, 0.0)
        sc = jnp.dot(sc, w2_ref[...], preferred_element_type=jnp.float32) + b2_ref[...]
        sc = jnp.clip(sc + 3.0, 0.0, 6.0) * (1.0 / 6.0)      # hardsigmoid
        acc = acc * sc.reshape(1, 1, Cexp)

    # Projection 1x1 conv (linear bottleneck) with the residual shortcut fused.
    y = jnp.dot(acc.reshape(Ho * Wo, Cexp).astype(jnp.bfloat16), wp_ref[...],
                preferred_element_type=jnp.float32) + bp_ref[...]
    if use_res:
        y = y + xv.astype(jnp.float32)
    o_ref[0] = y.reshape(Ho, Wo, Cout).astype(o_ref.dtype)


def _head_kernel(x_ref, w1_ref, b1_ref, w2_ref, b2_ref, o_ref):
    # AdaptiveAvgPool2d(1) + flatten + Linear + Hardswish + (Dropout=id) + Linear
    N, H, W, C = x_ref.shape
    pooled = jnp.mean(x_ref[...].astype(jnp.float32).reshape(N, H * W, C), axis=1)
    h = jnp.dot(pooled, w1_ref[...], preferred_element_type=jnp.float32) + b1_ref[...]
    h = h * jnp.clip(h + 3.0, 0.0, 6.0) * (1.0 / 6.0)        # Hardswish
    # TODO(synk): nn.Dropout(p=0.2) is identity in eval mode; train-mode RNG dropout not implemented.
    o_ref[...] = jnp.dot(h, w2_ref[...], preferred_element_type=jnp.float32) + b2_ref[...]


# --------------------------- pallas_call wrappers ------------------------------
def _pick_tm(m):
    # Largest tile <= MATMUL_TM that still gives >=2 grid steps when possible
    # (keeps v7x's second TensorCore busy); must be a multiple of 8 or == M.
    if m <= 8:
        return m
    half = -(-m // 2)
    half = -(-half // 8) * 8
    return min(MATMUL_TM, half)


def matmul_bias_act(x2d, w, bias, act, out_dtype=jnp.bfloat16):
    M, Cin = x2d.shape
    Cout = w.shape[1]
    TM = _pick_tm(M)
    return pl.pallas_call(
        partial(_matmul_bias_act_kernel, act=act),
        out_shape=jax.ShapeDtypeStruct((M, Cout), out_dtype),
        grid=(pl.cdiv(M, TM),),
        in_specs=[pl.BlockSpec((TM, Cin), lambda i: (i, 0)),
                  pl.BlockSpec((Cin, Cout), lambda i: (0, 0)),   # weight resident
                  pl.BlockSpec((1, Cout), lambda i: (0, 0))],
        out_specs=pl.BlockSpec((TM, Cout), lambda i: (i, 0)),
        compiler_params=_cparams("parallel"),
    )(x2d, w, bias)


def stem_conv(x_nhwc, w, bias):
    # 3x3 stride-2 stem conv as ONE im2col matmul (K=27) instead of 9 tiny dots.
    # The patch matrix is built once in XLA; with 3 input channels this copy is
    # negligible and keeps the Pallas kernel a plain lane-dense matmul.
    N, H, W, Cin = x_nhwc.shape
    K, s, p = 3, 2, 1
    Ho = (H + 2 * p - K) // s + 1
    Wo = (W + 2 * p - K) // s + 1
    xp = jnp.pad(x_nhwc, ((0, 0), (p, p), (p, p), (0, 0)))
    cols = []
    for kh in range(K):
        for kw in range(K):
            cols.append(xp[:, kh:kh + s * (Ho - 1) + 1:s,
                           kw:kw + s * (Wo - 1) + 1:s, :])
    patches = jnp.concatenate(cols, axis=-1).reshape(N * Ho * Wo, K * K * Cin)
    y = matmul_bias_act(patches.astype(jnp.bfloat16), w, bias, "hardswish")
    return y.reshape(N, Ho, Wo, -1)


def inverted_residual_block(x, bpd, cnf):
    N, H, W, Cin = x.shape
    K, stride = cnf["kernel"], cnf["stride"]
    Cexp, Cout = cnf["expanded_c"], cnf["out_c"]
    act = "hardswish" if cnf["use_hs"] else "relu"
    has_expand = "expand" in bpd
    use_se = "se" in bpd
    use_res = (stride == 1) and (Cin == Cout)
    pad = (K - 1) // 2
    if stride == 1:
        Ho, Wo = H, W
    else:
        # TODO(synk): odd spatial extents with stride 2 would need one extra pad row/col.
        assert H % 2 == 0 and W % 2 == 0
        Ho, Wo = H // 2, W // 2

    inputs = [x]
    in_specs = [pl.BlockSpec((1, H, W, Cin), lambda n: (n, 0, 0, 0))]

    def add_const(arr):
        nd = arr.ndim
        inputs.append(arr)
        in_specs.append(pl.BlockSpec(arr.shape, lambda n, _nd=nd: (0,) * _nd))

    if has_expand:
        add_const(bpd["expand"]["w"]); add_const(bpd["expand"]["bias"])
    add_const(bpd["dw"]["w"]); add_const(bpd["dw"]["bias"])
    if use_se:
        se = bpd["se"]
        for a in (se["w1"], se["b1"], se["w2"], se["b2"]):
            add_const(a)
    add_const(bpd["project"]["w"]); add_const(bpd["project"]["bias"])

    kernel = partial(_fused_block_kernel, K=K, stride=stride, H=H, W=W, Ho=Ho, Wo=Wo,
                     act=act, has_expand=has_expand, use_se=use_se, use_res=use_res)
    return pl.pallas_call(
        kernel,
        out_shape=jax.ShapeDtypeStruct((N, Ho, Wo, Cout), jnp.bfloat16),
        grid=(N,),
        in_specs=in_specs,
        out_specs=pl.BlockSpec((1, Ho, Wo, Cout), lambda n: (n, 0, 0, 0)),
        scratch_shapes=[pltpu.VMEM((H + 2 * pad, W + 2 * pad, Cexp), jnp.float32)],
        compiler_params=_cparams("parallel"),
    )(*inputs)


def classifier_head(x, w1, b1, w2, b2):
    N, H, W, C = x.shape
    hidden = w1.shape[1]
    ncls = w2.shape[1]
    return pl.pallas_call(
        _head_kernel,
        out_shape=jax.ShapeDtypeStruct((N, ncls), jnp.float32),
        grid=(1,),
        in_specs=[pl.BlockSpec((N, H, W, C), lambda i: (0, 0, 0, 0)),
                  pl.BlockSpec((C, hidden), lambda i: (0, 0)),
                  pl.BlockSpec((1, hidden), lambda i: (0, 0)),
                  pl.BlockSpec((hidden, ncls), lambda i: (0, 0)),
                  pl.BlockSpec((1, ncls), lambda i: (0, 0))],
        out_specs=pl.BlockSpec((N, ncls), lambda i: (0, 0)),
        compiler_params=_cparams("arbitrary"),
    )(x, w1, b1, w2, b2)


# ------------------------------ model definition -------------------------------
def build_configs():
    # Small inverted-residual stack (InvertedResidualConfig semantics, width=1.0).
    raw = [
        # input_c, kernel, expanded_c, out_c, use_se, activation, stride
        (16, 3, 16, 16, True, "RE", 2),
        (16, 3, 72, 24, False, "RE", 2),
        (24, 3, 88, 24, False, "RE", 1),
        (24, 5, 96, 40, True, "HS", 1),
    ]
    cfgs = []
    for ic, k, ec, oc, se, actn, s in raw:
        cfgs.append(dict(
            input_c=_adjust_channels(ic), kernel=k,
            expanded_c=_adjust_channels(ec), out_c=_adjust_channels(oc),
            use_se=se, use_hs=(actn == "HS"), stride=s))
    return cfgs


def init_params(key, cfgs, last_channel=64, num_classes=1):
    keys = iter(jax.random.split(key, 64))
    nk = lambda: next(keys)
    # BatchNorm fold with fresh stats: scale = 1/sqrt(var+eps) = 1/sqrt(1+eps), bias = 0.
    bn_s = 1.0 / math.sqrt(1.0 + BN_EPS)

    def stem_w(cin, cout, k):        # im2col stem conv: (K*K*Cin, Cout), bf16 MXU input
        std = math.sqrt(2.0 / (cout * k * k))
        w = std * jax.random.normal(nk(), (k * k * cin, cout), jnp.float32)
        return (w * bn_s).astype(jnp.bfloat16)

    def pw_w(cin, cout):             # 1x1 conv: (Cin, Cout), BN-folded, bf16 MXU input
        std = math.sqrt(2.0 / cout)
        w = std * jax.random.normal(nk(), (cin, cout), jnp.float32)
        return (w * bn_s).astype(jnp.bfloat16)

    def dw_w(c, k):                  # depthwise: (K*K, 1, 1, C), BN-folded, f32 (VPU path)
        std = math.sqrt(2.0 / (k * k))
        w = std * jax.random.normal(nk(), (k * k, 1, 1, c), jnp.float32)
        return w * bn_s

    def zb(shape):
        return jnp.zeros(shape, jnp.float32)

    params = {}
    first_c = cfgs[0]["input_c"]
    params["first"] = dict(w=stem_w(3, first_c, 3), bias=zb((1, first_c)))

    blocks = []
    for cnf in cfgs:
        bpd = {}
        if cnf["expanded_c"] != cnf["input_c"]:
            bpd["expand"] = dict(w=pw_w(cnf["input_c"], cnf["expanded_c"]),
                                 bias=zb((1, cnf["expanded_c"])))
        bpd["dw"] = dict(w=dw_w(cnf["expanded_c"], cnf["kernel"]),
                         bias=zb((1, 1, cnf["expanded_c"])))
        if cnf["use_se"]:
            c = cnf["expanded_c"]
            cs = _make_divisible(c // 4, 8)
            bpd["se"] = dict(
                w1=math.sqrt(2.0 / cs) * jax.random.normal(nk(), (c, cs), jnp.float32),
                b1=zb((1, cs)),
                w2=math.sqrt(2.0 / c) * jax.random.normal(nk(), (cs, c), jnp.float32),
                b2=zb((1, c)))
        bpd["project"] = dict(w=pw_w(cnf["expanded_c"], cnf["out_c"]),
                              bias=zb((1, cnf["out_c"])))
        blocks.append(bpd)
    params["blocks"] = blocks

    last_in = cfgs[-1]["out_c"]
    last_out = 6 * last_in
    params["last"] = dict(w=pw_w(last_in, last_out), bias=zb((1, last_out)))

    params["head"] = dict(
        w1=0.01 * jax.random.normal(nk(), (last_out, last_channel), jnp.float32),
        b1=zb((1, last_channel)),
        w2=0.01 * jax.random.normal(nk(), (last_channel, num_classes), jnp.float32),
        b2=zb((1, num_classes)))
    return params


def mobilenet_v3_forward(params, cfgs, x_nchw):
    # NCHW (PyTorch) -> NHWC (kernel layout)
    x = jnp.transpose(x_nchw, (0, 2, 3, 1)).astype(jnp.float32)

    # stem: ConvBNActivation(3, C0, k=3, s=2, Hardswish) as one im2col matmul
    p = params["first"]
    x = stem_conv(x, p["w"], p["bias"])                       # bf16 out

    # inverted residual blocks — one fused pallas_call each (bf16 in/out)
    for cnf, bpd in zip(cfgs, params["blocks"]):
        x = inverted_residual_block(x, bpd, cnf)

    # last ConvBNActivation(1x1, Hardswish)
    p = params["last"]
    N, H, W, C = x.shape
    x = matmul_bias_act(x.reshape(N * H * W, C), p["w"], p["bias"],
                        "hardswish").reshape(N, H, W, -1)

    # avgpool + classifier; torch.squeeze(..., dim=1) with num_classes=1 -> (N,)
    hd = params["head"]
    y = classifier_head(x, hd["w1"], hd["b1"], hd["w2"], hd["b2"])
    return jnp.squeeze(y, axis=1)


if __name__ == "__main__":
    cfgs = build_configs()
    key = jax.random.PRNGKey(0)
    pkey, xkey = jax.random.split(key)
    params = init_params(pkey, cfgs, last_channel=64, num_classes=1)
    x = jax.random.normal(xkey, (2, 3, 16, 16), jnp.float32)  # NCHW like PyTorch

    fwd = jax.jit(lambda p, xi: mobilenet_v3_forward(p, cfgs, xi))
    y = jax.block_until_ready(fwd(params, x))
    assert y.shape == (2,), y.shape
    assert bool(jnp.all(jnp.isfinite(y)))
    print("KERNEL_OK")
</pallas_src>

<mosaic_0001>
module attributes {stable_mosaic.version = 11 : i64} {
  func.func @_matmul_bias_act_kernel(%arg0: i32, %arg1: memref<64x27xbf16, #tpu.memory_space<vmem>>, %arg2: memref<27x16xbf16, #tpu.memory_space<vmem>>, %arg3: memref<1x16xf32, #tpu.memory_space<vmem>>, %arg4: memref<64x16xbf16, #tpu.memory_space<vmem>>) attributes {dimension_semantics = [#tpu.dimension_semantics<parallel>], iteration_bounds = array<i64: 2>, scalar_prefetch = 0 : i64, scratch_operands = 0 : i64, tpu.core_type = #tpu.core_type<tc>, window_params = [{transform_indices = @transform_0, window_bounds = array<i64: 64, 27>}, {pipeline_mode = #tpu.pipeline_mode<synchronous>, transform_indices = @transform_1, window_bounds = array<i64: 27, 16>}, {pipeline_mode = #tpu.pipeline_mode<synchronous>, transform_indices = @transform_2, window_bounds = array<i64: 1, 16>}, {transform_indices = @transform_3, window_bounds = array<i64: 64, 16>}]} {
    %c0 = arith.constant 0 : index
    %c0_0 = arith.constant 0 : index
    %0 = vector.load %arg1[%c0, %c0_0] : memref<64x27xbf16, #tpu.memory_space<vmem>>, vector<64x27xbf16>
    %c0_1 = arith.constant 0 : index
    %c0_2 = arith.constant 0 : index
    %1 = vector.load %arg2[%c0_1, %c0_2] : memref<27x16xbf16, #tpu.memory_space<vmem>>, vector<27x16xbf16>
    %cst = arith.constant dense<0.000000e+00> : vector<64x16xf32>
    %2 = tpu.matmul %0, %1, %cst {dimension_numbers = #tpu.dot_dimension_numbers<[1], [0], [0], [1], [0, 0, 1, 1], [], []>} : vector<64x27xbf16>, vector<27x16xbf16>, vector<64x16xf32> -> vector<64x16xf32>
    %c0_3 = arith.constant 0 : index
    %c0_4 = arith.constant 0 : index
    %3 = vector.load %arg3[%c0_3, %c0_4] : memref<1x16xf32, #tpu.memory_space<vmem>>, vector<1x16xf32>
    %4 = vector.broadcast %3 : vector<1x16xf32> to vector<64x16xf32>
    %5 = arith.addf %2, %4 : vector<64x16xf32>
    %cst_5 = arith.constant 3.000000e+00 : f32
    %6 = vector.broadcast %cst_5 : f32 to vector<64x16xf32>
    %7 = arith.addf %5, %6 : vector<64x16xf32>
    %cst_6 = arith.constant 0.000000e+00 : f32
    %cst_7 = arith.constant 6.000000e+00 : f32
    %8 = vector.broadcast %cst_6 : f32 to vector<64x16xf32>
    %9 = arith.maximumf %8, %7 : vector<64x16xf32>
    %10 = vector.broadcast %cst_7 : f32 to vector<64x16xf32>
    %11 = arith.minimumf %10, %9 : vector<64x16xf32>
    %12 = arith.mulf %5, %11 : vector<64x16xf32>
    %cst_8 = arith.constant 0.166666672 : f32
    %13 = vector.broadcast %cst_8 : f32 to vector<64x16xf32>
    %14 = arith.mulf %12, %13 : vector<64x16xf32>
    %15 = arith.truncf %14 : vector<64x16xf32> to vector<64x16xbf16>
    %c0_9 = arith.constant 0 : index
    %c0_10 = arith.constant 0 : index
    %16 = vector.load %arg4[%c0_9, %c0_10] : memref<64x16xbf16, #tpu.memory_space<vmem>>, vector<64x16xbf16>
    tpu.vector_store %arg4[%c0_9, %c0_10], %15 {strides = array<i32>} : memref<64x16xbf16, #tpu.memory_space<vmem>>, vector<64x16xbf16>,
    return
  }
  func.func @transform_0(%arg0: i32) -> (i32, i32) {
    %c0_i32 = arith.constant 0 : i32
    %c0_i32_0 = arith.constant 0 : i32
    return %arg0, %c0_i32 : i32, i32
  }
  func.func @transform_1(%arg0: i32) -> (i32, i32) {
    %c0_i32 = arith.constant 0 : i32
    %c0_i32_0 = arith.constant 0 : i32
    %c0_i32_1 = arith.constant 0 : i32
    return %c0_i32, %c0_i32_0 : i32, i32
  }
  func.func @transform_2(%arg0: i32) -> (i32, i32) {
    %c0_i32 = arith.constant 0 : i32
    %c0_i32_0 = arith.constant 0 : i32
    %c0_i32_1 = arith.constant 0 : i32
    return %c0_i32, %c0_i32_0 : i32, i32
  }
  func.func @transform_3(%arg0: i32) -> (i32, i32) {
    %c0_i32 = arith.constant 0 : i32
    %c0_i32_0 = arith.constant 0 : i32
    return %arg0, %c0_i32 : i32, i32
  }
}

module attributes {stable_mosaic.version = 11 : i64} {
  func.func @_fused_block_kernel(%arg0: i32, %arg1: memref<1x8x8x16xbf16, #tpu.memory_space<vmem>>, %arg2: memref<9x1x1x16xf32, #tpu.memory_space<vmem>>, %arg3: memref<1x1x16xf32, #tpu.memory_space<vmem>>, %arg4: memref<16x8xf32, #tpu.memory_space<vmem>>, %arg5: memref<1x8xf32, #tpu.memory_space<vmem>>, %arg6: memref<8x16xf32, #tpu.memory_space<vmem>>, %arg7: memref<1x16xf32, #tpu.memory_space<vmem>>, %arg8: memref<16x16xbf16, #tpu.memory_space<vmem>>, %arg9: memref<1x16xf32, #tpu.memory_space<vmem>>, %arg10: memref<1x4x4x16xbf16, #tpu.memory_space<vmem>>, %arg11: memref<10x10x16xf32, #tpu.memory_space<vmem>>) attributes {dimension_semantics = [#tpu.dimension_semantics<parallel>], iteration_bounds = array<i64: 2>, scalar_prefetch = 0 : i64, scratch_operands = 1 : i64, tpu.core_type = #tpu.core_type<tc>, window_params = [{transform_indices = @transform_0, window_bounds = array<i64: 1, 8, 8, 16>}, {pipeline_mode = #tpu.pipeline_mode<synchronous>, transform_indices = @transform_1, window_bounds = array<i64: 9, 1, 1, 16>}, {pipeline_mode = #tpu.pipeline_mode<synchronous>, transform_indices = @transform_2, window_bounds = array<i64: 1, 1, 16>}, {pipeline_mode = #tpu.pipeline_mode<synchronous>, transform_indices = @transform_3, window_bounds = array<i64: 16, 8>}, {pipeline_mode = #tpu.pipeline_mode<synchronous>, transform_indices = @transform_4, window_bounds = array<i64: 1, 8>}, {pipeline_mode = #tpu.pipeline_mode<synchronous>, transform_indices = @transform_5, window_bounds = array<i64: 8, 16>}, {pipeline_mode = #tpu.pipeline_mode<synchronous>, transform_indices = @transform_6, window_bounds = array<i64: 1, 16>}, {pipeline_mode = #tpu.pipeline_mode<synchronous>, transform_indices = @transform_7, window_bounds = array<i64: 16, 16>}, {pipeline_mode = #tpu.pipeline_mode<synchronous>, transform_indices = @transform_8, window_bounds = array<i64: 1, 16>}, {transform_indices = @transform_9, window_bounds = array<i64: 1, 4, 4, 16>}]} {
    %c0 = arith.constant 0 : index
    %c0_0 = arith.constant 0 : index
    %c0_1 = arith.constant 0 : index
    %c0_2 = arith.constant 0 : index
    %0 = vector.load %arg1[%c0, %c0_0, %c0_1, %c0_2] : memref<1x8x8x16xbf16, #tpu.memory_space<vmem>>, vector<1x8x8x16xbf16>
    %1 = vector.shape_cast %0 : vector<1x8x8x16xbf16> to vector<8x8x16xbf16>
    %2 = vector.shape_cast %1 : vector<8x8x16xbf16> to vector<64x16xbf16>
    %3 = arith.extf %2 : vector<64x16xbf16> to vector<64x16xf32>
    %cst = arith.constant 0.000000e+00 : f32
    %4 = vector.broadcast %cst : f32 to vector<10x10x16xf32>
    %c0_3 = arith.constant 0 : index
    %c0_4 = arith.constant 0 : index
    %c0_5 = arith.constant 0 : index
    %5 = vector.load %arg11[%c0_3, %c0_4, %c0_5] : memref<10x10x16xf32, #tpu.memory_space<vmem>>, vector<10x10x16xf32>
    tpu.vector_store %arg11[%c0_3, %c0_4, %c0_5], %4 {strides = array<i32>} : memref<10x10x16xf32, #tpu.memory_space<vmem>>, vector<10x10x16xf32>,
    %6 = vector.shape_cast %3 : vector<64x16xf32> to vector<8x8x16xf32>
    %c1 = arith.constant 1 : index
    %c1_6 = arith.constant 1 : index
    %c0_7 = arith.constant 0 : index
    %7 = vector.load %arg11[%c1, %c1_6, %c0_7] : memref<10x10x16xf32, #tpu.memory_space<vmem>>, vector<8x8x16xf32>
    tpu.vector_store %arg11[%c1, %c1_6, %c0_7], %6 {strides = array<i32>} : memref<10x10x16xf32, #tpu.memory_space<vmem>>, vector<8x8x16xf32>,
    %cst_8 = arith.constant 0.000000e+00 : f32
    %8 = vector.broadcast %cst_8 : f32 to vector<8x8x16xf32>
    %c0_9 = arith.constant 0 : index
    %c0_10 = arith.constant 0 : index
    %c0_11 = arith.constant 0 : index
    %9 = vector.load %arg11[%c0_9, %c0_10, %c0_11] : memref<10x10x16xf32, #tpu.memory_space<vmem>>, vector<8x8x16xf32>
    %c0_12 = arith.constant 0 : index
    %c0_13 = arith.constant 0 : index
    %c0_14 = arith.constant 0 : index
    %c0_15 = arith.constant 0 : index
    %10 = vector.load %arg2[%c0_12, %c0_13, %c0_14, %c0_15] : memref<9x1x1x16xf32, #tpu.memory_space<vmem>>, vector<1x1x1x16xf32>
    %11 = vector.shape_cast %10 : vector<1x1x1x16xf32> to vector<1x1x16xf32>
    %12 = vector.broadcast %11 : vector<1x1x16xf32> to vector<8x8x16xf32>
    %13 = arith.mulf %9, %12 : vector<8x8x16xf32>
    %14 = arith.addf %8, %13 : vector<8x8x16xf32>
    %c0_16 = arith.constant 0 : index
    %c1_17 = arith.constant 1 : index
    %c0_18 = arith.constant 0 : index
    %15 = vector.load %arg11[%c0_16, %c1_17, %c0_18] : memref<10x10x16xf32, #tpu.memory_space<vmem>>, vector<8x8x16xf32>
    %c1_19 = arith.constant 1 : index
    %c0_20 = arith.constant 0 : index
    %c0_21 = arith.constant 0 : index
    %c0_22 = arith.constant 0 : index
    %16 = vector.load %arg2[%c1_19, %c0_20, %c0_21, %c0_22] : memref<9x1x1x16xf32, #tpu.memory_space<vmem>>, vector<1x1x1x16xf32>
    %17 = vector.shape_cast %16 : vector<1x1x1x16xf32> to vector<1x1x16xf32>
    %18 = vector.broadcast %17 : vector<1x1x16xf32> to vector<8x8x16xf32>
    %19 = arith.mulf %15, %18 : vector<8x8x16xf32>
    %20 = arith.addf %14, %19 : vector<8x8x16xf32>
    %c0_23 = arith.constant 0 : index
    %c2 = arith.constant 2 : index
    %c0_24 = arith.constant 0 : index
    %21 = vector.load %arg11[%c0_23, %c2, %c0_24] : memref<10x10x16xf32, #tpu.memory_space<vmem>>, vector<8x8x16xf32>
    %c2_25 = arith.constant 2 : index
    %c0_26 = arith.constant 0 : index
    %c0_27 = arith.constant 0 : index
    %c0_28 = arith.constant 0 : index
    %22 = vector.load %arg2[%c2_25, %c0_26, %c0_27, %c0_28] : memref<9x1x1x16xf32, #tpu.memory_space<vmem>>, vector<1x1x1x16xf32>
    %23 = vector.shape_cast %22 : vector<1x1x1x16xf32> to vector<1x1x16xf32>
    %24 = vector.broadcast %23 : vector<1x1x16xf32> to vector<8x8x16xf32>
    %25 = arith.mulf %21, %24 : vector<8x8x16xf32>
    %26 = arith.addf %20, %25 : vector<8x8x16xf32>
    %c1_29 = arith.constant 1 : index
    %c0_30 = arith.constant 0 : index
    %c0_31 = arith.constant 0 : index
    %27 = vector.load %arg11[%c1_29, %c0_30, %c0_31] : memref<10x10x16xf32, #tpu.memory_space<vmem>>, vector<8x8x16xf32>
    %c3 = arith.constant 3 : index
    %c0_32 = arith.constant 0 : index
    %c0_33 = arith.constant 0 : index
    %c0_34 = arith.constant 0 : index
    %28 = vector.load %arg2[%c3, %c0_32, %c0_33, %c0_34] : memref<9x1x1x16xf32, #tpu.memory_space<vmem>>, vector<1x1x1x16xf32>
    %29 = vector.shape_cast %28 : vector<1x1x1x16xf32> to vector<1x1x16xf32>
    %30 = vector.broadcast %29 : vector<1x1x16xf32> to vector<8x8x16xf32>
    %31 = arith.mulf %27, %30 : vector<8x8x16xf32>
    %32 = arith.addf %26, %31 : vector<8x8x16xf32>
    %c1_35 = arith.constant 1 : index
    %c1_36 = arith.constant 1 : index
    %c0_37 = arith.constant 0 : index
    %33 = vector.load %arg11[%c1_35, %c1_36, %c0_37] : memref<10x10x16xf32, #tpu.memory_space<vmem>>, vector<8x8x16xf32>
    %c4 = arith.constant 4 : index
    %c0_38 = arith.constant 0 : index
    %c0_39 = arith.constant 0 : index
    %c0_40 = arith.constant 0 : index
    %34 = vector.load %arg2[%c4, %c0_38, %c0_39, %c0_40] : memref<9x1x1x16xf32, #tpu.memory_space<vmem>>, vector<1x1x1x16xf32>
    %35 = vector.shape_cast %34 : vector<1x1x1x16xf32> to vector<1x1x16xf32>
    %36 = vector.broadcast %35 : vector<1x1x16xf32> to vector<8x8x16xf32>
    %37 = arith.mulf %33, %36 : vector<8x8x16xf32>
    %38 = arith.addf %32, %37 : vector<8x8x16xf32>
    %c1_41 = arith.constant 1 : index
    %c2_42 = arith.constant 2 : index
    %c0_43 = arith.constant 0 : index
    %39 = vector.load %arg11[%c1_41, %c2_42, %c0_43] : memref<10x10x16xf32, #tpu.memory_space<vmem>>, vector<8x8x16xf32>
    %c5 = arith.constant 5 : index
    %c0_44 = arith.constant 0 : index
    %c0_45 = arith.constant 0 : index
    %c0_46 = arith.constant 0 : index
    %40 = vector.load %arg2[%c5, %c0_44, %c0_45, %c0_46] : memref<9x1x1x16xf32, #tpu.memory_space<vmem>>, vector<1x1x1x16xf32>
    %41 = vector.shape_cast %40 : vector<1x1x1x16xf32> to vector<1x1x16xf32>
    %42 = vector.broadcast %41 : vector<1x1x16xf32> to vector<8x8x16xf32>
    %43 = arith.mulf %39, %42 : vector<8x8x16xf32>
    %44 = arith.addf %38, %43 : vector<8x8x16xf32>
    %c2_47 = arith.constant 2 : index
    %c0_48 = arith.constant 0 : index
    %c0_49 = arith.constant 0 : index
    %45 = vector.load %arg11[%c2_47, %c0_48, %c0_49] : memref<10x10x16xf32, #tpu.memory_space<vmem>>, vector<8x8x16xf32>
    %c6 = arith.constant 6 : index
    %c0_50 = arith.constant 0 : index
    %c0_51 = arith.constant 0 : index
    %c0_52 = arith.constant 0 : index
    %46 = vector.load %arg2[%c6, %c0_50, %c0_51, %c0_52] : memref<9x1x1x16xf32, #tpu.memory_space<vmem>>, vector<1x1x1x16xf32>
    %47 = vector.shape_cast %46 : vector<1x1x1x16xf32> to vector<1x1x16xf32>
    %48 = vector.broadcast %47 : vector<1x1x16xf32> to vector<8x8x16xf32>
    %49 = arith.mulf %45, %48 : vector<8x8x16xf32>
    %50 = arith.addf %44, %49 : vector<8x8x16xf32>
    %c2_53 = arith.constant 2 : index
    %c1_54 = arith.constant 1 : index
    %c0_55 = arith.constant 0 : index
    %51 = vector.load %arg11[%c2_53, %c1_54, %c0_55] : memref<10x10x16xf32, #tpu.memory_space<vmem>>, vector<8x8x16xf32>
    %c7 = arith.constant 7 : index
    %c0_56 = arith.constant 0 : index
    %c0_57 = arith.constant 0 : index
    %c0_58 = arith.constant 0 : index
    %52 = vector.load %arg2[%c7, %c0_56, %c0_57, %c0_58] : memref<9x1x1x16xf32, #tpu.memory_space<vmem>>, vector<1x1x1x16xf32>
    %53 = vector.shape_cast %52 : vector<1x1x1x16xf32> to vector<1x1x16xf32>
    %54 = vector.broadcast %53 : vector<1x1x16xf32> to vector<8x8x16xf32>
    %55 = arith.mulf %51, %54 : vector<8x8x16xf32>
    %56 = arith.addf %50, %55 : vector<8x8x16xf32>
    %c2_59 = arith.constant 2 : index
    %c2_60 = arith.constant 2 : index
    %c0_61 = arith.constant 0 : index
    %57 = vector.load %arg11[%c2_59, %c2_60, %c0_61] : memref<10x10x16xf32, #tpu.memory_space<vmem>>, vector<8x8x16xf32>
    %c8 = arith.constant 8 : index
    %c0_62 = arith.constant 0 : index
    %c0_63 = arith.constant 0 : index
    %c0_64 = arith.constant 0 : index
    %58 = vector.load %arg2[%c8, %c0_62, %c0_63, %c0_64] : memref<9x1x1x16xf32, #tpu.memory_space<vmem>>, vector<1x1x1x16xf32>
    %59 = vector.shape_cast %58 : vector<1x1x1x16xf32> to vector<1x1x16xf32>
    %60 = vector.broadcast %59 : vector<1x1x16xf32> to vector<8x8x16xf32>
    %61 = arith.mulf %57, %60 : vector<8x8x16xf32>
    %62 = arith.addf %56, %61 : vector<8x8x16xf32>
    %c0_65 = arith.constant 0 : index
    %c0_66 = arith.constant 0 : index
    %c0_67 = arith.constant 0 : index
    %63 = vector.load %arg3[%c0_65, %c0_66, %c0_67] : memref<1x1x16xf32, #tpu.memory_space<vmem>>, vector<1x1x16xf32>
    %64 = vector.broadcast %63 : vector<1x1x16xf32> to vector<8x8x16xf32>
    %65 = arith.addf %62, %64 : vector<8x8x16xf32>
    %cst_68 = arith.constant 0.000000e+00 : f32
    %66 = vector.broadcast %cst_68 : f32 to vector<8x8x16xf32>
    %67 = arith.maximumf %65, %66 : vector<8x8x16xf32>
    %68 = vector.shape_cast %67 : vector<8x8x16xf32> to vector<4x2x8x16xf32>
    %69 = vector.extract_strided_slice %68 {offsets = [0, 0, 0, 0], sizes = [4, 1, 8, 16], strides = [1, 1, 1, 1]} : vector<4x2x8x16xf32> to vector<4x1x8x16xf32>
    %70 = vector.shape_cast %69 : vector<4x1x8x16xf32> to vector<4x8x16xf32>
    %71 = vector.shape_cast %70 : vector<4x8x16xf32> to vector<4x4x2x16xf32>
    %72 = vector.extract_strided_slice %71 {offsets = [0, 0, 0, 0], sizes = [4, 4, 1, 16], strides = [1, 1, 1, 1]} : vector<4x4x2x16xf32> to vector<4x4x1x16xf32>
    %73 = vector.shape_cast %72 : vector<4x4x1x16xf32> to vector<4x4x16xf32>
    %74 = vector.shape_cast %73 : vector<4x4x16xf32> to vector<16x16xf32>
    %cst_69 = arith.constant dense<0.000000e+00> : vector<16xf32>
    %75 = vector.multi_reduction <add>, %74, %cst_69 [0] : vector<16x16xf32> to vector<16xf32>
    %76 = vector.shape_cast %75 : vector<16xf32> to vector<1x16xf32>
    %cst_70 = arith.constant 1.600000e+01 : f32
    %77 = vector.broadcast %cst_70 : f32 to vector<1x16xf32>
    %78 = arith.divf %76, %77 : vector<1x16xf32>
    %c0_71 = arith.constant 0 : index
    %c0_72 = arith.constant 0 : index
    %79 = vector.load %arg4[%c0_71, %c0_72] : memref<16x8xf32, #tpu.memory_space<vmem>>, vector<16x8xf32>
    %cst_73 = arith.constant dense<0.000000e+00> : vector<1x8xf32>
    %80 = tpu.matmul %78, %79, %cst_73 {dimension_numbers = #tpu.dot_dimension_numbers<[1], [0], [0], [1], [0, 0, 1, 1], [], []>} : vector<1x16xf32>, vector<16x8xf32>, vector<1x8xf32> -> vector<1x8xf32>
    %c0_74 = arith.constant 0 : index
    %c0_75 = arith.constant 0 : index
    %81 = vector.load %arg5[%c0_74, %c0_75] : memref<1x8xf32, #tpu.memory_space<vmem>>, vector<1x8xf32>
    %82 = arith.addf %80, %81 : vector<1x8xf32>
    %cst_76 = arith.constant 0.000000e+00 : f32
    %83 = vector.broadcast %cst_76 : f32 to vector<1x8xf32>
    %84 = arith.maximumf %82, %83 : vector<1x8xf32>
    %c0_77 = arith.constant 0 : index
    %c0_78 = arith.constant 0 : index
    %85 = vector.load %arg6[%c0_77, %c0_78] : memref<8x16xf32, #tpu.memory_space<vmem>>, vector<8x16xf32>
    %cst_79 = arith.constant dense<0.000000e+00> : vector<1x16xf32>
    %86 = tpu.matmul %84, %85, %cst_79 {dimension_numbers = #tpu.dot_dimension_numbers<[1], [0], [0], [1], [0, 0, 1, 1], [], []>} : vector<1x8xf32>, vector<8x16xf32>, vector<1x16xf32> -> vector<1x16xf32>
    %c0_80 = arith.constant 0 : index
    %c0_81 = arith.constant 0 : index
    %87 = vector.load %arg7[%c0_80, %c0_81] : memref<1x16xf32, #tpu.memory_space<vmem>>, vector<1x16xf32>
    %88 = arith.addf %86, %87 : vector<1x16xf32>
    %cst_82 = arith.constant 3.000000e+00 : f32
    %89 = vector.broadcast %cst_82 : f32 to vector<1x16xf32>
    %90 = arith.addf %88, %89 : vector<1x16xf32>
    %cst_83 = arith.constant 0.000000e+00 : f32
    %cst_84 = arith.constant 6.000000e+00 : f32
    %91 = vector.broadcast %cst_83 : f32 to vector<1x16xf32>
    %92 = arith.maximumf %91, %90 : vector<1x16xf32>
    %93 = vector.broadcast %cst_84 : f32 to vector<1x16xf32>
    %94 = arith.minimumf %93, %92 : vector<1x16xf32>
    %cst_85 = arith.constant 0.166666672 : f32
    %95 = vector.broadcast %cst_85 : f32 to vector<1x16xf32>
    %96 = arith.mulf %94, %95 : vector<1x16xf32>
    %97 = vector.shape_cast %96 : vector<1x16xf32> to vector<1x1x16xf32>
    %98 = vector.broadcast %97 : vector<1x1x16xf32> to vector<4x4x16xf32>
    %99 = arith.mulf %73, %98 : vector<4x4x16xf32>
    %100 = vector.shape_cast %99 : vector<4x4x16xf32> to vector<16x16xf32>
    %101 = arith.truncf %100 : vector<16x16xf32> to vector<16x16xbf16>
    %c0_86 = arith.constant 0 : index
    %c0_87 = arith.constant 0 : index
    %102 = vector.load %arg8[%c0_86, %c0_87] : memref<16x16xbf16, #tpu.memory_space<vmem>>, vector<16x16xbf16>
    %cst_88 = arith.constant dense<0.000000e+00> : vector<16x16xf32>
    %103 = tpu.matmul %101, %102, %cst_88 {dimension_numbers = #tpu.dot_dimension_numbers<[1], [0], [0], [1], [0, 0, 1, 1], [], []>} : vector<16x16xbf16>, vector<16x16xbf16>, vector<16x16xf32> -> vector<16x16xf32>
    %c0_89 = arith.constant 0 : index
    %c0_90 = arith.constant 0 : index
    %104 = vector.load %arg9[%c0_89, %c0_90] : memref<1x16xf32, #tpu.memory_space<vmem>>, vector<1x16xf32>
    %105 = vector.broadcast %104 : vector<1x16xf32> to vector<16x16xf32>
    %106 = arith.addf %103, %105 : vector<16x16xf32>
    %107 = vector.shape_cast %106 : vector<16x16xf32> to vector<4x4x16xf32>
    %108 = arith.truncf %107 : vector<4x4x16xf32> to vector<4x4x16xbf16>
    %c0_91 = arith.constant 0 : index
    %c0_92 = arith.constant 0 : index
    %c0_93 = arith.constant 0 : index
    %c0_94 = arith.constant 0 : index
    %109 = vector.load %arg10[%c0_91, %c0_92, %c0_93, %c0_94] : memref<1x4x4x16xbf16, #tpu.memory_space<vmem>>, vector<1x4x4x16xbf16>
    %110 = vector.shape_cast %109 : vector<1x4x4x16xbf16> to vector<4x4x16xbf16>
    %111 = vector.shape_cast %108 : vector<4x4x16xbf16> to vector<1x4x4x16xbf16>
    tpu.vector_store %arg10[%c0_91, %c0_92, %c0_93, %c0_94], %111 {strides = array<i32>} : memref<1x4x4x16xbf16, #tpu.memory_space<vmem>>, vector<1x4x4x16xbf16>,
    return
  }
  func.func @transform_0(%arg0: i32) -> (i32, i32, i32, i32) {
    %c0_i32 = arith.constant 0 : i32
    %c0_i32_0 = arith.constant 0 : i32
    %c0_i32_1 = arith.constant 0 : i32
    %c0_i32_2 = arith.constant 0 : i32
    return %arg0, %c0_i32, %c0_i32_0, %c0_i32_1 : i32, i32, i32, i32
  }
  func.func @transform_1(%arg0: i32) -> (i32, i32, i32, i32) {
    %c0_i32 = arith.constant 0 : i32
    %c0_i32_0 = arith.constant 0 : i32
    %c0_i32_1 = arith.constant 0 : i32
    %c0_i32_2 = arith.constant 0 : i32
    %c0_i32_3 = arith.constant 0 : i32
    return %c0_i32, %c0_i32_0, %c0_i32_1, %c0_i32_2 : i32, i32, i32, i32
  }
  func.func @transform_2(%arg0: i32) -> (i32, i32, i32) {
    %c0_i32 = arith.constant 0 : i32
    %c0_i32_0 = arith.constant 0 : i32
    %c0_i32_1 = arith.constant 0 : i32
    %c0_i32_2 = arith.constant 0 : i32
    return %c0_i32, %c0_i32_0, %c0_i32_1 : i32, i32, i32
  }
  func.func @transform_3(%arg0: i32) -> (i32, i32) {
    %c0_i32 = arith.constant 0 : i32
    %c0_i32_0 = arith.constant 0 : i32
    %c0_i32_1 = arith.constant 0 : i32
    return %c0_i32, %c0_i32_0 : i32, i32
  }
  func.func @transform_4(%arg0: i32) -> (i32, i32) {
    %c0_i32 = arith.constant 0 : i32
    %c0_i32_0 = arith.constant 0 : i32
    %c0_i32_1 = arith.constant 0 : i32
    return %c0_i32, %c0_i32_0 : i32, i32
  }
  func.func @transform_5(%arg0: i32) -> (i32, i32) {
    %c0_i32 = arith.constant 0 : i32
    %c0_i32_0 = arith.constant 0 : i32
    %c0_i32_1 = arith.constant 0 : i32
    return %c0_i32, %c0_i32_0 : i32, i32
  }
  func.func @transform_6(%arg0: i32) -> (i32, i32) {
    %c0_i32 = arith.constant 0 : i32
    %c0_i32_0 = arith.constant 0 : i32
    %c0_i32_1 = arith.constant 0 : i32
    return %c0_i32, %c0_i32_0 : i32, i32
  }
  func.func @transform_7(%arg0: i32) -> (i32, i32) {
    %c0_i32 = arith.constant 0 : i32
    %c0_i32_0 = arith.constant 0 : i32
    %c0_i32_1 = arith.constant 0 : i32
    return %c0_i32, %c0_i32_0 : i32, i32
  }
  func.func @transform_8(%arg0: i32) -> (i32, i32) {
    %c0_i32 = arith.constant 0 : i32
    %c0_i32_0 = arith.constant 0 : i32
    %c0_i32_1 = arith.constant 0 : i32
    return %c0_i32, %c0_i32_0 : i32, i32
  }
  func.func @transform_9(%arg0: i32) -> (i32, i32, i32, i32) {
    %c0_i32 = arith.constant 0 : i32
    %c0_i32_0 = arith.constant 0 : i32
    %c0_i32_1 = arith.constant 0 : i32
    %c0_i32_2 = arith.constant 0 : i32
    return %arg0, %c0_i32, %c0_i32_0, %c0_i32_1 : i32, i32, i32, i32
  }
}

module attributes {stable_mosaic.version = 11 : i64} {
  func.func @_fused_block_kernel(%arg0: i32, %arg1: memref<1x4x4x16xbf16, #tpu.memory_space<vmem>>, %arg2: memref<16x72xbf16, #tpu.memory_space<vmem>>, %arg3: memref<1x72xf32, #tpu.memory_space<vmem>>, %arg4: memref<9x1x1x72xf32, #tpu.memory_space<vmem>>, %arg5: memref<1x1x72xf32, #tpu.memory_space<vmem>>, %arg6: memref<72x24xbf16, #tpu.memory_space<vmem>>, %arg7: memref<1x24xf32, #tpu.memory_space<vmem>>, %arg8: memref<1x2x2x24xbf16, #tpu.memory_space<vmem>>, %arg9: memref<6x6x72xf32, #tpu.memory_space<vmem>>) attributes {dimension_semantics = [#tpu.dimension_semantics<parallel>], iteration_bounds = array<i64: 2>, scalar_prefetch = 0 : i64, scratch_operands = 1 : i64, tpu.core_type = #tpu.core_type<tc>, window_params = [{transform_indices = @transform_0, window_bounds = array<i64: 1, 4, 4, 16>}, {pipeline_mode = #tpu.pipeline_mode<synchronous>, transform_indices = @transform_1, window_bounds = array<i64: 16, 72>}, {pipeline_mode = #tpu.pipeline_mode<synchronous>, transform_indices = @transform_2, window_bounds = array<i64: 1, 72>}, {pipeline_mode = #tpu.pipeline_mode<synchronous>, transform_indices = @transform_3, window_bounds = array<i64: 9, 1, 1, 72>}, {pipeline_mode = #tpu.pipeline_mode<synchronous>, transform_indices = @transform_4, window_bounds = array<i64: 1, 1, 72>}, {pipeline_mode = #tpu.pipeline_mode<synchronous>, transform_indices = @transform_5, window_bounds = array<i64: 72, 24>}, {pipeline_mode = #tpu.pipeline_mode<synchronous>, transform_indices = @transform_6, window_bounds = array<i64: 1, 24>}, {transform_indices = @transform_7, window_bounds = array<i64: 1, 2, 2, 24>}]} {
    %c0 = arith.constant 0 : index
    %c0_0 = arith.constant 0 : index
    %c0_1 = arith.constant 0 : index
    %c0_2 = arith.constant 0 : index
    %0 = vector.load %arg1[%c0, %c0_0, %c0_1, %c0_2] : memref<1x4x4x16xbf16, #tpu.memory_space<vmem>>, vector<1x4x4x16xbf16>
    %1 = vector.shape_cast %0 : vector<1x4x4x16xbf16> to vector<4x4x16xbf16>
    %2 = vector.shape_cast %1 : vector<4x4x16xbf16> to vector<16x16xbf16>
    %c0_3 = arith.constant 0 : index
    %c0_4 = arith.constant 0 : index
    %3 = vector.load %arg2[%c0_3, %c0_4] : memref<16x72xbf16, #tpu.memory_space<vmem>>, vector<16x72xbf16>
    %cst = arith.constant dense<0.000000e+00> : vector<16x72xf32>
    %4 = tpu.matmul %2, %3, %cst {dimension_numbers = #tpu.dot_dimension_numbers<[1], [0], [0], [1], [0, 0, 1, 1], [], []>} : vector<16x16xbf16>, vector<16x72xbf16>, vector<16x72xf32> -> vector<16x72xf32>
    %c0_5 = arith.constant 0 : index
    %c0_6 = arith.constant 0 : index
    %5 = vector.load %arg3[%c0_5, %c0_6] : memref<1x72xf32, #tpu.memory_space<vmem>>, vector<1x72xf32>
    %6 = vector.broadcast %5 : vector<1x72xf32> to vector<16x72xf32>
    %7 = arith.addf %4, %6 : vector<16x72xf32>
    %cst_7 = arith.constant 0.000000e+00 : f32
    %8 = vector.broadcast %cst_7 : f32 to vector<16x72xf32>
    %9 = arith.maximumf %7, %8 : vector<16x72xf32>
    %cst_8 = arith.constant 0.000000e+00 : f32
    %10 = vector.broadcast %cst_8 : f32 to vector<6x6x72xf32>
    %c0_9 = arith.constant 0 : index
    %c0_10 = arith.constant 0 : index
    %c0_11 = arith.constant 0 : index
    %11 = vector.load %arg9[%c0_9, %c0_10, %c0_11] : memref<6x6x72xf32, #tpu.memory_space<vmem>>, vector<6x6x72xf32>
    tpu.vector_store %arg9[%c0_9, %c0_10, %c0_11], %10 {strides = array<i32>} : memref<6x6x72xf32, #tpu.memory_space<vmem>>, vector<6x6x72xf32>,
    %12 = vector.shape_cast %9 : vector<16x72xf32> to vector<4x4x72xf32>
    %c1 = arith.constant 1 : index
    %c1_12 = arith.constant 1 : index
    %c0_13 = arith.constant 0 : index
    %13 = vector.load %arg9[%c1, %c1_12, %c0_13] : memref<6x6x72xf32, #tpu.memory_space<vmem>>, vector<4x4x72xf32>
    tpu.vector_store %arg9[%c1, %c1_12, %c0_13], %12 {strides = array<i32>} : memref<6x6x72xf32, #tpu.memory_space<vmem>>, vector<4x4x72xf32>,
    %cst_14 = arith.constant 0.000000e+00 : f32
    %14 = vector.broadcast %cst_14 : f32 to vector<4x4x72xf32>
    %c0_15 = arith.constant 0 : index
    %c0_16 = arith.constant 0 : index
    %c0_17 = arith.constant 0 : index
    %15 = vector.load %arg9[%c0_15, %c0_16, %c0_17] : memref<6x6x72xf32, #tpu.memory_space<vmem>>, vector<4x4x72xf32>
    %c0_18 = arith.constant 0 : index
    %c0_19 = arith.constant 0 : index
    %c0_20 = arith.constant 0 : index
    %c0_21 = arith.constant 0 : index
    %16 = vector.load %arg4[%c0_18, %c0_19, %c0_20, %c0_21] : memref<9x1x1x72xf32, #tpu.memory_space<vmem>>, vector<1x1x1x72xf32>
    %17 = vector.shape_cast %16 : vector<1x1x1x72xf32> to vector<1x1x72xf32>
    %18 = vector.broadcast %17 : vector<1x1x72xf32> to vector<4x4x72xf32>
    %19 = arith.mulf %15, %18 : vector<4x4x72xf32>
    %20 = arith.addf %14, %19 : vector<4x4x72xf32>
    %c0_22 = arith.constant 0 : index
    %c1_23 = arith.constant 1 : index
    %c0_24 = arith.constant 0 : index
    %21 = vector.load %arg9[%c0_22, %c1_23, %c0_24] : memref<6x6x72xf32, #tpu.memory_space<vmem>>, vector<4x4x72xf32>
    %c1_25 = arith.constant 1 : index
    %c0_26 = arith.constant 0 : index
    %c0_27 = arith.constant 0 : index
    %c0_28 = arith.constant 0 : index
    %22 = vector.load %arg4[%c1_25, %c0_26, %c0_27, %c0_28] : memref<9x1x1x72xf32, #tpu.memory_space<vmem>>, vector<1x1x1x72xf32>
    %23 = vector.shape_cast %22 : vector<1x1x1x72xf32> to vector<1x1x72xf32>
    %24 = vector.broadcast %23 : vector<1x1x72xf32> to vector<4x4x72xf32>
    %25 = arith.mulf %21, %24 : vector<4x4x72xf32>
    %26 = arith.addf %20, %25 : vector<4x4x72xf32>
    %c0_29 = arith.constant 0 : index
    %c2 = arith.constant 2 : index
    %c0_30 = arith.constant 0 : index
    %27 = vector.load %arg9[%c0_29, %c2, %c0_30] : memref<6x6x72xf32, #tpu.memory_space<vmem>>, vector<4x4x72xf32>
    %c2_31 = arith.constant 2 : index
    %c0_32 = arith.constant 0 : index
    %c0_33 = arith.constant 0 : index
    %c0_34 = arith.constant 0 : index
    %28 = vector.load %arg4[%c2_31, %c0_32, %c0_33, %c0_34] : memref<9x1x1x72xf32, #tpu.memory_space<vmem>>, vector<1x1x1x72xf32>
    %29 = vector.shape_cast %28 : vector<1x1x1x72xf32> to vector<1x1x72xf32>
    %30 = vector.broadcast %29 : vector<1x1x72xf32> to vector<4x4x72xf32>
    %31 = arith.mulf %27, %30 : vector<4x4x72xf32>
    %32 = arith.addf %26, %31 : vector<4x4x72xf32>
    %c1_35 = arith.constant 1 : index
    %c0_36 = arith.constant 0 : index
    %c0_37 = arith.constant 0 : index
    %33 = vector.load %arg9[%c1_35, %c0_36, %c0_37] : memref<6x6x72xf32, #tpu.memory_space<vmem>>, vector<4x4x72xf32>
    %c3 = arith.constant 3 : index
    %c0_38 = arith.constant 0 : index
    %c0_39 = arith.constant 0 : index
    %c0_40 = arith.constant 0 : index
    %34 = vector.load %arg4[%c3, %c0_38, %c0_39, %c0_40] : memref<9x1x1x72xf32, #tpu.memory_space<vmem>>, vector<1x1x1x72xf32>
    %35 = vector.shape_cast %34 : vector<1x1x1x72xf32> to vector<1x1x72xf32>
    %36 = vector.broadcast %35 : vector<1x1x72xf32> to vector<4x4x72xf32>
    %37 = arith.mulf %33, %36 : vector<4x4x72xf32>
    %38 = arith.addf %32, %37 : vector<4x4x72xf32>
    %c1_41 = arith.constant 1 : index
    %c1_42 = arith.constant 1 : index
    %c0_43 = arith.constant 0 : index
    %39 = vector.load %arg9[%c1_41, %c1_42, %c0_43] : memref<6x6x72xf32, #tpu.memory_space<vmem>>, vector<4x4x72xf32>
    %c4 = arith.constant 4 : index
    %c0_44 = arith.constant 0 : index
    %c0_45 = arith.constant 0 : index
    %c0_46 = arith.constant 0 : index
    %40 = vector.load %arg4[%c4, %c0_44, %c0_45, %c0_46] : memref<9x1x1x72xf32, #tpu.memory_space<vmem>>, vector<1x1x1x72xf32>
    %41 = vector.shape_cast %40 : vector<1x1x1x72xf32> to vector<1x1x72xf32>
    %42 = vector.broadcast %41 : vector<1x1x72xf32> to vector<4x4x72xf32>
    %43 = arith.mulf %39, %42 : vector<4x4x72xf32>
    %44 = arith.addf %38, %43 : vector<4x4x72xf32>
    %c1_47 = arith.constant 1 : index
    %c2_48 = arith.constant 2 : index
    %c0_49 = arith.constant 0 : index
    %45 = vector.load %arg9[%c1_47, %c2_48, %c0_49] : memref<6x6x72xf32, #tpu.memory_space<vmem>>, vector<4x4x72xf32>
    %c5 = arith.constant 5 : index
    %c0_50 = arith.constant 0 : index
    %c0_51 = arith.constant 0 : index
    %c0_52 = arith.constant 0 : index
    %46 = vector.load %arg4[%c5, %c0_50, %c0_51, %c0_52] : memref<9x1x1x72xf32, #tpu.memory_space<vmem>>, vector<1x1x1x72xf32>
    %47 = vector.shape_cast %46 : vector<1x1x1x72xf32> to vector<1x1x72xf32>
    %48 = vector.broadcast %47 : vector<1x1x72xf32> to vector<4x4x72xf32>
    %49 = arith.mulf %45, %48 : vector<4x4x72xf32>
    %50 = arith.addf %44, %49 : vector<4x4x72xf32>
    %c2_53 = arith.constant 2 : index
    %c0_54 = arith.constant 0 : index
    %c0_55 = arith.constant 0 : index
    %51 = vector.load %arg9[%c2_53, %c0_54, %c0_55] : memref<6x6x72xf32, #tpu.memory_space<vmem>>, vector<4x4x72xf32>
    %c6 = arith.constant 6 : index
    %c0_56 = arith.constant 0 : index
    %c0_57 = arith.constant 0 : index
    %c0_58 = arith.constant 0 : index
    %52 = vector.load %arg4[%c6, %c0_56, %c0_57, %c0_58] : memref<9x1x1x72xf32, #tpu.memory_space<vmem>>, vector<1x1x1x72xf32>
    %53 = vector.shape_cast %52 : vector<1x1x1x72xf32> to vector<1x1x72xf32>
    %54 = vector.broadcast %53 : vector<1x1x72xf32> to vector<4x4x72xf32>
    %55 = arith.mulf %51, %54 : vector<4x4x72xf32>
    %56 = arith.addf %50, %55 : vector<4x4x72xf32>
    %c2_59 = arith.constant 2 : index
    %c1_60 = arith.constant 1 : index
    %c0_61 = arith.constant 0 : index
    %57 = vector.load %arg9[%c2_59, %c1_60, %c0_61] : memref<6x6x72xf32, #tpu.memory_space<vmem>>, vector<4x4x72xf32>
    %c7 = arith.constant 7 : index
    %c0_62 = arith.constant 0 : index
    %c0_63 = arith.constant 0 : index
    %c0_64 = arith.constant 0 : index
    %58 = vector.load %arg4[%c7, %c0_62, %c0_63, %c0_64] : memref<9x1x1x72xf32, #tpu.memory_space<vmem>>, vector<1x1x1x72xf32>
    %59 = vector.shape_cast %58 : vector<1x1x1x72xf32> to vector<1x1x72xf32>
    %60 = vector.broadcast %59 : vector<1x1x72xf32> to vector<4x4x72xf32>
    %61 = arith.mulf %57, %60 : vector<4x4x72xf32>
    %62 = arith.addf %56, %61 : vector<4x4x72xf32>
    %c2_65 = arith.constant 2 : index
    %c2_66 = arith.constant 2 : index
    %c0_67 = arith.constant 0 : index
    %63 = vector.load %arg9[%c2_65, %c2_66, %c0_67] : memref<6x6x72xf32, #tpu.memory_space<vmem>>, vector<4x4x72xf32>
    %c8 = arith.constant 8 : index
    %c0_68 = arith.constant 0 : index
    %c0_69 = arith.constant 0 : index
    %c0_70 = arith.constant 0 : index
    %64 = vector.load %arg4[%c8, %c0_68, %c0_69, %c0_70] : memref<9x1x1x72xf32, #tpu.memory_space<vmem>>, vector<1x1x1x72xf32>
    %65 = vector.shape_cast %64 : vector<1x1x1x72xf32> to vector<1x1x72xf32>
    %66 = vector.broadcast %65 : vector<1x1x72xf32> to vector<4x4x72xf32>
    %67 = arith.mulf %63, %66 : vector<4x4x72xf32>
    %68 = arith.addf %62, %67 : vector<4x4x72xf32>
    %c0_71 = arith.constant 0 : index
    %c0_72 = arith.constant 0 : index
    %c0_73 = arith.constant 0 : index
    %69 = vector.load %arg5[%c0_71, %c0_72, %c0_73] : memref<1x1x72xf32, #tpu.memory_space<vmem>>, vector<1x1x72xf32>
    %70 = vector.broadcast %69 : vector<1x1x72xf32> to vector<4x4x72xf32>
    %71 = arith.addf %68, %70 : vector<4x4x72xf32>
    %cst_74 = arith.constant 0.000000e+00 : f32
    %72 = vector.broadcast %cst_74 : f32 to vector<4x4x72xf32>
    %73 = arith.maximumf %71, %72 : vector<4x4x72xf32>
    %74 = vector.shape_cast %73 : vector<4x4x72xf32> to vector<2x2x4x72xf32>
    %75 = vector.extract_strided_slice %74 {offsets = [0, 0, 0, 0], sizes = [2, 1, 4, 72], strides = [1, 1, 1, 1]} : vector<2x2x4x72xf32> to vector<2x1x4x72xf32>
    %76 = vector.shape_cast %75 : vector<2x1x4x72xf32> to vector<2x4x72xf32>
    %77 = vector.shape_cast %76 : vector<2x4x72xf32> to vector<2x2x2x72xf32>
    %78 = vector.extract_strided_slice %77 {offsets = [0, 0, 0, 0], sizes = [2, 2, 1, 72], strides = [1, 1, 1, 1]} : vector<2x2x2x72xf32> to vector<2x2x1x72xf32>
    %79 = vector.shape_cast %78 : vector<2x2x1x72xf32> to vector<2x2x72xf32>
    %80 = vector.shape_cast %79 : vector<2x2x72xf32> to vector<4x72xf32>
    %81 = arith.truncf %80 : vector<4x72xf32> to vector<4x72xbf16>
    %c0_75 = arith.constant 0 : index
    %c0_76 = arith.constant 0 : index
    %82 = vector.load %arg6[%c0_75, %c0_76] : memref<72x24xbf16, #tpu.memory_space<vmem>>, vector<72x24xbf16>
    %cst_77 = arith.constant dense<0.000000e+00> : vector<4x24xf32>
    %83 = tpu.matmul %81, %82, %cst_77 {dimension_numbers = #tpu.dot_dimension_numbers<[1], [0], [0], [1], [0, 0, 1, 1], [], []>} : vector<4x72xbf16>, vector<72x24xbf16>, vector<4x24xf32> -> vector<4x24xf32>
    %c0_78 = arith.constant 0 : index
    %c0_79 = arith.constant 0 : index
    %84 = vector.load %arg7[%c0_78, %c0_79] : memref<1x24xf32, #tpu.memory_space<vmem>>, vector<1x24xf32>
    %85 = vector.broadcast %84 : vector<1x24xf32> to vector<4x24xf32>
    %86 = arith.addf %83, %85 : vector<4x24xf32>
    %87 = vector.shape_cast %86 : vector<4x24xf32> to vector<2x2x24xf32>
    %88 = arith.truncf %87 : vector<2x2x24xf32> to vector<2x2x24xbf16>
    %c0_80 = arith.constant 0 : index
    %c0_81 = arith.constant 0 : index
    %c0_82 = arith.constant 0 : index
    %c0_83 = arith.constant 0 : index
    %89 = vector.load %arg8[%c0_80, %c0_81, %c0_82, %c0_83] : memref<1x2x2x24xbf16, #tpu.memory_space<vmem>>, vector<1x2x2x24xbf16>
    %90 = vector.shape_cast %89 : vector<1x2x2x24xbf16> to vector<2x2x24xbf16>
    %91 = vector.shape_cast %88 : vector<2x2x24xbf16> to vector<1x2x2x24xbf16>
    tpu.vector_store %arg8[%c0_80, %c0_81, %c0_82, %c0_83], %91 {strides = array<i32>} : memref<1x2x2x24xbf16, #tpu.memory_space<vmem>>, vector<1x2x2x24xbf16>,
    return
  }
  func.func @transform_0(%arg0: i32) -> (i32, i32, i32, i32) {
    %c0_i32 = arith.constant 0 : i32
    %c0_i32_0 = arith.constant 0 : i32
    %c0_i32_1 = arith.constant 0 : i32
    %c0_i32_2 = arith.constant 0 : i32
    return %arg0, %c0_i32, %c0_i32_0, %c0_i32_1 : i32, i32, i32, i32
  }
  func.func @transform_1(%arg0: i32) -> (i32, i32) {
    %c0_i32 = arith.constant 0 : i32
    %c0_i32_0 = arith.constant 0 : i32
    %c0_i32_1 = arith.constant 0 : i32
    return %c0_i32, %c0_i32_0 : i32, i32
  }
  func.func @transform_2(%arg0: i32) -> (i32, i32) {
    %c0_i32 = arith.constant 0 : i32
    %c0_i32_0 = arith.constant 0 : i32
    %c0_i32_1 = arith.constant 0 : i32
    return %c0_i32, %c0_i32_0 : i32, i32
  }
  func.func @transform_3(%arg0: i32) -> (i32, i32, i32, i32) {
    %c0_i32 = arith.constant 0 : i32
    %c0_i32_0 = arith.constant 0 : i32
    %c0_i32_1 = arith.constant 0 : i32
    %c0_i32_2 = arith.constant 0 : i32
    %c0_i32_3 = arith.constant 0 : i32
    return %c0_i32, %c0_i32_0, %c0_i32_1, %c0_i32_2 : i32, i32, i32, i32
  }
  func.func @transform_4(%arg0: i32) -> (i32, i32, i32) {
    %c0_i32 = arith.constant 0 : i32
    %c0_i32_0 = arith.constant 0 : i32
    %c0_i32_1 = arith.constant 0 : i32
    %c0_i32_2 = arith.constant 0 : i32
    return %c0_i32, %c0_i32_0, %c0_i32_1 : i32, i32, i32
  }
  func.func @transform_5(%arg0: i32) -> (i32, i32) {
    %c0_i32 = arith.constant 0 : i32
    %c0_i32_0 = arith.constant 0 : i32
    %c0_i32_1 = arith.constant 0 : i32
    return %c0_i32, %c0_i32_0 : i32, i32
  }
  func.func @transform_6(%arg0: i32) -> (i32, i32) {
    %c0_i32 = arith.constant 0 : i32
    %c0_i32_0 = arith.constant 0 : i32
    %c0_i32_1 = arith.constant 0 : i32
    return %c0_i32, %c0_i32_0 : i32, i32
  }
  func.func @transform_7(%arg0: i32) -> (i32, i32, i32, i32) {
    %c0_i32 = arith.constant 0 : i32
    %c0_i32_0 = arith.constant 0 : i32
    %c0_i32_1 = arith.constant 0 : i32
    %c0_i32_2 = arith.constant 0 : i32
    return %arg0, %c0_i32, %c0_i32_0, %c0_i32_1 : i32, i32, i32, i32
  }
}

module attributes {stable_mosaic.version = 11 : i64} {
  func.func @_fused_block_kernel(%arg0: i32, %arg1: memref<1x2x2x24xbf16, #tpu.memory_space<vmem>>, %arg2: memref<24x88xbf16, #tpu.memory_space<vmem>>, %arg3: memref<1x88xf32, #tpu.memory_space<vmem>>, %arg4: memref<9x1x1x88xf32, #tpu.memory_space<vmem>>, %arg5: memref<1x1x88xf32, #tpu.memory_space<vmem>>, %arg6: memref<88x24xbf16, #tpu.memory_space<vmem>>, %arg7: memref<1x24xf32, #tpu.memory_space<vmem>>, %arg8: memref<1x2x2x24xbf16, #tpu.memory_space<vmem>>, %arg9: memref<4x4x88xf32, #tpu.memory_space<vmem>>) attributes {dimension_semantics = [#tpu.dimension_semantics<parallel>], iteration_bounds = array<i64: 2>, scalar_prefetch = 0 : i64, scratch_operands = 1 : i64, tpu.core_type = #tpu.core_type<tc>, window_params = [{transform_indices = @transform_0, window_bounds = array<i64: 1, 2, 2, 24>}, {pipeline_mode = #tpu.pipeline_mode<synchronous>, transform_indices = @transform_1, window_bounds = array<i64: 24, 88>}, {pipeline_mode = #tpu.pipeline_mode<synchronous>, transform_indices = @transform_2, window_bounds = array<i64: 1, 88>}, {pipeline_mode = #tpu.pipeline_mode<synchronous>, transform_indices = @transform_3, window_bounds = array<i64: 9, 1, 1, 88>}, {pipeline_mode = #tpu.pipeline_mode<synchronous>, transform_indices = @transform_4, window_bounds = array<i64: 1, 1, 88>}, {pipeline_mode = #tpu.pipeline_mode<synchronous>, transform_indices = @transform_5, window_bounds = array<i64: 88, 24>}, {pipeline_mode = #tpu.pipeline_mode<synchronous>, transform_indices = @transform_6, window_bounds = array<i64: 1, 24>}, {transform_indices = @transform_7, window_bounds = array<i64: 1, 2, 2, 24>}]} {
    %c0 = arith.constant 0 : index
    %c0_0 = arith.constant 0 : index
    %c0_1 = arith.constant 0 : index
    %c0_2 = arith.constant 0 : index
    %0 = vector.load %arg1[%c0, %c0_0, %c0_1, %c0_2] : memref<1x2x2x24xbf16, #tpu.memory_space<vmem>>, vector<1x2x2x24xbf16>
    %1 = vector.shape_cast %0 : vector<1x2x2x24xbf16> to vector<2x2x24xbf16>
    %2 = vector.shape_cast %1 : vector<2x2x24xbf16> to vector<4x24xbf16>
    %c0_3 = arith.constant 0 : index
    %c0_4 = arith.constant 0 : index
    %3 = vector.load %arg2[%c0_3, %c0_4] : memref<24x88xbf16, #tpu.memory_space<vmem>>, vector<24x88xbf16>
    %cst = arith.constant dense<0.000000e+00> : vector<4x88xf32>
    %4 = tpu.matmul %2, %3, %cst {dimension_numbers = #tpu.dot_dimension_numbers<[1], [0], [0], [1], [0, 0, 1, 1], [], []>} : vector<4x24xbf16>, vector<24x88xbf16>, vector<4x88xf32> -> vector<4x88xf32>
    %c0_5 = arith.constant 0 : index
    %c0_6 = arith.constant 0 : index
    %5 = vector.load %arg3[%c0_5, %c0_6] : memref<1x88xf32, #tpu.memory_space<vmem>>, vector<1x88xf32>
    %6 = vector.broadcast %5 : vector<1x88xf32> to vector<4x88xf32>
    %7 = arith.addf %4, %6 : vector<4x88xf32>
    %cst_7 = arith.constant 0.000000e+00 : f32
    %8 = vector.broadcast %cst_7 : f32 to vector<4x88xf32>
    %9 = arith.maximumf %7, %8 : vector<4x88xf32>
    %cst_8 = arith.constant 0.000000e+00 : f32
    %10 = vector.broadcast %cst_8 : f32 to vector<4x4x88xf32>
    %c0_9 = arith.constant 0 : index
    %c0_10 = arith.constant 0 : index
    %c0_11 = arith.constant 0 : index
    %11 = vector.load %arg9[%c0_9, %c0_10, %c0_11] : memref<4x4x88xf32, #tpu.memory_space<vmem>>, vector<4x4x88xf32>
    tpu.vector_store %arg9[%c0_9, %c0_10, %c0_11], %10 {strides = array<i32>} : memref<4x4x88xf32, #tpu.memory_space<vmem>>, vector<4x4x88xf32>,
    %12 = vector.shape_cast %9 : vector<4x88xf32> to vector<2x2x88xf32>
    %c1 = arith.constant 1 : index
    %c1_12 = arith.constant 1 : index
    %c0_13 = arith.constant 0 : index
    %13 = vector.load %arg9[%c1, %c1_12, %c0_13] : memref<4x4x88xf32, #tpu.memory_space<vmem>>, vector<2x2x88xf32>
    tpu.vector_store %arg9[%c1, %c1_12, %c0_13], %12 {strides = array<i32>} : memref<4x4x88xf32, #tpu.memory_space<vmem>>, vector<2x2x88xf32>,
    %cst_14 = arith.constant 0.000000e+00 : f32
    %14 = vector.broadcast %cst_14 : f32 to vector<2x2x88xf32>
    %c0_15 = arith.constant 0 : index
    %c0_16 = arith.constant 0 : index
    %c0_17 = arith.constant 0 : index
    %15 = vector.load %arg9[%c0_15, %c0_16, %c0_17] : memref<4x4x88xf32, #tpu.memory_space<vmem>>, vector<2x2x88xf32>
    %c0_18 = arith.constant 0 : index
    %c0_19 = arith.constant 0 : index
    %c0_20 = arith.constant 0 : index
    %c0_21 = arith.constant 0 : index
    %16 = vector.load %arg4[%c0_18, %c0_19, %c0_20, %c0_21] : memref<9x1x1x88xf32, #tpu.memory_space<vmem>>, vector<1x1x1x88xf32>
    %17 = vector.shape_cast %16 : vector<1x1x1x88xf32> to vector<1x1x88xf32>
    %18 = vector.broadcast %17 : vector<1x1x88xf32> to vector<2x2x88xf32>
    %19 = arith.mulf %15, %18 : vector<2x2x88xf32>
    %20 = arith.addf %14, %19 : vector<2x2x88xf32>
    %c0_22 = arith.constant 0 : index
    %c1_23 = arith.constant 1 : index
    %c0_24 = arith.constant 0 : index
    %21 = vector.load %arg9[%c0_22, %c1_23, %c0_24] : memref<4x4x88xf32, #tpu.memory_space<vmem>>, vector<2x2x88xf32>
    %c1_25 = arith.constant 1 : index
    %c0_26 = arith.constant 0 : index
    %c0_27 = arith.constant 0 : index
    %c0_28 = arith.constant 0 : index
    %22 = vector.load %arg4[%c1_25, %c0_26, %c0_27, %c0_28] : memref<9x1x1x88xf32, #tpu.memory_space<vmem>>, vector<1x1x1x88xf32>
    %23 = vector.shape_cast %22 : vector<1x1x1x88xf32> to vector<1x1x88xf32>
    %24 = vector.broadcast %23 : vector<1x1x88xf32> to vector<2x2x88xf32>
    %25 = arith.mulf %21, %24 : vector<2x2x88xf32>
    %26 = arith.addf %20, %25 : vector<2x2x88xf32>
    %c0_29 = arith.constant 0 : index
    %c2 = arith.constant 2 : index
    %c0_30 = arith.constant 0 : index
    %27 = vector.load %arg9[%c0_29, %c2, %c0_30] : memref<4x4x88xf32, #tpu.memory_space<vmem>>, vector<2x2x88xf32>
    %c2_31 = arith.constant 2 : index
    %c0_32 = arith.constant 0 : index
    %c0_33 = arith.constant 0 : index
    %c0_34 = arith.constant 0 : index
    %28 = vector.load %arg4[%c2_31, %c0_32, %c0_33, %c0_34] : memref<9x1x1x88xf32, #tpu.memory_space<vmem>>, vector<1x1x1x88xf32>
    %29 = vector.shape_cast %28 : vector<1x1x1x88xf32> to vector<1x1x88xf32>
    %30 = vector.broadcast %29 : vector<1x1x88xf32> to vector<2x2x88xf32>
    %31 = arith.mulf %27, %30 : vector<2x2x88xf32>
    %32 = arith.addf %26, %31 : vector<2x2x88xf32>
    %c1_35 = arith.constant 1 : index
    %c0_36 = arith.constant 0 : index
    %c0_37 = arith.constant 0 : index
    %33 = vector.load %arg9[%c1_35, %c0_36, %c0_37] : memref<4x4x88xf32, #tpu.memory_space<vmem>>, vector<2x2x88xf32>
    %c3 = arith.constant 3 : index
    %c0_38 = arith.constant 0 : index
    %c0_39 = arith.constant 0 : index
    %c0_40 = arith.constant 0 : index
    %34 = vector.load %arg4[%c3, %c0_38, %c0_39, %c0_40] : memref<9x1x1x88xf32, #tpu.memory_space<vmem>>, vector<1x1x1x88xf32>
    %35 = vector.shape_cast %34 : vector<1x1x1x88xf32> to vector<1x1x88xf32>
    %36 = vector.broadcast %35 : vector<1x1x88xf32> to vector<2x2x88xf32>
    %37 = arith.mulf %33, %36 : vector<2x2x88xf32>
    %38 = arith.addf %32, %37 : vector<2x2x88xf32>
    %c1_41 = arith.constant 1 : index
    %c1_42 = arith.constant 1 : index
    %c0_43 = arith.constant 0 : index
    %39 = vector.load %arg9[%c1_41, %c1_42, %c0_43] : memref<4x4x88xf32, #tpu.memory_space<vmem>>, vector<2x2x88xf32>
    %c4 = arith.constant 4 : index
    %c0_44 = arith.constant 0 : index
    %c0_45 = arith.constant 0 : index
    %c0_46 = arith.constant 0 : index
    %40 = vector.load %arg4[%c4, %c0_44, %c0_45, %c0_46] : memref<9x1x1x88xf32, #tpu.memory_space<vmem>>, vector<1x1x1x88xf32>
    %41 = vector.shape_cast %40 : vector<1x1x1x88xf32> to vector<1x1x88xf32>
    %42 = vector.broadcast %41 : vector<1x1x88xf32> to vector<2x2x88xf32>
    %43 = arith.mulf %39, %42 : vector<2x2x88xf32>
    %44 = arith.addf %38, %43 : vector<2x2x88xf32>
    %c1_47 = arith.constant 1 : index
    %c2_48 = arith.constant 2 : index
    %c0_49 = arith.constant 0 : index
    %45 = vector.load %arg9[%c1_47, %c2_48, %c0_49] : memref<4x4x88xf32, #tpu.memory_space<vmem>>, vector<2x2x88xf32>
    %c5 = arith.constant 5 : index
    %c0_50 = arith.constant 0 : index
    %c0_51 = arith.constant 0 : index
    %c0_52 = arith.constant 0 : index
    %46 = vector.load %arg4[%c5, %c0_50, %c0_51, %c0_52] : memref<9x1x1x88xf32, #tpu.memory_space<vmem>>, vector<1x1x1x88xf32>
    %47 = vector.shape_cast %46 : vector<1x1x1x88xf32> to vector<1x1x88xf32>
    %48 = vector.broadcast %47 : vector<1x1x88xf32> to vector<2x2x88xf32>
    %49 = arith.mulf %45, %48 : vector<2x2x88xf32>
    %50 = arith.addf %44, %49 : vector<2x2x88xf32>
    %c2_53 = arith.constant 2 : index
    %c0_54 = arith.constant 0 : index
    %c0_55 = arith.constant 0 : index
    %51 = vector.load %arg9[%c2_53, %c0_54, %c0_55] : memref<4x4x88xf32, #tpu.memory_space<vmem>>, vector<2x2x88xf32>
    %c6 = arith.constant 6 : index
    %c0_56 = arith.constant 0 : index
    %c0_57 = arith.constant 0 : index
    %c0_58 = arith.constant 0 : index
    %52 = vector.load %arg4[%c6, %c0_56, %c0_57, %c0_58] : memref<9x1x1x88xf32, #tpu.memory_space<vmem>>, vector<1x1x1x88xf32>
    %53 = vector.shape_cast %52 : vector<1x1x1x88xf32> to vector<1x1x88xf32>
    %54 = vector.broadcast %53 : vector<1x1x88xf32> to vector<2x2x88xf32>
    %55 = arith.mulf %51, %54 : vector<2x2x88xf32>
    %56 = arith.addf %50, %55 : vector<2x2x88xf32>
    %c2_59 = arith.constant 2 : index
    %c1_60 = arith.constant 1 : index
    %c0_61 = arith.constant 0 : index
    %57 = vector.load %arg9[%c2_59, %c1_60, %c0_61] : memref<4x4x88xf32, #tpu.memory_space<vmem>>, vector<2x2x88xf32>
    %c7 = arith.constant 7 : index
    %c0_62 = arith.constant 0 : index
    %c0_63 = arith.constant 0 : index
    %c0_64 = arith.constant 0 : index
    %58 = vector.load %arg4[%c7, %c0_62, %c0_63, %c0_64] : memref<9x1x1x88xf32, #tpu.memory_space<vmem>>, vector<1x1x1x88xf32>
    %59 = vector.shape_cast %58 : vector<1x1x1x88xf32> to vector<1x1x88xf32>
    %60 = vector.broadcast %59 : vector<1x1x88xf32> to vector<2x2x88xf32>
    %61 = arith.mulf %57, %60 : vector<2x2x88xf32>
    %62 = arith.addf %56, %61 : vector<2x2x88xf32>
    %c2_65 = arith.constant 2 : index
    %c2_66 = arith.constant 2 : index
    %c0_67 = arith.constant 0 : index
    %63 = vector.load %arg9[%c2_65, %c2_66, %c0_67] : memref<4x4x88xf32, #tpu.memory_space<vmem>>, vector<2x2x88xf32>
    %c8 = arith.constant 8 : index
    %c0_68 = arith.constant 0 : index
    %c0_69 = arith.constant 0 : index
    %c0_70 = arith.constant 0 : index
    %64 = vector.load %arg4[%c8, %c0_68, %c0_69, %c0_70] : memref<9x1x1x88xf32, #tpu.memory_space<vmem>>, vector<1x1x1x88xf32>
    %65 = vector.shape_cast %64 : vector<1x1x1x88xf32> to vector<1x1x88xf32>
    %66 = vector.broadcast %65 : vector<1x1x88xf32> to vector<2x2x88xf32>
    %67 = arith.mulf %63, %66 : vector<2x2x88xf32>
    %68 = arith.addf %62, %67 : vector<2x2x88xf32>
    %c0_71 = arith.constant 0 : index
    %c0_72 = arith.constant 0 : index
    %c0_73 = arith.constant 0 : index
    %69 = vector.load %arg5[%c0_71, %c0_72, %c0_73] : memref<1x1x88xf32, #tpu.memory_space<vmem>>, vector<1x1x88xf32>
    %70 = vector.broadcast %69 : vector<1x1x88xf32> to vector<2x2x88xf32>
    %71 = arith.addf %68, %70 : vector<2x2x88xf32>
    %cst_74 = arith.constant 0.000000e+00 : f32
    %72 = vector.broadcast %cst_74 : f32 to vector<2x2x88xf32>
    %73 = arith.maximumf %71, %72 : vector<2x2x88xf32>
    %74 = vector.shape_cast %73 : vector<2x2x88xf32> to vector<4x88xf32>
    %75 = arith.truncf %74 : vector<4x88xf32> to vector<4x88xbf16>
    %c0_75 = arith.constant 0 : index
    %c0_76 = arith.constant 0 : index
    %76 = vector.load %arg6[%c0_75, %c0_76] : memref<88x24xbf16, #tpu.memory_space<vmem>>, vector<88x24xbf16>
    %cst_77 = arith.constant dense<0.000000e+00> : vector<4x24xf32>
    %77 = tpu.matmul %75, %76, %cst_77 {dimension_numbers = #tpu.dot_dimension_numbers<[1], [0], [0], [1], [0, 0, 1, 1], [], []>} : vector<4x88xbf16>, vector<88x24xbf16>, vector<4x24xf32> -> vector<4x24xf32>
    %c0_78 = arith.constant 0 : index
    %c0_79 = arith.constant 0 : index
    %78 = vector.load %arg7[%c0_78, %c0_79] : memref<1x24xf32, #tpu.memory_space<vmem>>, vector<1x24xf32>
    %79 = vector.broadcast %78 : vector<1x24xf32> to vector<4x24xf32>
    %80 = arith.addf %77, %79 : vector<4x24xf32>
    %81 = arith.extf %2 : vector<4x24xbf16> to vector<4x24xf32>
    %82 = arith.addf %80, %81 : vector<4x24xf32>
    %83 = vector.shape_cast %82 : vector<4x24xf32> to vector<2x2x24xf32>
    %84 = arith.truncf %83 : vector<2x2x24xf32> to vector<2x2x24xbf16>
    %c0_80 = arith.constant 0 : index
    %c0_81 = arith.constant 0 : index
    %c0_82 = arith.constant 0 : index
    %c0_83 = arith.constant 0 : index
    %85 = vector.load %arg8[%c0_80, %c0_81, %c0_82, %c0_83] : memref<1x2x2x24xbf16, #tpu.memory_space<vmem>>, vector<1x2x2x24xbf16>
    %86 = vector.shape_cast %85 : vector<1x2x2x24xbf16> to vector<2x2x24xbf16>
    %87 = vector.shape_cast %84 : vector<2x2x24xbf16> to vector<1x2x2x24xbf16>
    tpu.vector_store %arg8[%c0_80, %c0_81, %c0_82, %c0_83], %87 {strides = array<i32>} : memref<1x2x2x24xbf16, #tpu.memory_space<vmem>>, vector<1x2x2x24xbf16>,
    return
  }
  func.func @transform_0(%arg0: i32) -> (i32, i32, i32, i32) {
    %c0_i32 = arith.constant 0 : i32
    %c0_i32_0 = arith.constant 0 : i32
    %c0_i32_1 = arith.constant 0 : i32
    %c0_i32_2 = arith.constant 0 : i32
    return %arg0, %c0_i32, %c0_i32_0, %c0_i32_1 : i32, i32, i32, i32
  }
  func.func @transform_1(%arg0: i32) -> (i32, i32) {
    %c0_i32 = arith.constant 0 : i32
    %c0_i32_0 = arith.constant 0 : i32
    %c0_i32_1 = arith.constant 0 : i32
    return %c0_i32, %c0_i32_0 : i32, i32
  }
  func.func @transform_2(%arg0: i32) -> (i32, i32) {
    %c0_i32 = arith.constant 0 : i32
    %c0_i32_0 = arith.constant 0 : i32
    %c0_i32_1 = arith.constant 0 : i32
    return %c0_i32, %c0_i32_0 : i32, i32
  }
  func.func @transform_3(%arg0: i32) -> (i32, i32, i32, i32) {
    %c0_i32 = arith.constant 0 : i32
    %c0_i32_0 = arith.constant 0 : i32
    %c0_i32_1 = arith.constant 0 : i32
    %c0_i32_2 = arith.constant 0 : i32
    %c0_i32_3 = arith.constant 0 : i32
    return %c0_i32, %c0_i32_0, %c0_i32_1, %c0_i32_2 : i32, i32, i32, i32
  }
  func.func @transform_4(%arg0: i32) -> (i32, i32, i32) {
    %c0_i32 = arith.constant 0 : i32
    %c0_i32_0 = arith.constant 0 : i32
    %c0_i32_1 = arith.constant 0 : i32
    %c0_i32_2 = arith.constant 0 : i32
    return %c0_i32, %c0_i32_0, %c0_i32_1 : i32, i32, i32
  }
  func.func @transform_5(%arg0: i32) -> (i32, i32) {
    %c0_i32 = arith.constant 0 : i32
    %c0_i32_0 = arith.constant 0 : i32
    %c0_i32_1 = arith.constant 0 : i32
    return %c0_i32, %c0_i32_0 : i32, i32
  }
  func.func @transform_6(%arg0: i32) -> (i32, i32) {
    %c0_i32 = arith.constant 0 : i32
    %c0_i32_0 = arith.constant 0 : i32
    %c0_i32_1 = arith.constant 0 : i32
    return %c0_i32, %c0_i32_0 : i32, i32
  }
  func.func @transform_7(%arg0: i32) -> (i32, i32, i32, i32) {
    %c0_i32 = arith.constant 0 : i32
    %c0_i32_0 = arith.constant 0 : i32
    %c0_i32_1 = arith.constant 0 : i32
    %c0_i32_2 = arith.constant 0 : i32
    return %arg0, %c0_i32, %c0_i32_0, %c0_i32_1 : i32, i32, i32, i32
  }
}

module attributes {stable_mosaic.version = 11 : i64} {
  func.func @_matmul_bias_act_kernel(%arg0: i32, %arg1: memref<8x40xbf16, #tpu.memory_space<vmem>>, %arg2: memref<40x240xbf16, #tpu.memory_space<vmem>>, %arg3: memref<1x240xf32, #tpu.memory_space<vmem>>, %arg4: memref<8x240xbf16, #tpu.memory_space<vmem>>) attributes {dimension_semantics = [#tpu.dimension_semantics<parallel>], iteration_bounds = array<i64: 1>, scalar_prefetch = 0 : i64, scratch_operands = 0 : i64, tpu.core_type = #tpu.core_type<tc>, window_params = [{transform_indices = @transform_0, window_bounds = array<i64: 8, 40>}, {pipeline_mode = #tpu.pipeline_mode<synchronous>, transform_indices = @transform_1, window_bounds = array<i64: 40, 240>}, {pipeline_mode = #tpu.pipeline_mode<synchronous>, transform_indices = @transform_2, window_bounds = array<i64: 1, 240>}, {transform_indices = @transform_3, window_bounds = array<i64: 8, 240>}]} {
    %c0 = arith.constant 0 : index
    %c0_0 = arith.constant 0 : index
    %0 = vector.load %arg1[%c0, %c0_0] : memref<8x40xbf16, #tpu.memory_space<vmem>>, vector<8x40xbf16>
    %c0_1 = arith.constant 0 : index
    %c0_2 = arith.constant 0 : index
    %1 = vector.load %arg2[%c0_1, %c0_2] : memref<40x240xbf16, #tpu.memory_space<vmem>>, vector<40x240xbf16>
    %cst = arith.constant dense<0.000000e+00> : vector<8x240xf32>
    %2 = tpu.matmul %0, %1, %cst {dimension_numbers = #tpu.dot_dimension_numbers<[1], [0], [0], [1], [0, 0, 1, 1], [], []>} : vector<8x40xbf16>, vector<40x240xbf16>, vector<8x240xf32> -> vector<8x240xf32>
    %c0_3 = arith.constant 0 : index
    %c0_4 = arith.constant 0 : index
    %3 = vector.load %arg3[%c0_3, %c0_4] : memref<1x240xf32, #tpu.memory_space<vmem>>, vector<1x240xf32>
    %4 = vector.broadcast %3 : vector<1x240xf32> to vector<8x240xf32>
    %5 = arith.addf %2, %4 : vector<8x240xf32>
    %cst_5 = arith.constant 3.000000e+00 : f32
    %6 = vector.broadcast %cst_5 : f32 to vector<8x240xf32>
    %7 = arith.addf %5, %6 : vector<8x240xf32>
    %cst_6 = arith.constant 0.000000e+00 : f32
    %cst_7 = arith.constant 6.000000e+00 : f32
    %8 = vector.broadcast %cst_6 : f32 to vector<8x240xf32>
    %9 = arith.maximumf %8, %7 : vector<8x240xf32>
    %10 = vector.broadcast %cst_7 : f32 to vector<8x240xf32>
    %11 = arith.minimumf %10, %9 : vector<8x240xf32>
    %12 = arith.mulf %5, %11 : vector<8x240xf32>
    %cst_8 = arith.constant 0.166666672 : f32
    %13 = vector.broadcast %cst_8 : f32 to vector<8x240xf32>
    %14 = arith.mulf %12, %13 : vector<8x240xf32>
    %15 = arith.truncf %14 : vector<8x240xf32> to vector<8x240xbf16>
    %c0_9 = arith.constant 0 : index
    %c0_10 = arith.constant 0 : index
    %16 = vector.load %arg4[%c0_9, %c0_10] : memref<8x240xbf16, #tpu.memory_space<vmem>>, vector<8x240xbf16>
    tpu.vector_store %arg4[%c0_9, %c0_10], %15 {strides = array<i32>} : memref<8x240xbf16, #tpu.memory_space<vmem>>, vector<8x240xbf16>,
    return
  }
  func.func @transform_0(%arg0: i32) -> (i32, i32) {
    %c0_i32 = arith.constant 0 : i32
    %c0_i32_0 = arith.constant 0 : i32
    return %arg0, %c0_i32 : i32, i32
  }
  func.func @transform_1(%arg0: i32) -> (i32, i32) {
    %c0_i32 = arith.constant 0 : i32
    %c0_i32_0 = arith.constant 0 : i32
    %c0_i32_1 = arith.constant 0 : i32
    return %c0_i32, %c0_i32_0 : i32, i32
  }
  func.func @transform_2(%arg0: i32) -> (i32, i32) {
    %c0_i32 = arith.constant 0 : i32
    %c0_i32_0 = arith.constant 0 : i32
    %c0_i32_1 = arith.constant 0 : i32
    return %c0_i32, %c0_i32_0 : i32, i32
  }
  func.func @transform_3(%arg0: i32) -> (i32, i32) {
    %c0_i32 = arith.constant 0 : i32
    %c0_i32_0 = arith.constant 0 : i32
    return %arg0, %c0_i32 : i32, i32
  }
}

module attributes {stable_mosaic.version = 11 : i64} {
  func.func @_fused_block_kernel(%arg0: i32, %arg1: memref<1x2x2x24xbf16, #tpu.memory_space<vmem>>, %arg2: memref<24x96xbf16, #tpu.memory_space<vmem>>, %arg3: memref<1x96xf32, #tpu.memory_space<vmem>>, %arg4: memref<25x1x1x96xf32, #tpu.memory_space<vmem>>, %arg5: memref<1x1x96xf32, #tpu.memory_space<vmem>>, %arg6: memref<96x24xf32, #tpu.memory_space<vmem>>, %arg7: memref<1x24xf32, #tpu.memory_space<vmem>>, %arg8: memref<24x96xf32, #tpu.memory_space<vmem>>, %arg9: memref<1x96xf32, #tpu.memory_space<vmem>>, %arg10: memref<96x40xbf16, #tpu.memory_space<vmem>>, %arg11: memref<1x40xf32, #tpu.memory_space<vmem>>, %arg12: memref<1x2x2x40xbf16, #tpu.memory_space<vmem>>, %arg13: memref<6x6x96xf32, #tpu.memory_space<vmem>>) attributes {dimension_semantics = [#tpu.dimension_semantics<parallel>], iteration_bounds = array<i64: 2>, scalar_prefetch = 0 : i64, scratch_operands = 1 : i64, tpu.core_type = #tpu.core_type<tc>, window_params = [{transform_indices = @transform_0, window_bounds = array<i64: 1, 2, 2, 24>}, {pipeline_mode = #tpu.pipeline_mode<synchronous>, transform_indices = @transform_1, window_bounds = array<i64: 24, 96>}, {pipeline_mode = #tpu.pipeline_mode<synchronous>, transform_indices = @transform_2, window_bounds = array<i64: 1, 96>}, {pipeline_mode = #tpu.pipeline_mode<synchronous>, transform_indices = @transform_3, window_bounds = array<i64: 25, 1, 1, 96>}, {pipeline_mode = #tpu.pipeline_mode<synchronous>, transform_indices = @transform_4, window_bounds = array<i64: 1, 1, 96>}, {pipeline_mode = #tpu.pipeline_mode<synchronous>, transform_indices = @transform_5, window_bounds = array<i64: 96, 24>}, {pipeline_mode = #tpu.pipeline_mode<synchronous>, transform_indices = @transform_6, window_bounds = array<i64: 1, 24>}, {pipeline_mode = #tpu.pipeline_mode<synchronous>, transform_indices = @transform_7, window_bounds = array<i64: 24, 96>}, {pipeline_mode = #tpu.pipeline_mode<synchronous>, transform_indices = @transform_8, window_bounds = array<i64: 1, 96>}, {pipeline_mode = #tpu.pipeline_mode<synchronous>, transform_indices = @transform_9, window_bounds = array<i64: 96, 40>}, {pipeline_mode = #tpu.pipeline_mode<synchronous>, transform_indices = @transform_10, window_bounds = array<i64: 1, 40>}, {transform_indices = @transform_11, window_bounds = array<i64: 1, 2, 2, 40>}]} {
    %c0 = arith.constant 0 : index
    %c0_0 = arith.constant 0 : index
    %c0_1 = arith.constant 0 : index
    %c0_2 = arith.constant 0 : index
    %0 = vector.load %arg1[%c0, %c0_0, %c0_1, %c0_2] : memref<1x2x2x24xbf16, #tpu.memory_space<vmem>>, vector<1x2x2x24xbf16>
    %1 = vector.shape_cast %0 : vector<1x2x2x24xbf16> to vector<2x2x24xbf16>
    %2 = vector.shape_cast %1 : vector<2x2x24xbf16> to vector<4x24xbf16>
    %c0_3 = arith.constant 0 : index
    %c0_4 = arith.constant 0 : index
    %3 = vector.load %arg2[%c0_3, %c0_4] : memref<24x96xbf16, #tpu.memory_space<vmem>>, vector<24x96xbf16>
    %cst = arith.constant dense<0.000000e+00> : vector<4x96xf32>
    %4 = tpu.matmul %2, %3, %cst {dimension_numbers = #tpu.dot_dimension_numbers<[1], [0], [0], [1], [0, 0, 1, 1], [], []>} : vector<4x24xbf16>, vector<24x96xbf16>, vector<4x96xf32> -> vector<4x96xf32>
    %c0_5 = arith.constant 0 : index
    %c0_6 = arith.constant 0 : index
    %5 = vector.load %arg3[%c0_5, %c0_6] : memref<1x96xf32, #tpu.memory_space<vmem>>, vector<1x96xf32>
    %6 = vector.broadcast %5 : vector<1x96xf32> to vector<4x96xf32>
    %7 = arith.addf %4, %6 : vector<4x96xf32>
    %cst_7 = arith.constant 3.000000e+00 : f32
    %8 = vector.broadcast %cst_7 : f32 to vector<4x96xf32>
    %9 = arith.addf %7, %8 : vector<4x96xf32>
    %cst_8 = arith.constant 0.000000e+00 : f32
    %cst_9 = arith.constant 6.000000e+00 : f32
    %10 = vector.broadcast %cst_8 : f32 to vector<4x96xf32>
    %11 = arith.maximumf %10, %9 : vector<4x96xf32>
    %12 = vector.broadcast %cst_9 : f32 to vector<4x96xf32>
    %13 = arith.minimumf %12, %11 : vector<4x96xf32>
    %14 = arith.mulf %7, %13 : vector<4x96xf32>
    %cst_10 = arith.constant 0.166666672 : f32
    %15 = vector.broadcast %cst_10 : f32 to vector<4x96xf32>
    %16 = arith.mulf %14, %15 : vector<4x96xf32>
    %cst_11 = arith.constant 0.000000e+00 : f32
    %17 = vector.broadcast %cst_11 : f32 to vector<6x6x96xf32>
    %c0_12 = arith.constant 0 : index
    %c0_13 = arith.constant 0 : index
    %c0_14 = arith.constant 0 : index
    %18 = vector.load %arg13[%c0_12, %c0_13, %c0_14] : memref<6x6x96xf32, #tpu.memory_space<vmem>>, vector<6x6x96xf32>
    tpu.vector_store %arg13[%c0_12, %c0_13, %c0_14], %17 {strides = array<i32>} : memref<6x6x96xf32, #tpu.memory_space<vmem>>, vector<6x6x96xf32>,
    %19 = vector.shape_cast %16 : vector<4x96xf32> to vector<2x2x96xf32>
    %c2 = arith.constant 2 : index
    %c2_15 = arith.constant 2 : index
    %c0_16 = arith.constant 0 : index
    %20 = vector.load %arg13[%c2, %c2_15, %c0_16] : memref<6x6x96xf32, #tpu.memory_space<vmem>>, vector<2x2x96xf32>
    tpu.vector_store %arg13[%c2, %c2_15, %c0_16], %19 {strides = array<i32>} : memref<6x6x96xf32, #tpu.memory_space<vmem>>, vector<2x2x96xf32>,
    %cst_17 = arith.constant 0.000000e+00 : f32
    %21 = vector.broadcast %cst_17 : f32 to vector<2x2x96xf32>
    %c0_18 = arith.constant 0 : index
    %c0_19 = arith.constant 0 : index
    %c0_20 = arith.constant 0 : index
    %22 = vector.load %arg13[%c0_18, %c0_19, %c0_20] : memref<6x6x96xf32, #tpu.memory_space<vmem>>, vector<2x2x96xf32>
    %c0_21 = arith.constant 0 : index
    %c0_22 = arith.constant 0 : index
    %c0_23 = arith.constant 0 : index
    %c0_24 = arith.constant 0 : index
    %23 = vector.load %arg4[%c0_21, %c0_22, %c0_23, %c0_24] : memref<25x1x1x96xf32, #tpu.memory_space<vmem>>, vector<1x1x1x96xf32>
    %24 = vector.shape_cast %23 : vector<1x1x1x96xf32> to vector<1x1x96xf32>
    %25 = vector.broadcast %24 : vector<1x1x96xf32> to vector<2x2x96xf32>
    %26 = arith.mulf %22, %25 : vector<2x2x96xf32>
    %27 = arith.addf %21, %26 : vector<2x2x96xf32>
    %c0_25 = arith.constant 0 : index
    %c1 = arith.constant 1 : index
    %c0_26 = arith.constant 0 : index
    %28 = vector.load %arg13[%c0_25, %c1, %c0_26] : memref<6x6x96xf32, #tpu.memory_space<vmem>>, vector<2x2x96xf32>
    %c1_27 = arith.constant 1 : index
    %c0_28 = arith.constant 0 : index
    %c0_29 = arith.constant 0 : index
    %c0_30 = arith.constant 0 : index
    %29 = vector.load %arg4[%c1_27, %c0_28, %c0_29, %c0_30] : memref<25x1x1x96xf32, #tpu.memory_space<vmem>>, vector<1x1x1x96xf32>
    %30 = vector.shape_cast %29 : vector<1x1x1x96xf32> to vector<1x1x96xf32>
    %31 = vector.broadcast %30 : vector<1x1x96xf32> to vector<2x2x96xf32>
    %32 = arith.mulf %28, %31 : vector<2x2x96xf32>
    %33 = arith.addf %27, %32 : vector<2x2x96xf32>
    %c0_31 = arith.constant 0 : index
    %c2_32 = arith.constant 2 : index
    %c0_33 = arith.constant 0 : index
    %34 = vector.load %arg13[%c0_31, %c2_32, %c0_33] : memref<6x6x96xf32, #tpu.memory_space<vmem>>, vector<2x2x96xf32>
    %c2_34 = arith.constant 2 : index
    %c0_35 = arith.constant 0 : index
    %c0_36 = arith.constant 0 : index
    %c0_37 = arith.constant 0 : index
    %35 = vector.load %arg4[%c2_34, %c0_35, %c0_36, %c0_37] : memref<25x1x1x96xf32, #tpu.memory_space<vmem>>, vector<1x1x1x96xf32>
    %36 = vector.shape_cast %35 : vector<1x1x1x96xf32> to vector<1x1x96xf32>
    %37 = vector.broadcast %36 : vector<1x1x96xf32> to vector<2x2x96xf32>
    %38 = arith.mulf %34, %37 : vector<2x2x96xf32>
    %39 = arith.addf %33, %38 : vector<2x2x96xf32>
    %c0_38 = arith.constant 0 : index
    %c3 = arith.constant 3 : index
    %c0_39 = arith.constant 0 : index
    %40 = vector.load %arg13[%c0_38, %c3, %c0_39] : memref<6x6x96xf32, #tpu.memory_space<vmem>>, vector<2x2x96xf32>
    %c3_40 = arith.constant 3 : index
    %c0_41 = arith.constant 0 : index
    %c0_42 = arith.constant 0 : index
    %c0_43 = arith.constant 0 : index
    %41 = vector.load %arg4[%c3_40, %c0_41, %c0_42, %c0_43] : memref<25x1x1x96xf32, #tpu.memory_space<vmem>>, vector<1x1x1x96xf32>
    %42 = vector.shape_cast %41 : vector<1x1x1x96xf32> to vector<1x1x96xf32>
    %43 = vector.broadcast %42 : vector<1x1x96xf32> to vector<2x2x96xf32>
    %44 = arith.mulf %40, %43 : vector<2x2x96xf32>
    %45 = arith.addf %39, %44 : vector<2x2x96xf32>
    %c0_44 = arith.constant 0 : index
    %c4 = arith.constant 4 : index
    %c0_45 = arith.constant 0 : index
    %46 = vector.load %arg13[%c0_44, %c4, %c0_45] : memref<6x6x96xf32, #tpu.memory_space<vmem>>, vector<2x2x96xf32>
    %c4_46 = arith.constant 4 : index
    %c0_47 = arith.constant 0 : index
    %c0_48 = arith.constant 0 : index
    %c0_49 = arith.constant 0 : index
    %47 = vector.load %arg4[%c4_46, %c0_47, %c0_48, %c0_49] : memref<25x1x1x96xf32, #tpu.memory_space<vmem>>, vector<1x1x1x96xf32>
    %48 = vector.shape_cast %47 : vector<1x1x1x96xf32> to vector<1x1x96xf32>
    %49 = vector.broadcast %48 : vector<1x1x96xf32> to vector<2x2x96xf32>
    %50 = arith.mulf %46, %49 : vector<2x2x96xf32>
    %51 = arith.addf %45, %50 : vector<2x2x96xf32>
    %c1_50 = arith.constant 1 : index
    %c0_51 = arith.constant 0 : index
    %c0_52 = arith.constant 0 : index
    %52 = vector.load %arg13[%c1_50, %c0_51, %c0_52] : memref<6x6x96xf32, #tpu.memory_space<vmem>>, vector<2x2x96xf32>
    %c5 = arith.constant 5 : index
    %c0_53 = arith.constant 0 : index
    %c0_54 = arith.constant 0 : index
    %c0_55 = arith.constant 0 : index
    %53 = vector.load %arg4[%c5, %c0_53, %c0_54, %c0_55] : memref<25x1x1x96xf32, #tpu.memory_space<vmem>>, vector<1x1x1x96xf32>
    %54 = vector.shape_cast %53 : vector<1x1x1x96xf32> to vector<1x1x96xf32>
    %55 = vector.broadcast %54 : vector<1x1x96xf32> to vector<2x2x96xf32>
    %56 = arith.mulf %52, %55 : vector<2x2x96xf32>
    %57 = arith.addf %51, %56 : vector<2x2x96xf32>
    %c1_56 = arith.constant 1 : index
    %c1_57 = arith.constant 1 : index
    %c0_58 = arith.constant 0 : index
    %58 = vector.load %arg13[%c1_56, %c1_57, %c0_58] : memref<6x6x96xf32, #tpu.memory_space<vmem>>, vector<2x2x96xf32>
    %c6 = arith.constant 6 : index
    %c0_59 = arith.constant 0 : index
    %c0_60 = arith.constant 0 : index
    %c0_61 = arith.constant 0 : index
    %59 = vector.load %arg4[%c6, %c0_59, %c0_60, %c0_61] : memref<25x1x1x96xf32, #tpu.memory_space<vmem>>, vector<1x1x1x96xf32>
    %60 = vector.shape_cast %59 : vector<1x1x1x96xf32> to vector<1x1x96xf32>
    %61 = vector.broadcast %60 : vector<1x1x96xf32> to vector<2x2x96xf32>
    %62 = arith.mulf %58, %61 : vector<2x2x96xf32>
    %63 = arith.addf %57, %62 : vector<2x2x96xf32>
    %c1_62 = arith.constant 1 : index
    %c2_63 = arith.constant 2 : index
    %c0_64 = arith.constant 0 : index
    %64 = vector.load %arg13[%c1_62, %c2_63, %c0_64] : memref<6x6x96xf32, #tpu.memory_space<vmem>>, vector<2x2x96xf32>
    %c7 = arith.constant 7 : index
    %c0_65 = arith.constant 0 : index
    %c0_66 = arith.constant 0 : index
    %c0_67 = arith.constant 0 : index
    %65 = vector.load %arg4[%c7, %c0_65, %c0_66, %c0_67] : memref<25x1x1x96xf32, #tpu.memory_space<vmem>>, vector<1x1x1x96xf32>
    %66 = vector.shape_cast %65 : vector<1x1x1x96xf32> to vector<1x1x96xf32>
    %67 = vector.broadcast %66 : vector<1x1x96xf32> to vector<2x2x96xf32>
    %68 = arith.mulf %64, %67 : vector<2x2x96xf32>
    %69 = arith.addf %63, %68 : vector<2x2x96xf32>
    %c1_68 = arith.constant 1 : index
    %c3_69 = arith.constant 3 : index
    %c0_70 = arith.constant 0 : index
    %70 = vector.load %arg13[%c1_68, %c3_69, %c0_70] : memref<6x6x96xf32, #tpu.memory_space<vmem>>, vector<2x2x96xf32>
    %c8 = arith.constant 8 : index
    %c0_71 = arith.constant 0 : index
    %c0_72 = arith.constant 0 : index
    %c0_73 = arith.constant 0 : index
    %71 = vector.load %arg4[%c8, %c0_71, %c0_72, %c0_73] : memref<25x1x1x96xf32, #tpu.memory_space<vmem>>, vector<1x1x1x96xf32>
    %72 = vector.shape_cast %71 : vector<1x1x1x96xf32> to vector<1x1x96xf32>
    %73 = vector.broadcast %72 : vector<1x1x96xf32> to vector<2x2x96xf32>
    %74 = arith.mulf %70, %73 : vector<2x2x96xf32>
    %75 = arith.addf %69, %74 : vector<2x2x96xf32>
    %c1_74 = arith.constant 1 : index
    %c4_75 = arith.constant 4 : index
    %c0_76 = arith.constant 0 : index
    %76 = vector.load %arg13[%c1_74, %c4_75, %c0_76] : memref<6x6x96xf32, #tpu.memory_space<vmem>>, vector<2x2x96xf32>
    %c9 = arith.constant 9 : index
    %c0_77 = arith.constant 0 : index
    %c0_78 = arith.constant 0 : index
    %c0_79 = arith.constant 0 : index
    %77 = vector.load %arg4[%c9, %c0_77, %c0_78, %c0_79] : memref<25x1x1x96xf32, #tpu.memory_space<vmem>>, vector<1x1x1x96xf32>
    %78 = vector.shape_cast %77 : vector<1x1x1x96xf32> to vector<1x1x96xf32>
    %79 = vector.broadcast %78 : vector<1x1x96xf32> to vector<2x2x96xf32>
    %80 = arith.mulf %76, %79 : vector<2x2x96xf32>
    %81 = arith.addf %75, %80 : vector<2x2x96xf32>
    %c2_80 = arith.constant 2 : index
    %c0_81 = arith.constant 0 : index
    %c0_82 = arith.constant 0 : index
    %82 = vector.load %arg13[%c2_80, %c0_81, %c0_82] : memref<6x6x96xf32, #tpu.memory_space<vmem>>, vector<2x2x96xf32>
    %c10 = arith.constant 10 : index
    %c0_83 = arith.constant 0 : index
    %c0_84 = arith.constant 0 : index
    %c0_85 = arith.constant 0 : index
    %83 = vector.load %arg4[%c10, %c0_83, %c0_84, %c0_85] : memref<25x1x1x96xf32, #tpu.memory_space<vmem>>, vector<1x1x1x96xf32>
    %84 = vector.shape_cast %83 : vector<1x1x1x96xf32> to vector<1x1x96xf32>
    %85 = vector.broadcast %84 : vector<1x1x96xf32> to vector<2x2x96xf32>
    %86 = arith.mulf %82, %85 : vector<2x2x96xf32>
    %87 = arith.addf %81, %86 : vector<2x2x96xf32>
    %c2_86 = arith.constant 2 : index
    %c1_87 = arith.constant 1 : index
    %c0_88 = arith.constant 0 : index
    %88 = vector.load %arg13[%c2_86, %c1_87, %c0_88] : memref<6x6x96xf32, #tpu.memory_space<vmem>>, vector<2x2x96xf32>
    %c11 = arith.constant 11 : index
    %c0_89 = arith.constant 0 : index
    %c0_90 = arith.constant 0 : index
    %c0_91 = arith.constant 0 : index
    %89 = vector.load %arg4[%c11, %c0_89, %c0_90, %c0_91] : memref<25x1x1x96xf32, #tpu.memory_space<vmem>>, vector<1x1x1x96xf32>
    %90 = vector.shape_cast %89 : vector<1x1x1x96xf32> to vector<1x1x96xf32>
    %91 = vector.broadcast %90 : vector<1x1x96xf32> to vector<2x2x96xf32>
    %92 = arith.mulf %88, %91 : vector<2x2x96xf32>
    %93 = arith.addf %87, %92 : vector<2x2x96xf32>
    %c2_92 = arith.constant 2 : index
    %c2_93 = arith.constant 2 : index
    %c0_94 = arith.constant 0 : index
    %94 = vector.load %arg13[%c2_92, %c2_93, %c0_94] : memref<6x6x96xf32, #tpu.memory_space<vmem>>, vector<2x2x96xf32>
    %c12 = arith.constant 12 : index
    %c0_95 = arith.constant 0 : index
    %c0_96 = arith.constant 0 : index
    %c0_97 = arith.constant 0 : index
    %95 = vector.load %arg4[%c12, %c0_95, %c0_96, %c0_97] : memref<25x1x1x96xf32, #tpu.memory_space<vmem>>, vector<1x1x1x96xf32>
    %96 = vector.shape_cast %95 : vector<1x1x1x96xf32> to vector<1x1x96xf32>
    %97 = vector.broadcast %96 : vector<1x1x96xf32> to vector<2x2x96xf32>
    %98 = arith.mulf %94, %97 : vector<2x2x96xf32>
    %99 = arith.addf %93, %98 : vector<2x2x96xf32>
    %c2_98 = arith.constant 2 : index
    %c3_99 = arith.constant 3 : index
    %c0_100 = arith.constant 0 : index
    %100 = vector.load %arg13[%c2_98, %c3_99, %c0_100] : memref<6x6x96xf32, #tpu.memory_space<vmem>>, vector<2x2x96xf32>
    %c13 = arith.constant 13 : index
    %c0_101 = arith.constant 0 : index
    %c0_102 = arith.constant 0 : index
    %c0_103 = arith.constant 0 : index
    %101 = vector.load %arg4[%c13, %c0_101, %c0_102, %c0_103] : memref<25x1x1x96xf32, #tpu.memory_space<vmem>>, vector<1x1x1x96xf32>
    %102 = vector.shape_cast %101 : vector<1x1x1x96xf32> to vector<1x1x96xf32>
    %103 = vector.broadcast %102 : vector<1x1x96xf32> to vector<2x2x96xf32>
    %104 = arith.mulf %100, %103 : vector<2x2x96xf32>
    %105 = arith.addf %99, %104 : vector<2x2x96xf32>
    %c2_104 = arith.constant 2 : index
    %c4_105 = arith.constant 4 : index
    %c0_106 = arith.constant 0 : index
    %106 = vector.load %arg13[%c2_104, %c4_105, %c0_106] : memref<6x6x96xf32, #tpu.memory_space<vmem>>, vector<2x2x96xf32>
    %c14 = arith.constant 14 : index
    %c0_107 = arith.constant 0 : index
    %c0_108 = arith.constant 0 : index
    %c0_109 = arith.constant 0 : index
    %107 = vector.load %arg4[%c14, %c0_107, %c0_108, %c0_109] : memref<25x1x1x96xf32, #tpu.memory_space<vmem>>, vector<1x1x1x96xf32>
    %108 = vector.shape_cast %107 : vector<1x1x1x96xf32> to vector<1x1x96xf32>
    %109 = vector.broadcast %108 : vector<1x1x96xf32> to vector<2x2x96xf32>
    %110 = arith.mulf %106, %109 : vector<2x2x96xf32>
    %111 = arith.addf %105, %110 : vector<2x2x96xf32>
    %c3_110 = arith.constant 3 : index
    %c0_111 = arith.constant 0 : index
    %c0_112 = arith.constant 0 : index
    %112 = vector.load %arg13[%c3_110, %c0_111, %c0_112] : memref<6x6x96xf32, #tpu.memory_space<vmem>>, vector<2x2x96xf32>
    %c15 = arith.constant 15 : index
    %c0_113 = arith.constant 0 : index
    %c0_114 = arith.constant 0 : index
    %c0_115 = arith.constant 0 : index
    %113 = vector.load %arg4[%c15, %c0_113, %c0_114, %c0_115] : memref<25x1x1x96xf32, #tpu.memory_space<vmem>>, vector<1x1x1x96xf32>
    %114 = vector.shape_cast %113 : vector<1x1x1x96xf32> to vector<1x1x96xf32>
    %115 = vector.broadcast %114 : vector<1x1x96xf32> to vector<2x2x96xf32>
    %116 = arith.mulf %112, %115 : vector<2x2x96xf32>
    %117 = arith.addf %111, %116 : vector<2x2x96xf32>
    %c3_116 = arith.constant 3 : index
    %c1_117 = arith.constant 1 : index
    %c0_118 = arith.constant 0 : index
    %118 = vector.load %arg13[%c3_116, %c1_117, %c0_118] : memref<6x6x96xf32, #tpu.memory_space<vmem>>, vector<2x2x96xf32>
    %c16 = arith.constant 16 : index
    %c0_119 = arith.constant 0 : index
    %c0_120 = arith.constant 0 : index
    %c0_121 = arith.constant 0 : index
    %119 = vector.load %arg4[%c16, %c0_119, %c0_120, %c0_121] : memref<25x1x1x96xf32, #tpu.memory_space<vmem>>, vector<1x1x1x96xf32>
    %120 = vector.shape_cast %119 : vector<1x1x1x96xf32> to vector<1x1x96xf32>
    %121 = vector.broadcast %120 : vector<1x1x96xf32> to vector<2x2x96xf32>
    %122 = arith.mulf %118, %121 : vector<2x2x96xf32>
    %123 = arith.addf %117, %122 : vector<2x2x96xf32>
    %c3_122 = arith.constant 3 : index
    %c2_123 = arith.constant 2 : index
    %c0_124 = arith.constant 0 : index
    %124 = vector.load %arg13[%c3_122, %c2_123, %c0_124] : memref<6x6x96xf32, #tpu.memory_space<vmem>>, vector<2x2x96xf32>
    %c17 = arith.constant 17 : index
    %c0_125 = arith.constant 0 : index
    %c0_126 = arith.constant 0 : index
    %c0_127 = arith.constant 0 : index
    %125 = vector.load %arg4[%c17, %c0_125, %c0_126, %c0_127] : memref<25x1x1x96xf32, #tpu.memory_space<vmem>>, vector<1x1x1x96xf32>
    %126 = vector.shape_cast %125 : vector<1x1x1x96xf32> to vector<1x1x96xf32>
    %127 = vector.broadcast %126 : vector<1x1x96xf32> to vector<2x2x96xf32>
    %128 = arith.mulf %124, %127 : vector<2x2x96xf32>
    %129 = arith.addf %123, %128 : vector<2x2x96xf32>
    %c3_128 = arith.constant 3 : index
    %c3_129 = arith.constant 3 : index
    %c0_130 = arith.constant 0 : index
    %130 = vector.load %arg13[%c3_128, %c3_129, %c0_130] : memref<6x6x96xf32, #tpu.memory_space<vmem>>, vector<2x2x96xf32>
    %c18 = arith.constant 18 : index
    %c0_131 = arith.constant 0 : index
    %c0_132 = arith.constant 0 : index
    %c0_133 = arith.constant 0 : index
    %131 = vector.load %arg4[%c18, %c0_131, %c0_132, %c0_133] : memref<25x1x1x96xf32, #tpu.memory_space<vmem>>, vector<1x1x1x96xf32>
    %132 = vector.shape_cast %131 : vector<1x1x1x96xf32> to vector<1x1x96xf32>
    %133 = vector.broadcast %132 : vector<1x1x96xf32> to vector<2x2x96xf32>
    %134 = arith.mulf %130, %133 : vector<2x2x96xf32>
    %135 = arith.addf %129, %134 : vector<2x2x96xf32>
    %c3_134 = arith.constant 3 : index
    %c4_135 = arith.constant 4 : index
    %c0_136 = arith.constant 0 : index
    %136 = vector.load %arg13[%c3_134, %c4_135, %c0_136] : memref<6x6x96xf32, #tpu.memory_space<vmem>>, vector<2x2x96xf32>
    %c19 = arith.constant 19 : index
    %c0_137 = arith.constant 0 : index
    %c0_138 = arith.constant 0 : index
    %c0_139 = arith.constant 0 : index
    %137 = vector.load %arg4[%c19, %c0_137, %c0_138, %c0_139] : memref<25x1x1x96xf32, #tpu.memory_space<vmem>>, vector<1x1x1x96xf32>
    %138 = vector.shape_cast %137 : vector<1x1x1x96xf32> to vector<1x1x96xf32>
    %139 = vector.broadcast %138 : vector<1x1x96xf32> to vector<2x2x96xf32>
    %140 = arith.mulf %136, %139 : vector<2x2x96xf32>
    %141 = arith.addf %135, %140 : vector<2x2x96xf32>
    %c4_140 = arith.constant 4 : index
    %c0_141 = arith.constant 0 : index
    %c0_142 = arith.constant 0 : index
    %142 = vector.load %arg13[%c4_140, %c0_141, %c0_142] : memref<6x6x96xf32, #tpu.memory_space<vmem>>, vector<2x2x96xf32>
    %c20 = arith.constant 20 : index
    %c0_143 = arith.constant 0 : index
    %c0_144 = arith.constant 0 : index
    %c0_145 = arith.constant 0 : index
    %143 = vector.load %arg4[%c20, %c0_143, %c0_144, %c0_145] : memref<25x1x1x96xf32, #tpu.memory_space<vmem>>, vector<1x1x1x96xf32>
    %144 = vector.shape_cast %143 : vector<1x1x1x96xf32> to vector<1x1x96xf32>
    %145 = vector.broadcast %144 : vector<1x1x96xf32> to vector<2x2x96xf32>
    %146 = arith.mulf %142, %145 : vector<2x2x96xf32>
    %147 = arith.addf %141, %146 : vector<2x2x96xf32>
    %c4_146 = arith.constant 4 : index
    %c1_147 = arith.constant 1 : index
    %c0_148 = arith.constant 0 : index
    %148 = vector.load %arg13[%c4_146, %c1_147, %c0_148] : memref<6x6x96xf32, #tpu.memory_space<vmem>>, vector<2x2x96xf32>
    %c21 = arith.constant 21 : index
    %c0_149 = arith.constant 0 : index
    %c0_150 = arith.constant 0 : index
    %c0_151 = arith.constant 0 : index
    %149 = vector.load %arg4[%c21, %c0_149, %c0_150, %c0_151] : memref<25x1x1x96xf32, #tpu.memory_space<vmem>>, vector<1x1x1x96xf32>
    %150 = vector.shape_cast %149 : vector<1x1x1x96xf32> to vector<1x1x96xf32>
    %151 = vector.broadcast %150 : vector<1x1x96xf32> to vector<2x2x96xf32>
    %152 = arith.mulf %148, %151 : vector<2x2x96xf32>
    %153 = arith.addf %147, %152 : vector<2x2x96xf32>
    %c4_152 = arith.constant 4 : index
    %c2_153 = arith.constant 2 : index
    %c0_154 = arith.constant 0 : index
    %154 = vector.load %arg13[%c4_152, %c2_153, %c0_154] : memref<6x6x96xf32, #tpu.memory_space<vmem>>, vector<2x2x96xf32>
    %c22 = arith.constant 22 : index
    %c0_155 = arith.constant 0 : index
    %c0_156 = arith.constant 0 : index
    %c0_157 = arith.constant 0 : index
    %155 = vector.load %arg4[%c22, %c0_155, %c0_156, %c0_157] : memref<25x1x1x96xf32, #tpu.memory_space<vmem>>, vector<1x1x1x96xf32>
    %156 = vector.shape_cast %155 : vector<1x1x1x96xf32> to vector<1x1x96xf32>
    %157 = vector.broadcast %156 : vector<1x1x96xf32> to vector<2x2x96xf32>
    %158 = arith.mulf %154, %157 : vector<2x2x96xf32>
    %159 = arith.addf %153, %158 : vector<2x2x96xf32>
    %c4_158 = arith.constant 4 : index
    %c3_159 = arith.constant 3 : index
    %c0_160 = arith.constant 0 : index
    %160 = vector.load %arg13[%c4_158, %c3_159, %c0_160] : memref<6x6x96xf32, #tpu.memory_space<vmem>>, vector<2x2x96xf32>
    %c23 = arith.constant 23 : index
    %c0_161 = arith.constant 0 : index
    %c0_162 = arith.constant 0 : index
    %c0_163 = arith.constant 0 : index
    %161 = vector.load %arg4[%c23, %c0_161, %c0_162, %c0_163] : memref<25x1x1x96xf32, #tpu.memory_space<vmem>>, vector<1x1x1x96xf32>
    %162 = vector.shape_cast %161 : vector<1x1x1x96xf32> to vector<1x1x96xf32>
    %163 = vector.broadcast %162 : vector<1x1x96xf32> to vector<2x2x96xf32>
    %164 = arith.mulf %160, %163 : vector<2x2x96xf32>
    %165 = arith.addf %159, %164 : vector<2x2x96xf32>
    %c4_164 = arith.constant 4 : index
    %c4_165 = arith.constant 4 : index
    %c0_166 = arith.constant 0 : index
    %166 = vector.load %arg13[%c4_164, %c4_165, %c0_166] : memref<6x6x96xf32, #tpu.memory_space<vmem>>, vector<2x2x96xf32>
    %c24 = arith.constant 24 : index
    %c0_167 = arith.constant 0 : index
    %c0_168 = arith.constant 0 : index
    %c0_169 = arith.constant 0 : index
    %167 = vector.load %arg4[%c24, %c0_167, %c0_168, %c0_169] : memref<25x1x1x96xf32, #tpu.memory_space<vmem>>, vector<1x1x1x96xf32>
    %168 = vector.shape_cast %167 : vector<1x1x1x96xf32> to vector<1x1x96xf32>
    %169 = vector.broadcast %168 : vector<1x1x96xf32> to vector<2x2x96xf32>
    %170 = arith.mulf %166, %169 : vector<2x2x96xf32>
    %171 = arith.addf %165, %170 : vector<2x2x96xf32>
    %c0_170 = arith.constant 0 : index
    %c0_171 = arith.constant 0 : index
    %c0_172 = arith.constant 0 : index
    %172 = vector.load %arg5[%c0_170, %c0_171, %c0_172] : memref<1x1x96xf32, #tpu.memory_space<vmem>>, vector<1x1x96xf32>
    %173 = vector.broadcast %172 : vector<1x1x96xf32> to vector<2x2x96xf32>
    %174 = arith.addf %171, %173 : vector<2x2x96xf32>
    %cst_173 = arith.constant 3.000000e+00 : f32
    %175 = vector.broadcast %cst_173 : f32 to vector<2x2x96xf32>
    %176 = arith.addf %174, %175 : vector<2x2x96xf32>
    %cst_174 = arith.constant 0.000000e+00 : f32
    %cst_175 = arith.constant 6.000000e+00 : f32
    %177 = vector.broadcast %cst_174 : f32 to vector<2x2x96xf32>
    %178 = arith.maximumf %177, %176 : vector<2x2x96xf32>
    %179 = vector.broadcast %cst_175 : f32 to vector<2x2x96xf32>
    %180 = arith.minimumf %179, %178 : vector<2x2x96xf32>
    %181 = arith.mulf %174, %180 : vector<2x2x96xf32>
    %cst_176 = arith.constant 0.166666672 : f32
    %182 = vector.broadcast %cst_176 : f32 to vector<2x2x96xf32>
    %183 = arith.mulf %181, %182 : vector<2x2x96xf32>
    %184 = vector.shape_cast %183 : vector<2x2x96xf32> to vector<4x96xf32>
    %cst_177 = arith.constant dense<0.000000e+00> : vector<96xf32>
    %185 = vector.multi_reduction <add>, %184, %cst_177 [0] : vector<4x96xf32> to vector<96xf32>
    %186 = vector.shape_cast %185 : vector<96xf32> to vector<1x96xf32>
    %cst_178 = arith.constant 4.000000e+00 : f32
    %187 = vector.broadcast %cst_178 : f32 to vector<1x96xf32>
    %188 = arith.divf %186, %187 : vector<1x96xf32>
    %c0_179 = arith.constant 0 : index
    %c0_180 = arith.constant 0 : index
    %189 = vector.load %arg6[%c0_179, %c0_180] : memref<96x24xf32, #tpu.memory_space<vmem>>, vector<96x24xf32>
    %cst_181 = arith.constant dense<0.000000e+00> : vector<1x24xf32>
    %190 = tpu.matmul %188, %189, %cst_181 {dimension_numbers = #tpu.dot_dimension_numbers<[1], [0], [0], [1], [0, 0, 1, 1], [], []>} : vector<1x96xf32>, vector<96x24xf32>, vector<1x24xf32> -> vector<1x24xf32>
    %c0_182 = arith.constant 0 : index
    %c0_183 = arith.constant 0 : index
    %191 = vector.load %arg7[%c0_182, %c0_183] : memref<1x24xf32, #tpu.memory_space<vmem>>, vector<1x24xf32>
    %192 = arith.addf %190, %191 : vector<1x24xf32>
    %cst_184 = arith.constant 0.000000e+00 : f32
    %193 = vector.broadcast %cst_184 : f32 to vector<1x24xf32>
    %194 = arith.maximumf %192, %193 : vector<1x24xf32>
    %c0_185 = arith.constant 0 : index
    %c0_186 = arith.constant 0 : index
    %195 = vector.load %arg8[%c0_185, %c0_186] : memref<24x96xf32, #tpu.memory_space<vmem>>, vector<24x96xf32>
    %cst_187 = arith.constant dense<0.000000e+00> : vector<1x96xf32>
    %196 = tpu.matmul %194, %195, %cst_187 {dimension_numbers = #tpu.dot_dimension_numbers<[1], [0], [0], [1], [0, 0, 1, 1], [], []>} : vector<1x24xf32>, vector<24x96xf32>, vector<1x96xf32> -> vector<1x96xf32>
    %c0_188 = arith.constant 0 : index
    %c0_189 = arith.constant 0 : index
    %197 = vector.load %arg9[%c0_188, %c0_189] : memref<1x96xf32, #tpu.memory_space<vmem>>, vector<1x96xf32>
    %198 = arith.addf %196, %197 : vector<1x96xf32>
    %cst_190 = arith.constant 3.000000e+00 : f32
    %199 = vector.broadcast %cst_190 : f32 to vector<1x96xf32>
    %200 = arith.addf %198, %199 : vector<1x96xf32>
    %cst_191 = arith.constant 0.000000e+00 : f32
    %cst_192 = arith.constant 6.000000e+00 : f32
    %201 = vector.broadcast %cst_191 : f32 to vector<1x96xf32>
    %202 = arith.maximumf %201, %200 : vector<1x96xf32>
    %203 = vector.broadcast %cst_192 : f32 to vector<1x96xf32>
    %204 = arith.minimumf %203, %202 : vector<1x96xf32>
    %cst_193 = arith.constant 0.166666672 : f32
    %205 = vector.broadcast %cst_193 : f32 to vector<1x96xf32>
    %206 = arith.mulf %204, %205 : vector<1x96xf32>
    %207 = vector.shape_cast %206 : vector<1x96xf32> to vector<1x1x96xf32>
    %208 = vector.broadcast %207 : vector<1x1x96xf32> to vector<2x2x96xf32>
    %209 = arith.mulf %183, %208 : vector<2x2x96xf32>
    %210 = vector.shape_cast %209 : vector<2x2x96xf32> to vector<4x96xf32>
    %211 = arith.truncf %210 : vector<4x96xf32> to vector<4x96xbf16>
    %c0_194 = arith.constant 0 : index
    %c0_195 = arith.constant 0 : index
    %212 = vector.load %arg10[%c0_194, %c0_195] : memref<96x40xbf16, #tpu.memory_space<vmem>>, vector<96x40xbf16>
    %cst_196 = arith.constant dense<0.000000e+00> : vector<4x40xf32>
    %213 = tpu.matmul %211, %212, %cst_196 {dimension_numbers = #tpu.dot_dimension_numbers<[1], [0], [0], [1], [0, 0, 1, 1], [], []>} : vector<4x96xbf16>, vector<96x40xbf16>, vector<4x40xf32> -> vector<4x40xf32>
    %c0_197 = arith.constant 0 : index
    %c0_198 = arith.constant 0 : index
    %214 = vector.load %arg11[%c0_197, %c0_198] : memref<1x40xf32, #tpu.memory_space<vmem>>, vector<1x40xf32>
    %215 = vector.broadcast %214 : vector<1x40xf32> to vector<4x40xf32>
    %216 = arith.addf %213, %215 : vector<4x40xf32>
    %217 = vector.shape_cast %216 : vector<4x40xf32> to vector<2x2x40xf32>
    %218 = arith.truncf %217 : vector<2x2x40xf32> to vector<2x2x40xbf16>
    %c0_199 = arith.constant 0 : index
    %c0_200 = arith.constant 0 : index
    %c0_201 = arith.constant 0 : index
    %c0_202 = arith.constant 0 : index
    %219 = vector.load %arg12[%c0_199, %c0_200, %c0_201, %c0_202] : memref<1x2x2x40xbf16, #tpu.memory_space<vmem>>, vector<1x2x2x40xbf16>
    %220 = vector.shape_cast %219 : vector<1x2x2x40xbf16> to vector<2x2x40xbf16>
    %221 = vector.shape_cast %218 : vector<2x2x40xbf16> to vector<1x2x2x40xbf16>
    tpu.vector_store %arg12[%c0_199, %c0_200, %c0_201, %c0_202], %221 {strides = array<i32>} : memref<1x2x2x40xbf16, #tpu.memory_space<vmem>>, vector<1x2x2x40xbf16>,
    return
  }
  func.func @transform_0(%arg0: i32) -> (i32, i32, i32, i32) {
    %c0_i32 = arith.constant 0 : i32
    %c0_i32_0 = arith.constant 0 : i32
    %c0_i32_1 = arith.constant 0 : i32
    %c0_i32_2 = arith.constant 0 : i32
    return %arg0, %c0_i32, %c0_i32_0, %c0_i32_1 : i32, i32, i32, i32
  }
  func.func @transform_1(%arg0: i32) -> (i32, i32) {
    %c0_i32 = arith.constant 0 : i32
    %c0_i32_0 = arith.constant 0 : i32
    %c0_i32_1 = arith.constant 0 : i32
    return %c0_i32, %c0_i32_0 : i32, i32
  }
  func.func @transform_2(%arg0: i32) -> (i32, i32) {
    %c0_i32 = arith.constant 0 : i32
    %c0_i32_0 = arith.constant 0 : i32
    %c0_i32_1 = arith.constant 0 : i32
    return %c0_i32, %c0_i32_0 : i32, i32
  }
  func.func @transform_3(%arg0: i32) -> (i32, i32, i32, i32) {
    %c0_i32 = arith.constant 0 : i32
    %c0_i32_0 = arith.constant 0 : i32
    %c0_i32_1 = arith.constant 0 : i32
    %c0_i32_2 = arith.constant 0 : i32
    %c0_i32_3 = arith.constant 0 : i32
    return %c0_i32, %c0_i32_0, %c0_i32_1, %c0_i32_2 : i32, i32, i32, i32
  }
  func.func @transform_4(%arg0: i32) -> (i32, i32, i32) {
    %c0_i32 = arith.constant 0 : i32
    %c0_i32_0 = arith.constant 0 : i32
    %c0_i32_1 = arith.constant 0 : i32
    %c0_i32_2 = arith.constant 0 : i32
    return %c0_i32, %c0_i32_0, %c0_i32_1 : i32, i32, i32
  }
  func.func @transform_5(%arg0: i32) -> (i32, i32) {
    %c0_i32 = arith.constant 0 : i32
    %c0_i32_0 = arith.constant 0 : i32
    %c0_i32_1 = arith.constant 0 : i32
    return %c0_i32, %c0_i32_0 : i32, i32
  }
  func.func @transform_6(%arg0: i32) -> (i32, i32) {
    %c0_i32 = arith.constant 0 : i32
    %c0_i32_0 = arith.constant 0 : i32
    %c0_i32_1 = arith.constant 0 : i32
    return %c0_i32, %c0_i32_0 : i32, i32
  }
  func.func @transform_7(%arg0: i32) -> (i32, i32) {
    %c0_i32 = arith.constant 0 : i32
    %c0_i32_0 = arith.constant 0 : i32
    %c0_i32_1 = arith.constant 0 : i32
    return %c0_i32, %c0_i32_0 : i32, i32
  }
  func.func @transform_8(%arg0: i32) -> (i32, i32) {
    %c0_i32 = arith.constant 0 : i32
    %c0_i32_0 = arith.constant 0 : i32
    %c0_i32_1 = arith.constant 0 : i32
    return %c0_i32, %c0_i32_0 : i32, i32
  }
  func.func @transform_9(%arg0: i32) -> (i32, i32) {
    %c0_i32 = arith.constant 0 : i32
    %c0_i32_0 = arith.constant 0 : i32
    %c0_i32_1 = arith.constant 0 : i32
    return %c0_i32, %c0_i32_0 : i32, i32
  }
  func.func @transform_10(%arg0: i32) -> (i32, i32) {
    %c0_i32 = arith.constant 0 : i32
    %c0_i32_0 = arith.constant 0 : i32
    %c0_i32_1 = arith.constant 0 : i32
    return %c0_i32, %c0_i32_0 : i32, i32
  }
  func.func @transform_11(%arg0: i32) -> (i32, i32, i32, i32) {
    %c0_i32 = arith.constant 0 : i32
    %c0_i32_0 = arith.constant 0 : i32
    %c0_i32_1 = arith.constant 0 : i32
    %c0_i32_2 = arith.constant 0 : i32
    return %arg0, %c0_i32, %c0_i32_0, %c0_i32_1 : i32, i32, i32, i32
  }
}

module attributes {stable_mosaic.version = 11 : i64} {
  func.func @_head_kernel(%arg0: i32, %arg1: memref<2x2x2x240xbf16, #tpu.memory_space<vmem>>, %arg2: memref<240x64xf32, #tpu.memory_space<vmem>>, %arg3: memref<1x64xf32, #tpu.memory_space<vmem>>, %arg4: memref<64x1xf32, #tpu.memory_space<vmem>>, %arg5: memref<1x1xf32, #tpu.memory_space<vmem>>, %arg6: memref<2x1xf32, #tpu.memory_space<vmem>>) attributes {dimension_semantics = [#tpu.dimension_semantics<arbitrary>], iteration_bounds = array<i64: 1>, scalar_prefetch = 0 : i64, scratch_operands = 0 : i64, tpu.core_type = #tpu.core_type<tc>, window_params = [{pipeline_mode = #tpu.pipeline_mode<synchronous>, transform_indices = @transform_0, window_bounds = array<i64: 2, 2, 2, 240>}, {pipeline_mode = #tpu.pipeline_mode<synchronous>, transform_indices = @transform_1, window_bounds = array<i64: 240, 64>}, {pipeline_mode = #tpu.pipeline_mode<synchronous>, transform_indices = @transform_2, window_bounds = array<i64: 1, 64>}, {pipeline_mode = #tpu.pipeline_mode<synchronous>, transform_indices = @transform_3, window_bounds = array<i64: 64, 1>}, {pipeline_mode = #tpu.pipeline_mode<synchronous>, transform_indices = @transform_4, window_bounds = array<i64: 1, 1>}, {pipeline_mode = #tpu.pipeline_mode<synchronous>, transform_indices = @transform_5, window_bounds = array<i64: 2, 1>}]} {
    %c0 = arith.constant 0 : index
    %c0_0 = arith.constant 0 : index
    %c0_1 = arith.constant 0 : index
    %c0_2 = arith.constant 0 : index
    %0 = vector.load %arg1[%c0, %c0_0, %c0_1, %c0_2] : memref<2x2x2x240xbf16, #tpu.memory_space<vmem>>, vector<2x2x2x240xbf16>
    %1 = arith.extf %0 : vector<2x2x2x240xbf16> to vector<2x2x2x240xf32>
    %2 = vector.shape_cast %1 : vector<2x2x2x240xf32> to vector<2x4x240xf32>
    %cst = arith.constant dense<0.000000e+00> : vector<2x240xf32>
    %3 = vector.multi_reduction <add>, %2, %cst [1] : vector<2x4x240xf32> to vector<2x240xf32>
    %cst_3 = arith.constant 4.000000e+00 : f32
    %4 = vector.broadcast %cst_3 : f32 to vector<2x240xf32>
    %5 = arith.divf %3, %4 : vector<2x240xf32>
    %c0_4 = arith.constant 0 : index
    %c0_5 = arith.constant 0 : index
    %6 = vector.load %arg2[%c0_4, %c0_5] : memref<240x64xf32, #tpu.memory_space<vmem>>, vector<240x64xf32>
    %cst_6 = arith.constant dense<0.000000e+00> : vector<2x64xf32>
    %7 = tpu.matmul %5, %6, %cst_6 {dimension_numbers = #tpu.dot_dimension_numbers<[1], [0], [0], [1], [0, 0, 1, 1], [], []>} : vector<2x240xf32>, vector<240x64xf32>, vector<2x64xf32> -> vector<2x64xf32>
    %c0_7 = arith.constant 0 : index
    %c0_8 = arith.constant 0 : index
    %8 = vector.load %arg3[%c0_7, %c0_8] : memref<1x64xf32, #tpu.memory_space<vmem>>, vector<1x64xf32>
    %9 = vector.broadcast %8 : vector<1x64xf32> to vector<2x64xf32>
    %10 = arith.addf %7, %9 : vector<2x64xf32>
    %cst_9 = arith.constant 3.000000e+00 : f32
    %11 = vector.broadcast %cst_9 : f32 to vector<2x64xf32>
    %12 = arith.addf %10, %11 : vector<2x64xf32>
    %cst_10 = arith.constant 0.000000e+00 : f32
    %cst_11 = arith.constant 6.000000e+00 : f32
    %13 = vector.broadcast %cst_10 : f32 to vector<2x64xf32>
    %14 = arith.maximumf %13, %12 : vector<2x64xf32>
    %15 = vector.broadcast %cst_11 : f32 to vector<2x64xf32>
    %16 = arith.minimumf %15, %14 : vector<2x64xf32>
    %17 = arith.mulf %10, %16 : vector<2x64xf32>
    %cst_12 = arith.constant 0.166666672 : f32
    %18 = vector.broadcast %cst_12 : f32 to vector<2x64xf32>
    %19 = arith.mulf %17, %18 : vector<2x64xf32>
    %c0_13 = arith.constant 0 : index
    %c0_14 = arith.constant 0 : index
    %20 = vector.load %arg4[%c0_13, %c0_14] : memref<64x1xf32, #tpu.memory_space<vmem>>, vector<64x1xf32>
    %cst_15 = arith.constant dense<0.000000e+00> : vector<2x1xf32>
    %21 = tpu.matmul %19, %20, %cst_15 {dimension_numbers = #tpu.dot_dimension_numbers<[1], [0], [0], [1], [0, 0, 1, 1], [], []>} : vector<2x64xf32>, vector<64x1xf32>, vector<2x1xf32> -> vector<2x1xf32>
    %c0_16 = arith.constant 0 : index
    %c0_17 = arith.constant 0 : index
    %22 = vector.load %arg5[%c0_16, %c0_17] : memref<1x1xf32, #tpu.memory_space<vmem>>, vector<1x1xf32>
    %23 = vector.broadcast %22 : vector<1x1xf32> to vector<2x1xf32>
    %24 = arith.addf %21, %23 : vector<2x1xf32>
    %c0_18 = arith.constant 0 : index
    %c0_19 = arith.constant 0 : index
    %25 = vector.load %arg6[%c0_18, %c0_19] : memref<2x1xf32, #tpu.memory_space<vmem>>, vector<2x1xf32>
    tpu.vector_store %arg6[%c0_18, %c0_19], %24 {strides = array<i32>} : memref<2x1xf32, #tpu.memory_space<vmem>>, vector<2x1xf32>,
    return
  }
  func.func @transform_0(%arg0: i32) -> (i32, i32, i32, i32) {
    %c0_i32 = arith.constant 0 : i32
    %c0_i32_0 = arith.constant 0 : i32
    %c0_i32_1 = arith.constant 0 : i32
    %c0_i32_2 = arith.constant 0 : i32
    %c0_i32_3 = arith.constant 0 : i32
    return %c0_i32, %c0_i32_0, %c0_i32_1, %c0_i32_2 : i32, i32, i32, i32
  }
  func.func @transform_1(%arg0: i32) -> (i32, i32) {
    %c0_i32 = arith.constant 0 : i32
    %c0_i32_0 = arith.constant 0 : i32
    %c0_i32_1 = arith.constant 0 : i32
    return %c0_i32, %c0_i32_0 : i32, i32
  }
  func.func @transform_2(%arg0: i32) -> (i32, i32) {
    %c0_i32 = arith.constant 0 : i32
    %c0_i32_0 = arith.constant 0 : i32
    %c0_i32_1 = arith.constant 0 : i32
    return %c0_i32, %c0_i32_0 : i32, i32
  }
  func.func @transform_3(%arg0: i32) -> (i32, i32) {
    %c0_i32 = arith.constant 0 : i32
    %c0_i32_0 = arith.constant 0 : i32
    %c0_i32_1 = arith.constant 0 : i32
    return %c0_i32, %c0_i32_0 : i32, i32
  }
  func.func @transform_4(%arg0: i32) -> (i32, i32) {
    %c0_i32 = arith.constant 0 : i32
    %c0_i32_0 = arith.constant 0 : i32
    %c0_i32_1 = arith.constant 0 : i32
    return %c0_i32, %c0_i32_0 : i32, i32
  }
  func.func @transform_5(%arg0: i32) -> (i32, i32) {
    %c0_i32 = arith.constant 0 : i32
    %c0_i32_0 = arith.constant 0 : i32
    %c0_i32_1 = arith.constant 0 : i32
    return %c0_i32, %c0_i32_0 : i32, i32
  }
}

</mosaic_0001>

<llo_original>
// kernel: _lambda_.7
$region0: #{_lambda_.7}
  #allocation0 [shape = 'u32[]', space=smem, size = 0x4, offset = 0x4, fixed_abs, tag = 'smem constant byte address 0x4 - core index']
  #allocation1 [shape = 'u32[144,128]{1,0:T(1,128)}', space=vmem, size = 0x12000, scoped, tag = 'internal scratch']
  %s0 = inlined_call_operand.vmem [shape: bf16[128,27], index: 0, kind: input, shape index: {}]
  %s1 = inlined_call_operand.vmem [shape: bf16[27,16], index: 1, kind: input, shape index: {}]
  %s2 = inlined_call_operand.vmem [shape: f32[1,16], index: 2, kind: input, shape index: {}]
  %s3 = inlined_call_operand.vmem [shape: bf16[128,16], index: 3, kind: output, shape index: {}]
  %s4 = sld [smem:[#allocation0]]
  $region45: #{_lambda_.7} parent=0
    _
  %s6 = ssub.s32 1, %s4
  %s7 = scalar_select 0, %s6, %s4
  loop: start=0, step=1, limit=4
  $region2: #{_lambda_.7} parent=0 // loop_pre_header
    _
  $region3: #{_lambda_.7} parent=0 // loop_header
    %s9 = sphi 0, %s13
    %p10 = scmp.ge.s32.totalorder %s9, 4
    %s19 = sphi 0, %s21
    %s22 = sphi 0, %s19
    %s23 = sphi 0, %s22
    %s39 = sphi 0, %s23
    %s43 = sphi 0, %s43
    %s45 = sphi 0, %s43
    %s46 = sphi 0, %s45
    %s60 = sphi 0, %s46
    %s64 = sphi 0, %s64
    %s66 = sphi 0, %s64
    %s67 = sphi 0, %s66
    %s81 = sphi 0, %s67
    %s87 = sphi 0, %s89
    %s90 = sphi 0, %s87
    %s91 = sphi 0, %s90
    %s107 = sphi 0, %s91
  $region4: #{_lambda_.7} parent=0 // loop_header_branch
    %12 = sbr.rel (%p10) target = $region8
  $region5: #{_lambda_.7} parent=0 // loop_body
    %s14 = ssub.s32 %s9, 1
    %s15 = ssub.s32 %s9, 2
    %s16 = sadd.s32 %s9, 1
    %s17 = ssub.s32 %s9, %s16
    %p18 = scmp.eq.s32.totalorder %s17, 0
    %s20 = sadd.s32 %s19, 1
    %s21 = scalar_select %p18, %s19, %s20
    %p24 = pneg %p18
    %p25 = scmp.eq.s32.totalorder %s9, 1
    %p26 = por %p24, %p25
    %p27 = scmp.ne.s32.totalorder %s19, %s22
    %p28 = scmp.eq.s32.totalorder %s9, 0
    %p29 = por %p27, %p28
    %p30 = scmp.ne.s32.totalorder %s19, %s22
    %p31 = scmp.eq.s32.totalorder %s14, 1
    %p32 = por %p30, %p31
    %p33 = scmp.ne.s32.totalorder %s22, %s23
    %p34 = scmp.eq.s32.totalorder %s14, 0
    %p35 = por %p33, %p34
    %p36 = scmp.ne.s32.totalorder %s22, %s23
    %p37 = scmp.eq.s32.totalorder %s15, 1
    %p38 = por %p36, %p37
    %p40 = scmp.ne.s32.totalorder %s23, %s39
    %p41 = scmp.eq.s32.totalorder %s15, 0
    %p42 = por %p40, %p41
    %s44 = sadd.s32 %s43, 1
    %p47 = scmp.eq.s32.totalorder %s9, 1
    %p48 = scmp.ne.s32.totalorder %s43, %s45
    %p49 = scmp.eq.s32.totalorder %s9, 0
    %p50 = por %p48, %p49
    %p51 = scmp.ne.s32.totalorder %s43, %s45
    %p52 = scmp.eq.s32.totalorder %s14, 1
    %p53 = por %p51, %p52
    %p54 = scmp.ne.s32.totalorder %s45, %s46
    %p55 = scmp.eq.s32.totalorder %s14, 0
    %p56 = por %p54, %p55
    %p57 = scmp.ne.s32.totalorder %s45, %s46
    %p58 = scmp.eq.s32.totalorder %s15, 1
    %p59 = por %p57, %p58
    %p61 = scmp.ne.s32.totalorder %s46, %s60
    %p62 = scmp.eq.s32.totalorder %s15, 0
    %p63 = por %p61, %p62
    %s65 = sadd.s32 %s64, 1
    %p68 = scmp.eq.s32.totalorder %s9, 1
    %p69 = scmp.ne.s32.totalorder %s64, %s66
    %p70 = scmp.eq.s32.totalorder %s9, 0
    %p71 = por %p69, %p70
    %p72 = scmp.ne.s32.totalorder %s64, %s66
    %p73 = scmp.eq.s32.totalorder %s14, 1
    %p74 = por %p72, %p73
    %p75 = scmp.ne.s32.totalorder %s66, %s67
    %p76 = scmp.eq.s32.totalorder %s14, 0
    %p77 = por %p75, %p76
    %p78 = scmp.ne.s32.totalorder %s66, %s67
    %p79 = scmp.eq.s32.totalorder %s15, 1
    %p80 = por %p78, %p79
    %p82 = scmp.ne.s32.totalorder %s67, %s81
    %p83 = scmp.eq.s32.totalorder %s15, 0
    %p84 = por %p82, %p83
    %s85 = ssub.s32 %s9, %s16
    %p86 = scmp.eq.s32.totalorder %s85, 0
    %s88 = sadd.s32 %s87, 1
    %s89 = scalar_select %p86, %s87, %s88
    %p92 = pneg %p86
    %p93 = scmp.eq.s32.totalorder %s9, 1
    %p94 = por %p92, %p93
    %p95 = scmp.ne.s32.totalorder %s87, %s90
    %p96 = scmp.eq.s32.totalorder %s9, 0
    %p97 = por %p95, %p96
    %p98 = scmp.ne.s32.totalorder %s87, %s90
    %p99 = scmp.eq.s32.totalorder %s14, 1
    %p100 = por %p98, %p99
    %p101 = scmp.ne.s32.totalorder %s90, %s91
    %p102 = scmp.eq.s32.totalorder %s14, 0
    %p103 = por %p101, %p102
    %p104 = scmp.ne.s32.totalorder %s90, %s91
    %p105 = scmp.eq.s32.totalorder %s15, 1
    %p106 = por %p104, %p105
    %p108 = scmp.ne.s32.totalorder %s91, %s107
    %p109 = scmp.eq.s32.totalorder %s15, 0
    %p110 = por %p108, %p109
    %p111 = scmp.le.s32.totalorder 1, %s9
    %p112 = scmp.lt.s32.totalorder %s9, 3
    %p113 = pnand %p111, %p112
    %p114 = pneg %p113
    // Predicated region
    $region9: #{_lambda_.7} parent=5 // pred_check
      _
    $region10: #{_lambda_.7} parent=5 // pred_check_branch
      %116 = sbr.rel (%p113) target = $region12
    $region11: #{_lambda_.7} parent=5 // pred_region
      %s117 = ssub.s32 %s9, 1
      // Predicated region
      $region13: #{_lambda_.7} parent=11 // pred_check
        %p118 = pneg %p56
      $region14: #{_lambda_.7} parent=11 // pred_check_branch
        %120 = sbr.rel (%p118) target = $region16
      $region15: #{_lambda_.7} parent=11 // pred_region
        _
      $region16: #{_lambda_.7} parent=11 // pred_fallthru
        _
      // Predicated region
      $region17: #{_lambda_.7} parent=11 // pred_check
        %p121 = pneg %p77
      $region18: #{_lambda_.7} parent=11 // pred_check_branch
        %123 = sbr.rel (%p121) target = $region20
      $region19: #{_lambda_.7} parent=11 // pred_region
        _
      $region20: #{_lambda_.7} parent=11 // pred_fallthru
        _
    $region12: #{_lambda_.7} parent=5 // pred_fallthru
      _
    %p124 = scmp.lt.s32.totalorder %s9, 2
    // Predicated region
    $region21: #{_lambda_.7} parent=5 // pred_check
      %p125 = pneg %p124
    $region22: #{_lambda_.7} parent=5 // pred_check_branch
      %127 = sbr.rel (%p125) target = $region24
    $region23: #{_lambda_.7} parent=5 // pred_region
      // Predicated region
      $region25: #{_lambda_.7} parent=23 // pred_check
        %p128 = pneg %p29
      $region26: #{_lambda_.7} parent=23 // pred_check_branch
        %130 = sbr.rel (%p128) target = $region28
      $region27: #{_lambda_.7} parent=23 // pred_region
        %s131 = smul.u32 8, %s9
        %p132 = scmp.lt.s32.totalorder %s131, 15
        %s133 = scalar_select %p132, %s131, 15
        %s134 = smul.addr %s133, 4
        %s135 = scalar_lea.vmem %s0, %s134
        %s136 = smul.u32 8, %s9
      $region28: #{_lambda_.7} parent=23 // pred_fallthru
        _
    $region24: #{_lambda_.7} parent=5 // pred_fallthru
      _
    %p137 = scmp.le.s32.totalorder 1, %s9
    %p138 = scmp.lt.s32.totalorder %s9, 3
    %p139 = pnand %p137, %p138
    %p140 = pneg %p139
    // Predicated region
    $region29: #{_lambda_.7} parent=5 // pred_check
      _
    $region30: #{_lambda_.7} parent=5 // pred_check_branch
      %142 = sbr.rel (%p139) target = $region32
    $region31: #{_lambda_.7} parent=5 // pred_region
      %s143 = ssub.s32 %s9, 1
      %s144 = smul.u32 8, %s14
      %p145 = scmp.lt.s32.totalorder %s144, 15
      %s146 = scalar_select %p145, %s144, 15
      %s147 = smul.addr %s146, 4
      %s148 = scalar_lea.vmem %s0, %s147
      %p149 = pneg %p35
      %p150 = pneg %p32
      %p151 = pneg %p56
      %p152 = pneg %p53
      %p153 = pneg %p77
      %p154 = pneg %p74
      %p155 = pneg %p103
      %p156 = pneg %p100
      %s157 = smul.u32 8, %s14
      %p158 = scmp.lt.s32.totalorder %s157, 15
      %s159 = scalar_select %p158, %s157, 15
      %s160 = smul.addr %s159, 4
      %s161 = scalar_lea.vmem %s3, %s160
      %s162 = smul.u32 8, %s14
      %p163 = scmp.lt.s32.totalorder %s162, 15
      %s164 = scalar_select %p163, %s162, 15
      %s165 = smul.addr %s164, 4
      %s166 = scalar_lea.vmem %s0, %s165
      %s167 = smul.u32 8, %s14
      %s168 = smul.u32 8, %s14
      %p169 = scmp.lt.s32.totalorder %s168, 15
      %s170 = scalar_select %p169, %s168, 15
      %s171 = smul.addr %s170, 4
      %s172 = scalar_lea.vmem %s3, %s171
      %s173 = smul.u32 8, %s14
      %v175 = vld [vmem:[%s166] sm:$0xf]
      %v176 = vld [vmem:[%s166 + $0x4] sm:$0xf]
      %v177 = vld [vmem:[%s166 + $0x8] sm:$0xf]
      %v178 = vld [vmem:[%s166 + $0xc] sm:$0xf]
      %v179 = vld [vmem:[%s166 + $0x10] sm:$0xf]
      %v180 = vld [vmem:[%s166 + $0x14] sm:$0xf]
      %v181 = vld [vmem:[%s166 + $0x18] sm:$0xf]
      %v182 = vld [vmem:[%s166 + $0x1c] sm:$0xf]
      %v183 = vld [vmem:[%s1] sm:$0xf]
      %v184 = vld [vmem:[%s1 + $0x4] sm:$0xf]
      %v185 = vld [vmem:[%s1 + $0x8] sm:$0xf]
      %v186 = vld [vmem:[%s1 + $0xc] sm:$0x3]
      %v187 = vld [vmem:[%s2] sm:$0x1]
      %v189 = vlaneseq
      %v190 = vshrl.u32 %v189, 7
      %v191 = vsub.s32 0, %v190
      %v192 = vrot.slane %v187, %v191
      %v202 = vunpack.c.l.b16 %v175
      %v203 = vunpack.c.l.b16 %v176
      %v204 = vunpack.c.l.b16 %v177
      %v205 = vunpack.c.l.b16 %v178
      %v206 = vunpack.c.l.b16 %v179
      %v207 = vunpack.c.l.b16 %v180
      %v208 = vunpack.c.l.b16 %v181
      %v209 = vunpack.c.l.b16 %v182
      %v210 = vpack.c.b16 %v203, %v202
      %v211 = vpack.c.b16 %v205, %v204
      %v212 = vpack.c.b16 %v207, %v206
      %v213 = vpack.c.b16 %v209, %v208
      %v218 = vunpack.c.l.b16 %v183
      %v219 = vunpack.c.l.b16 %v184
      %v220 = vunpack.c.l.b16 %v185
      %v221 = vunpack.c.l.b16 %v186
      %v222 = vpack.c.b16 %v219, %v218
      %v223 = vpack.c.b16 %v221, %v220
      %vm225 = vcmask 220160
      %v227 = vsel %vm225, %v210, 0
      %v230 = vsel %vm225, %v211, 0
      %v233 = vsel %vm225, %v212, 0
      %v236 = vsel %vm225, %v213, 0
      %vm238 = vcmask 1044480
      %vm239 = vcmask 1045504
      %v240 = vsel %vm238, 4294967295, 65535
      %v241 = vsel %vm239, %v240, 0
      %v243 = vand.u32 %v223, %v241
      %245 = vmatprep.subr.bf16.mxu0 0
      %246 = vmatpush1.bf16.msra.mxu0 %v222
      %247 = vmatprep.subr.bf16.mxu0 0
      %248 = vmatpush1.bf16.msra.mxu0 %v243
      %249 = vmatprep.subr.bf16.mxu0 0
      %250 = vmatpush1.bf16.msra.mxu0 0
      %251 = vmatprep.subr.bf16.mxu0 0
      %252 = vmatpush1.bf16.msra.mxu0 0
      %253 = vmatprep.subr.bf16.mxu0 0
      %254 = vmatpush1.bf16.msra.mxu0 0
      %255 = vmatprep.subr.bf16.mxu0 0
      %256 = vmatpush1.bf16.msra.mxu0 0
      %257 = vmatprep.subr.bf16.mxu0 0
      %258 = vmatpush1.bf16.msra.mxu0 0
      %259 = vmatprep.subr.bf16.mxu0 0
      %260 = vmatpush1.bf16.msra.mxu0 0
      %261 = vmatprep.subr.bf16.mxu0 0
      %262 = vmatpush1.bf16.msra.mxu0 0
      %263 = vmatprep.subr.bf16.mxu0 0
      %264 = vmatpush1.bf16.msra.mxu0 0
      %265 = vmatprep.subr.bf16.mxu0 0
      %266 = vmatpush1.bf16.msra.mxu0 0
      %267 = vmatprep.subr.bf16.mxu0 0
      %268 = vmatpush1.bf16.msra.mxu0 0
      %269 = vmatprep.subr.bf16.mxu0 0
      %270 = vmatpush1.bf16.msra.mxu0 0
      %271 = vmatprep.subr.bf16.mxu0 0
      %272 = vmatpush1.bf16.msra.mxu0 0
      %273 = vmatprep.subr.bf16.mxu0 0
      %274 = vmatpush1.bf16.msra.mxu0 0
      %275 = vmatprep.subr.bf16.mxu0 0
      %276 = vmatpush1.bf16.msra.mxu0 0
      %277 = vmatprep.mubr.bf16.mxu0 0
      %278 = vmatmul.mubr.bf16.gmra.mrb[0].mxu0 %v227
      %v279 = vpop.f32.mrb[0].mxu0
      %v280 = vadd.f32 %v192, %v279
      %v281 = vpop.f32.mrb[0].mxu0
      %v282 = vpop.f32.mrb[0].mxu0
      %v283 = vadd.f32 %v192, %v282
      %v284 = vpop.f32.mrb[0].mxu0
      %285 = vmatprep.mubr.bf16.mxu0 0
      %286 = vmatmul.mubr.bf16.gmra.mrb[0].mxu0 %v230
      %v287 = vpop.f32.mrb[0].mxu0
      %v288 = vadd.f32 %v192, %v287
      %v289 = vpop.f32.mrb[0].mxu0
      %v290 = vpop.f32.mrb[0].mxu0
      %v291 = vadd.f32 %v192, %v290
      %v292 = vpop.f32.mrb[0].mxu0
      %293 = vmatprep.mubr.bf16.mxu0 0
      %294 = vmatmul.mubr.bf16.gmra.mrb[0].mxu0 %v233
      %v295 = vpop.f32.mrb[0].mxu0
      %v296 = vadd.f32 %v192, %v295
      %v297 = vpop.f32.mrb[0].mxu0
      %v298 = vpop.f32.mrb[0].mxu0
      %v299 = vadd.f32 %v192, %v298
      %v300 = vpop.f32.mrb[0].mxu0
      %301 = vmatprep.mubr.bf16.mxu0 0
      %302 = vmatmul.mubr.bf16.gmra.mrb[0].mxu0 %v236
      %v303 = vpop.f32.mrb[0].mxu0
      %v304 = vadd.f32 %v192, %v303
      %v305 = vpop.f32.mrb[0].mxu0
      %v306 = vpop.f32.mrb[0].mxu0
      %v307 = vadd.f32 %v192, %v306
      %v308 = vpop.f32.mrb[0].mxu0
      %309 = vdwg.mxu0
      %v310 = vadd.f32 %v280, 3.0
      %v311 = vadd.f32 %v283, 3.0
      %v312 = vadd.f32 %v288, 3.0
      %v313 = vadd.f32 %v291, 3.0
      %v314 = vadd.f32 %v296, 3.0
      %v315 = vadd.f32 %v299, 3.0
      %v316 = vadd.f32 %v304, 3.0
      %v317 = vadd.f32 %v307, 3.0
      %v318 = vmax.f32 %v310, 0.0
      %v319 = vmax.f32 %v311, 0.0
      %v320 = vmax.f32 %v312, 0.0
      %v321 = vmax.f32 %v313, 0.0
      %v322 = vmax.f32 %v314, 0.0
      %v323 = vmax.f32 %v315, 0.0
      %v324 = vmax.f32 %v316, 0.0
      %v325 = vmax.f32 %v317, 0.0
      %v326 = vmin.f32 %v318, 6.0
      %v327 = vmin.f32 %v319, 6.0
      %v328 = vmin.f32 %v320, 6.0
      %v329 = vmin.f32 %v321, 6.0
      %v330 = vmin.f32 %v322, 6.0
      %v331 = vmin.f32 %v323, 6.0
      %v332 = vmin.f32 %v324, 6.0
      %v333 = vmin.f32 %v325, 6.0
      %v334 = vmul.f32 %v280, %v326
      %v335 = vmul.f32 %v283, %v327
      %v336 = vmul.f32 %v288, %v328
      %v337 = vmul.f32 %v291, %v329
      %v338 = vmul.f32 %v296, %v330
      %v339 = vmul.f32 %v299, %v331
      %v340 = vmul.f32 %v304, %v332
      %v341 = vmul.f32 %v307, %v333
      %v342 = vmul.f32 %v334, 0.16666667
      %v343 = vmul.f32 %v335, 0.16666667
      %v344 = vmul.f32 %v336, 0.16666667
      %v345 = vmul.f32 %v337, 0.16666667
      %v346 = vmul.f32 %v338, 0.16666667
      %v347 = vmul.f32 %v339, 0.16666667
      %v348 = vmul.f32 %v340, 0.16666667
      %v349 = vmul.f32 %v341, 0.16666667
      %v350 = vpack.c.bf16 %v343, %v342
      %v351 = vpack.c.bf16 %v345, %v344
      %v352 = vpack.c.bf16 %v347, %v346
      %v353 = vpack.c.bf16 %v349, %v348
      %v358 = vunpack.c.l.b16 %v350
      %v359 = vunpack.c.h.b16 %v350
      %v360 = vunpack.c.l.b16 %v351
      %v361 = vunpack.c.h.b16 %v351
      %v362 = vunpack.c.l.b16 %v352
      %v363 = vunpack.c.h.b16 %v352
      %v364 = vunpack.c.l.b16 %v353
      %v365 = vunpack.c.h.b16 %v353
      %v366 = vpack.c.b16 %v358, %v358
      %v367 = vpack.c.b16 %v359, %v359
      %v368 = vpack.c.b16 %v360, %v360
      %v369 = vpack.c.b16 %v361, %v361
      %v370 = vpack.c.b16 %v362, %v362
      %v371 = vpack.c.b16 %v363, %v363
      %v372 = vpack.c.b16 %v364, %v364
      %v373 = vpack.c.b16 %v365, %v365
      %vm382 = vcmask 125952
      %383 = vst.msk [vmem:[%s172] sm:$0xf] %vm382, %v366
      %384 = vst.msk [vmem:[%s172 + $0x4] sm:$0xf] %vm382, %v367
      %385 = vst.msk [vmem:[%s172 + $0x8] sm:$0xf] %vm382, %v368
      %386 = vst.msk [vmem:[%s172 + $0xc] sm:$0xf] %vm382, %v369
      %387 = vst.msk [vmem:[%s172 + $0x10] sm:$0xf] %vm382, %v370
      %388 = vst.msk [vmem:[%s172 + $0x14] sm:$0xf] %vm382, %v371
      %389 = vst.msk [vmem:[%s172 + $0x18] sm:$0xf] %vm382, %v372
      %390 = vst.msk [vmem:[%s172 + $0x1c] sm:$0xf] %vm382, %v373
      %s391 = smul.u32 8, %s14
      %p392 = scmp.lt.s32.totalorder %s391, 15
      %s393 = scalar_select %p392, %s391, 15
      %s394 = smul.addr %s393, 4
      %s395 = scalar_lea.vmem %s3, %s394
      // Predicated region
      $region33: #{_lambda_.7} parent=31 // pred_check
        %p396 = pneg %p100
      $region34: #{_lambda_.7} parent=31 // pred_check_branch
        %398 = sbr.rel (%p396) target = $region36
      $region35: #{_lambda_.7} parent=31 // pred_region
        %s399 = smul.u32 8, %s14
      $region36: #{_lambda_.7} parent=31 // pred_fallthru
        _
    $region32: #{_lambda_.7} parent=5 // pred_fallthru
      _
    %p400 = scmp.le.s32.totalorder 2, %s9
    // Predicated region
    $region37: #{_lambda_.7} parent=5 // pred_check
      %p401 = pneg %p400
    $region38: #{_lambda_.7} parent=5 // pred_check_branch
      %403 = sbr.rel (%p401) target = $region40
    $region39: #{_lambda_.7} parent=5 // pred_region
      %s404 = ssub.s32 %s9, 2
      // Predicated region
      $region41: #{_lambda_.7} parent=39 // pred_check
        %p405 = pneg %p106
      $region42: #{_lambda_.7} parent=39 // pred_check_branch
        %407 = sbr.rel (%p405) target = $region44
      $region43: #{_lambda_.7} parent=39 // pred_region
        %s408 = smul.u32 8, %s15
        %p409 = scmp.lt.s32.totalorder %s408, 15
        %s410 = scalar_select %p409, %s408, 15
        %s411 = smul.addr %s410, 4
        %s412 = scalar_lea.vmem %s3, %s411
      $region44: #{_lambda_.7} parent=39 // pred_fallthru
        _
    $region40: #{_lambda_.7} parent=5 // pred_fallthru
      _
  $region6: #{_lambda_.7} parent=0 // loop_footer
    %s13 = sadd.s32 1, %s9
  $region7: #{_lambda_.7} parent=0 // loop_footer_branch
    %8 = sbr.rel target = $region3
  $region8: #{_lambda_.7} parent=0 // loop_exit
    _

// kernel: _lambda_.8
$region0: #{_lambda_.8}
  #allocation0 [shape = 'u32[]', space=smem, size = 0x4, offset = 0x4, fixed_abs, tag = 'smem constant byte address 0x4 - core index']
  #allocation1 [shape = 'u32[144,128]{1,0:T(1,128)}', space=vmem, size = 0x12000, scoped, tag = 'internal scratch']
  #allocation2 [shape = 'f32[10,10,16]{2,1,0:T(8,128)}', space=vmem, size = 0x14000, scoped, tag = 'scratch operand']
  %s0 = inlined_call_operand.vmem [shape: bf16[2,8,8,16], index: 0, kind: input, shape index: {}]
  %s1 = inlined_call_operand.vmem [shape: f32[9,1,1,16], index: 1, kind: input, shape index: {}]
  %s2 = inlined_call_operand.vmem [shape: f32[1,1,16], index: 2, kind: input, shape index: {}]
  %s3 = inlined_call_operand.vmem [shape: f32[16,8], index: 3, kind: input, shape index: {}]
  %s4 = inlined_call_operand.vmem [shape: f32[1,8], index: 4, kind: input, shape index: {}]
  %s5 = inlined_call_operand.vmem [shape: f32[8,16], index: 5, kind: input, shape index: {}]
  %s6 = inlined_call_operand.vmem [shape: f32[1,16], index: 6, kind: input, shape index: {}]
  %s7 = inlined_call_operand.vmem [shape: bf16[16,16], index: 7, kind: input, shape index: {}]
  %s8 = inlined_call_operand.vmem [shape: f32[1,16], index: 8, kind: input, shape index: {}]
  %s9 = inlined_call_operand.vmem [shape: bf16[2,4,4,16], index: 9, kind: output, shape index: {}]
  %s10 = sld [smem:[#allocation0]]
  $region69: #{_lambda_.8} parent=0
    _
  %s12 = ssub.s32 1, %s10
  %s13 = scalar_select 0, %s12, %s10
  loop: start=0, step=1, limit=4
  $region2: #{_lambda_.8} parent=0 // loop_pre_header
    _
  $region3: #{_lambda_.8} parent=0 // loop_header
    %s15 = sphi 0, %s19
    %p16 = scmp.ge.s32.totalorder %s15, 4
    %s25 = sphi 0, %s27
    %s28 = sphi 0, %s25
    %s29 = sphi 0, %s28
    %s45 = sphi 0, %s29
    %s49 = sphi 0, %s49
    %s51 = sphi 0, %s49
    %s52 = sphi 0, %s51
    %s66 = sphi 0, %s52
    %s70 = sphi 0, %s70
    %s72 = sphi 0, %s70
    %s73 = sphi 0, %s72
    %s87 = sphi 0, %s73
    %s91 = sphi 0, %s91
    %s93 = sphi 0, %s91
    %s94 = sphi 0, %s93
    %s108 = sphi 0, %s94
    %s112 = sphi 0, %s112
    %s114 = sphi 0, %s112
    %s115 = sphi 0, %s114
    %s129 = sphi 0, %s115
    %s133 = sphi 0, %s133
    %s135 = sphi 0, %s133
    %s136 = sphi 0, %s135
    %s150 = sphi 0, %s136
    %s154 = sphi 0, %s154
    %s156 = sphi 0, %s154
    %s157 = sphi 0, %s156
    %s171 = sphi 0, %s157
    %s175 = sphi 0, %s175
    %s177 = sphi 0, %s175
    %s178 = sphi 0, %s177
    %s192 = sphi 0, %s178
    %s196 = sphi 0, %s196
    %s198 = sphi 0, %s196
    %s199 = sphi 0, %s198
    %s213 = sphi 0, %s199
    %s219 = sphi 0, %s221
    %s222 = sphi 0, %s219
    %s223 = sphi 0, %s222
    %s239 = sphi 0, %s223
  $region4: #{_lambda_.8} parent=0 // loop_header_branch
    %18 = sbr.rel (%p16) target = $region8
  $region5: #{_lambda_.8} parent=0 // loop_body
    %s20 = ssub.s32 %s15, 1
    %s21 = ssub.s32 %s15, 2
    %s22 = sadd.s32 %s15, 1
    %s23 = ssub.s32 %s15, %s22
    %p24 = scmp.eq.s32.totalorder %s23, 0
    %s26 = sadd.s32 %s25, 1
    %s27 = scalar_select %p24, %s25, %s26
    %p30 = pneg %p24
    %p31 = scmp.eq.s32.totalorder %s15, 1
    %p32 = por %p30, %p31
    %p33 = scmp.ne.s32.totalorder %s25, %s28
    %p34 = scmp.eq.s32.totalorder %s15, 0
    %p35 = por %p33, %p34
    %p36 = scmp.ne.s32.totalorder %s25, %s28
    %p37 = scmp.eq.s32.totalorder %s20, 1
    %p38 = por %p36, %p37
    %p39 = scmp.ne.s32.totalorder %s28, %s29
    %p40 = scmp.eq.s32.totalorder %s20, 0
    %p41 = por %p39, %p40
    %p42 = scmp.ne.s32.totalorder %s28, %s29
    %p43 = scmp.eq.s32.totalorder %s21, 1
    %p44 = por %p42, %p43
    %p46 = scmp.ne.s32.totalorder %s29, %s45
    %p47 = scmp.eq.s32.totalorder %s21, 0
    %p48 = por %p46, %p47
    %s50 = sadd.s32 %s49, 1
    %p53 = scmp.eq.s32.totalorder %s15, 1
    %p54 = scmp.ne.s32.totalorder %s49, %s51
    %p55 = scmp.eq.s32.totalorder %s15, 0
    %p56 = por %p54, %p55
    %p57 = scmp.ne.s32.totalorder %s49, %s51
    %p58 = scmp.eq.s32.totalorder %s20, 1
    %p59 = por %p57, %p58
    %p60 = scmp.ne.s32.totalorder %s51, %s52
    %p61 = scmp.eq.s32.totalorder %s20, 0
    %p62 = por %p60, %p61
    %p63 = scmp.ne.s32.totalorder %s51, %s52
    %p64 = scmp.eq.s32.totalorder %s21, 1
    %p65 = por %p63, %p64
    %p67 = scmp.ne.s32.totalorder %s52, %s66
    %p68 = scmp.eq.s32.totalorder %s21, 0
    %p69 = por %p67, %p68
    %s71 = sadd.s32 %s70, 1
    %p74 = scmp.eq.s32.totalorder %s15, 1
    %p75 = scmp.ne.s32.totalorder %s70, %s72
    %p76 = scmp.eq.s32.totalorder %s15, 0
    %p77 = por %p75, %p76
    %p78 = scmp.ne.s32.totalorder %s70, %s72
    %p79 = scmp.eq.s32.totalorder %s20, 1
    %p80 = por %p78, %p79
    %p81 = scmp.ne.s32.totalorder %s72, %s73
    %p82 = scmp.eq.s32.totalorder %s20, 0
    %p83 = por %p81, %p82
    %p84 = scmp.ne.s32.totalorder %s72, %s73
    %p85 = scmp.eq.s32.totalorder %s21, 1
    %p86 = por %p84, %p85
    %p88 = scmp.ne.s32.totalorder %s73, %s87
    %p89 = scmp.eq.s32.totalorder %s21, 0
    %p90 = por %p88, %p89
    %s92 = sadd.s32 %s91, 1
    %p95 = scmp.eq.s32.totalorder %s15, 1
    %p96 = scmp.ne.s32.totalorder %s91, %s93
    %p97 = scmp.eq.s32.totalorder %s15, 0
    %p98 = por %p96, %p97
    %p99 = scmp.ne.s32.totalorder %s91, %s93
    %p100 = scmp.eq.s32.totalorder %s20, 1
    %p101 = por %p99, %p100
    %p102 = scmp.ne.s32.totalorder %s93, %s94
    %p103 = scmp.eq.s32.totalorder %s20, 0
    %p104 = por %p102, %p103
    %p105 = scmp.ne.s32.totalorder %s93, %s94
    %p106 = scmp.eq.s32.totalorder %s21, 1
    %p107 = por %p105, %p106
    %p109 = scmp.ne.s32.totalorder %s94, %s108
    %p110 = scmp.eq.s32.totalorder %s21, 0
    %p111 = por %p109, %p110
    %s113 = sadd.s32 %s112, 1
    %p116 = scmp.eq.s32.totalorder %s15, 1
    %p117 = scmp.ne.s32.totalorder %s112, %s114
    %p118 = scmp.eq.s32.totalorder %s15, 0
    %p119 = por %p117, %p118
    %p120 = scmp.ne.s32.totalorder %s112, %s114
    %p121 = scmp.eq.s32.totalorder %s20, 1
    %p122 = por %p120, %p121
    %p123 = scmp.ne.s32.totalorder %s114, %s115
    %p124 = scmp.eq.s32.totalorder %s20, 0
    %p125 = por %p123, %p124
    %p126 = scmp.ne.s32.totalorder %s114, %s115
    %p127 = scmp.eq.s32.totalorder %s21, 1
    %p128 = por %p126, %p127
    %p130 = scmp.ne.s32.totalorder %s115, %s129
    %p131 = scmp.eq.s32.totalorder %s21, 0
    %p132 = por %p130, %p131
    %s134 = sadd.s32 %s133, 1
    %p137 = scmp.eq.s32.totalorder %s15, 1
    %p138 = scmp.ne.s32.totalorder %s133, %s135
    %p139 = scmp.eq.s32.totalorder %s15, 0
    %p140 = por %p138, %p139
    %p141 = scmp.ne.s32.totalorder %s133, %s135
    %p142 = scmp.eq.s32.totalorder %s20, 1
    %p143 = por %p141, %p142
    %p144 = scmp.ne.s32.totalorder %s135, %s136
    %p145 = scmp.eq.s32.totalorder %s20, 0
    %p146 = por %p144, %p145
    %p147 = scmp.ne.s32.totalorder %s135, %s136
    %p148 = scmp.eq.s32.totalorder %s21, 1
    %p149 = por %p147, %p148
    %p151 = scmp.ne.s32.totalorder %s136, %s150
    %p152 = scmp.eq.s32.totalorder %s21, 0
    %p153 = por %p151, %p152
    %s155 = sadd.s32 %s154, 1
    %p158 = scmp.eq.s32.totalorder %s15, 1
    %p159 = scmp.ne.s32.totalorder %s154, %s156
    %p160 = scmp.eq.s32.totalorder %s15, 0
    %p161 = por %p159, %p160
    %p162 = scmp.ne.s32.totalorder %s154, %s156
    %p163 = scmp.eq.s32.totalorder %s20, 1
    %p164 = por %p162, %p163
    %p165 = scmp.ne.s32.totalorder %s156, %s157
    %p166 = scmp.eq.s32.totalorder %s20, 0
    %p167 = por %p165, %p166
    %p168 = scmp.ne.s32.totalorder %s156, %s157
    %p169 = scmp.eq.s32.totalorder %s21, 1
    %p170 = por %p168, %p169
    %p172 = scmp.ne.s32.totalorder %s157, %s171
    %p173 = scmp.eq.s32.totalorder %s21, 0
    %p174 = por %p172, %p173
    %s176 = sadd.s32 %s175, 1
    %p179 = scmp.eq.s32.totalorder %s15, 1
    %p180 = scmp.ne.s32.totalorder %s175, %s177
    %p181 = scmp.eq.s32.totalorder %s15, 0
    %p182 = por %p180, %p181
    %p183 = scmp.ne.s32.totalorder %s175, %s177
    %p184 = scmp.eq.s32.totalorder %s20, 1
    %p185 = por %p183, %p184
    %p186 = scmp.ne.s32.totalorder %s177, %s178
    %p187 = scmp.eq.s32.totalorder %s20, 0
    %p188 = por %p186, %p187
    %p189 = scmp.ne.s32.totalorder %s177, %s178
    %p190 = scmp.eq.s32.totalorder %s21, 1
    %p191 = por %p189, %p190
    %p193 = scmp.ne.s32.totalorder %s178, %s192
    %p194 = scmp.eq.s32.totalorder %s21, 0
    %p195 = por %p193, %p194
    %s197 = sadd.s32 %s196, 1
    %p200 = scmp.eq.s32.totalorder %s15, 1
    %p201 = scmp.ne.s32.totalorder %s196, %s198
    %p202 = scmp.eq.s32.totalorder %s15, 0
    %p203 = por %p201, %p202
    %p204 = scmp.ne.s32.totalorder %s196, %s198
    %p205 = scmp.eq.s32.totalorder %s20, 1
    %p206 = por %p204, %p205
    %p207 = scmp.ne.s32.totalorder %s198, %s199
    %p208 = scmp.eq.s32.totalorder %s20, 0
    %p209 = por %p207, %p208
    %p210 = scmp.ne.s32.totalorder %s198, %s199
    %p211 = scmp.eq.s32.totalorder %s21, 1
    %p212 = por %p210, %p211
    %p214 = scmp.ne.s32.totalorder %s199, %s213
    %p215 = scmp.eq.s32.totalorder %s21, 0
    %p216 = por %p214, %p215
    %s217 = ssub.s32 %s15, %s22
    %p218 = scmp.eq.s32.totalorder %s217, 0
    %s220 = sadd.s32 %s219, 1
    %s221 = scalar_select %p218, %s219, %s220
    %p224 = pneg %p218
    %p225 = scmp.eq.s32.totalorder %s15, 1
    %p226 = por %p224, %p225
    %p227 = scmp.ne.s32.totalorder %s219, %s222
    %p228 = scmp.eq.s32.totalorder %s15, 0
    %p229 = por %p227, %p228
    %p230 = scmp.ne.s32.totalorder %s219, %s222
    %p231 = scmp.eq.s32.totalorder %s20, 1
    %p232 = por %p230, %p231
    %p233 = scmp.ne.s32.totalorder %s222, %s223
    %p234 = scmp.eq.s32.totalorder %s20, 0
    %p235 = por %p233, %p234
    %p236 = scmp.ne.s32.totalorder %s222, %s223
    %p237 = scmp.eq.s32.totalorder %s21, 1
    %p238 = por %p236, %p237
    %p240 = scmp.ne.s32.totalorder %s223, %s239
    %p241 = scmp.eq.s32.totalorder %s21, 0
    %p242 = por %p240, %p241
    %p243 = scmp.le.s32.totalorder 1, %s15
    %p244 = scmp.lt.s32.totalorder %s15, 3
    %p245 = pnand %p243, %p244
    %p246 = pneg %p245
    // Predicated region
    $region9: #{_lambda_.8} parent=5 // pred_check
      _
    $region10: #{_lambda_.8} parent=5 // pred_check_branch
      %248 = sbr.rel (%p245) target = $region12
    $region11: #{_lambda_.8} parent=5 // pred_region
      %s249 = ssub.s32 %s15, 1
      // Predicated region
      $region13: #{_lambda_.8} parent=11 // pred_check
        %p250 = pneg %p62
      $region14: #{_lambda_.8} parent=11 // pred_check_branch
        %252 = sbr.rel (%p250) target = $region16
      $region15: #{_lambda_.8} parent=11 // pred_region
        _
      $region16: #{_lambda_.8} parent=11 // pred_fallthru
        _
      // Predicated region
      $region17: #{_lambda_.8} parent=11 // pred_check
        %p253 = pneg %p83
      $region18: #{_lambda_.8} parent=11 // pred_check_branch
        %255 = sbr.rel (%p253) target = $region20
      $region19: #{_lambda_.8} parent=11 // pred_region
        _
      $region20: #{_lambda_.8} parent=11 // pred_fallthru
        _
      // Predicated region
      $region21: #{_lambda_.8} parent=11 // pred_check
        %p256 = pneg %p104
      $region22: #{_lambda_.8} parent=11 // pred_check_branch
        %258 = sbr.rel (%p256) target = $region24
      $region23: #{_lambda_.8} parent=11 // pred_region
        _
      $region24: #{_lambda_.8} parent=11 // pred_fallthru
        _
      // Predicated region
      $region25: #{_lambda_.8} parent=11 // pred_check
        %p259 = pneg %p125
      $region26: #{_lambda_.8} parent=11 // pred_check_branch
        %261 = sbr.rel (%p259) target = $region28
      $region27: #{_lambda_.8} parent=11 // pred_region
        _
      $region28: #{_lambda_.8} parent=11 // pred_fallthru
        _
      // Predicated region
      $region29: #{_lambda_.8} parent=11 // pred_check
        %p262 = pneg %p146
      $region30: #{_lambda_.8} parent=11 // pred_check_branch
        %264 = sbr.rel (%p262) target = $region32
      $region31: #{_lambda_.8} parent=11 // pred_region
        _
      $region32: #{_lambda_.8} parent=11 // pred_fallthru
        _
      // Predicated region
      $region33: #{_lambda_.8} parent=11 // pred_check
        %p265 = pneg %p167
      $region34: #{_lambda_.8} parent=11 // pred_check_branch
        %267 = sbr.rel (%p265) target = $region36
      $region35: #{_lambda_.8} parent=11 // pred_region
        _
      $region36: #{_lambda_.8} parent=11 // pred_fallthru
        _
      // Predicated region
      $region37: #{_lambda_.8} parent=11 // pred_check
        %p268 = pneg %p188
      $region38: #{_lambda_.8} parent=11 // pred_check_branch
        %270 = sbr.rel (%p268) target = $region40
      $region39: #{_lambda_.8} parent=11 // pred_region
        _
      $region40: #{_lambda_.8} parent=11 // pred_fallthru
        _
      // Predicated region
      $region41: #{_lambda_.8} parent=11 // pred_check
        %p271 = pneg %p209
      $region42: #{_lambda_.8} parent=11 // pred_check_branch
        %273 = sbr.rel (%p271) target = $region44
      $region43: #{_lambda_.8} parent=11 // pred_region
        _
      $region44: #{_lambda_.8} parent=11 // pred_fallthru
        _
    $region12: #{_lambda_.8} parent=5 // pred_fallthru
      _
    %p274 = scmp.lt.s32.totalorder %s15, 2
    // Predicated region
    $region45: #{_lambda_.8} parent=5 // pred_check
      %p275 = pneg %p274
    $region46: #{_lambda_.8} parent=5 // pred_check_branch
      %277 = sbr.rel (%p275) target = $region48
    $region47: #{_lambda_.8} parent=5 // pred_region
      // Predicated region
      $region49: #{_lambda_.8} parent=47 // pred_check
        %p278 = pneg %p35
      $region50: #{_lambda_.8} parent=47 // pred_check_branch
        %280 = sbr.rel (%p278) target = $region52
      $region51: #{_lambda_.8} parent=47 // pred_region
        %p281 = scmp.lt.s32.totalorder %s15, 1
        %s282 = scalar_select %p281, %s15, 1
        %s283 = smul.addr %s282, 8
        %s284 = smul.addr %s283, 4
        %s285 = scalar_lea.vmem %s0, %s284
      $region52: #{_lambda_.8} parent=47 // pred_fallthru
        _
    $region48: #{_lambda_.8} parent=5 // pred_fallthru
      _
    %p286 = scmp.le.s32.totalorder 1, %s15
    %p287 = scmp.lt.s32.totalorder %s15, 3
    %p288 = pnand %p286, %p287
    %p289 = pneg %p288
    // Predicated region
    $region53: #{_lambda_.8} parent=5 // pred_check
      _
    $region54: #{_lambda_.8} parent=5 // pred_check_branch
      %291 = sbr.rel (%p288) target = $region56
    $region55: #{_lambda_.8} parent=5 // pred_region
      %s292 = ssub.s32 %s15, 1
      %p293 = scmp.lt.s32.totalorder %s20, 1
      %s294 = scalar_select %p293, %s20, 1
      %s295 = smul.addr %s294, 8
      %s296 = smul.addr %s295, 4
      %s297 = scalar_lea.vmem %s0, %s296
      %p298 = pneg %p41
      %p299 = pneg %p38
      %p300 = pneg %p62
      %p301 = pneg %p59
      %p302 = pneg %p83
      %p303 = pneg %p80
      %p304 = pneg %p104
      %p305 = pneg %p101
      %p306 = pneg %p125
      %p307 = pneg %p122
      %p308 = pneg %p146
      %p309 = pneg %p143
      %p310 = pneg %p167
      %p311 = pneg %p164
      %p312 = pneg %p188
      %p313 = pneg %p185
      %p314 = pneg %p209
      %p315 = pneg %p206
      %p316 = pneg %p235
      %p317 = pneg %p232
      %p318 = scmp.lt.s32.totalorder %s20, 1
      %s319 = scalar_select %p318, %s20, 1
      %s320 = smul.addr %s319, 4
      %s321 = smul.addr %s320, 2
      %s322 = scalar_lea.vmem %s9, %s321
      %p323 = scmp.lt.s32.totalorder %s20, 1
      %s324 = scalar_select %p323, %s20, 1
      %s325 = smul.addr %s324, 8
      %s326 = smul.addr %s325, 4
      %s327 = scalar_lea.vmem %s0, %s326
      %p328 = scmp.lt.s32.totalorder %s20, 1
      %s329 = scalar_select %p328, %s20, 1
      %s330 = smul.addr %s329, 4
      %s331 = smul.addr %s330, 2
      %s332 = scalar_lea.vmem %s9, %s331
      %v334 = vld [vmem:[%s327] sm:$0xf]
      %v335 = vld [vmem:[%s327 + $0x4] sm:$0xf]
      %v336 = vld [vmem:[%s327 + $0x8] sm:$0xf]
      %v337 = vld [vmem:[%s327 + $0xc] sm:$0xf]
      %v338 = vld [vmem:[%s327 + $0x10] sm:$0xf]
      %v339 = vld [vmem:[%s327 + $0x14] sm:$0xf]
      %v340 = vld [vmem:[%s327 + $0x18] sm:$0xf]
      %v341 = vld [vmem:[%s327 + $0x1c] sm:$0xf]
      %v342 = vunpack.c.l.bf16 %v334
      %v343 = vunpack.c.l.bf16 %v335
      %v344 = vunpack.c.l.bf16 %v336
      %v345 = vunpack.c.l.bf16 %v337
      %v346 = vunpack.c.l.bf16 %v338
      %v347 = vunpack.c.l.bf16 %v339
      %v348 = vunpack.c.l.bf16 %v340
      %v349 = vunpack.c.l.bf16 %v341
      %vm350 = vcmask 130048
      %351 = vst.msk [vmem:[#allocation2] sm:$0xff] %vm350, 0.0
      %vm352 = vcmask 123904
      %353 = vst.msk [vmem:[#allocation2 + $0x8] sm:$0x3] %vm352, 0.0
      %354 = vst.msk [vmem:[#allocation2 + $0x10] sm:$0xff] %vm350, 0.0
      %355 = vst.msk [vmem:[#allocation2 + $0x18] sm:$0x3] %vm352, 0.0
      %356 = vst.msk [vmem:[#allocation2 + $0x20] sm:$0xff] %vm350, 0.0
      %357 = vst.msk [vmem:[#allocation2 + $0x28] sm:$0x3] %vm352, 0.0
      %358 = vst.msk [vmem:[#allocation2 + $0x30] sm:$0xff] %vm350, 0.0
      %359 = vst.msk [vmem:[#allocation2 + $0x38] sm:$0x3] %vm352, 0.0
      %360 = vst.msk [vmem:[#allocation2 + $0x40] sm:$0xff] %vm350, 0.0
      %361 = vst.msk [vmem:[#allocation2 + $0x48] sm:$0x3] %vm352, 0.0
      %362 = vst.msk [vmem:[#allocation2 + $0x50] sm:$0xff] %vm350, 0.0
      %363 = vst.msk [vmem:[#allocation2 + $0x58] sm:$0x3] %vm352, 0.0
      %364 = vst.msk [vmem:[#allocation2 + $0x60] sm:$0xff] %vm350, 0.0
      %365 = vst.msk [vmem:[#allocation2 + $0x68] sm:$0x3] %vm352, 0.0
      %366 = vst.msk [vmem:[#allocation2 + $0x70] sm:$0xff] %vm350, 0.0
      %367 = vst.msk [vmem:[#allocation2 + $0x78] sm:$0x3] %vm352, 0.0
      %368 = vst.msk [vmem:[#allocation2 + $0x80] sm:$0xff] %vm350, 0.0
      %369 = vst.msk [vmem:[#allocation2 + $0x88] sm:$0x3] %vm352, 0.0
      %370 = vst.msk [vmem:[#allocation2 + $0x90] sm:$0xff] %vm350, 0.0
      %371 = vst.msk [vmem:[#allocation2 + $0x98] sm:$0x3] %vm352, 0.0
      %s372 = scalar_lea.vmem [#allocation2], 16
      %373 = vst.msk [vmem:[%s372 + $0x1] sm:$0xff] %vm350, %v342
      %374 = vst.msk [vmem:[%s372 + $0x11] sm:$0xff] %vm350, %v343
      %375 = vst.msk [vmem:[%s372 + $0x21] sm:$0xff] %vm350, %v344
      %376 = vst.msk [vmem:[%s372 + $0x31] sm:$0xff] %vm350, %v345
      %377 = vst.msk [vmem:[%s372 + $0x41] sm:$0xff] %vm350, %v346
      %378 = vst.msk [vmem:[%s372 + $0x51] sm:$0xff] %vm350, %v347
      %379 = vst.msk [vmem:[%s372 + $0x61] sm:$0xff] %vm350, %v348
      %380 = vst.msk [vmem:[%s372 + $0x71] sm:$0xff] %vm350, %v349
      %v381 = vld [vmem:[#allocation2] sm:$0xff]
      %v382 = vld [vmem:[#allocation2 + $0x20] sm:$0xff]
      %v383 = vld [vmem:[#allocation2 + $0x40] sm:$0xff]
      %v384 = vld [vmem:[#allocation2 + $0x60] sm:$0xff]
      %v385 = vld [vmem:[%s1] sm:$0x1]
      %v387 = vlaneseq
      %v388 = vshrl.u32 %v387, 7
      %v389 = vsub.s32 0, %v388
      %v390 = vrot.slane %v385, %v389
      %v392 = vmul.f32 %v381, %v390
      %v393 = vmul.f32 %v382, %v390
      %v394 = vmul.f32 %v383, %v390
      %v395 = vmul.f32 %v384, %v390
      %v396 = vadd.f32 %v392, 0.0
      %v397 = vadd.f32 %v393, 0.0
      %v398 = vadd.f32 %v394, 0.0
      %v399 = vadd.f32 %v395, 0.0
      %v400 = vld [vmem:[#allocation2 + $0x1] sm:$0xff]
      %v401 = vld [vmem:[#allocation2 + $0x21] sm:$0xff]
      %v402 = vld [vmem:[#allocation2 + $0x41] sm:$0xff]
      %v403 = vld [vmem:[#allocation2 + $0x61] sm:$0xff]
      %s404 = scalar_lea.vmem %s1, 1
      %v405 = vld [vmem:[%s404] sm:$0x1]
      %v407 = vlaneseq
      %v408 = vshrl.u32 %v407, 7
      %v409 = vsub.s32 0, %v408
      %v410 = vrot.slane %v405, %v409
      %v412 = vmul.f32 %v400, %v410
      %v413 = vmul.f32 %v401, %v410
      %v414 = vmul.f32 %v402, %v410
      %v415 = vmul.f32 %v403, %v410
      %v416 = vadd.f32 %v396, %v412
      %v417 = vadd.f32 %v397, %v413
      %v418 = vadd.f32 %v398, %v414
      %v419 = vadd.f32 %v399, %v415
      %v420 = vld [vmem:[#allocation2 + $0x2] sm:$0xff]
      %v421 = vld [vmem:[#allocation2 + $0x22] sm:$0xff]
      %v422 = vld [vmem:[#allocation2 + $0x42] sm:$0xff]
      %v423 = vld [vmem:[#allocation2 + $0x62] sm:$0xff]
      %s424 = scalar_lea.vmem %s1, 2
      %v425 = vld [vmem:[%s424] sm:$0x1]
      %v427 = vlaneseq
      %v428 = vshrl.u32 %v427, 7
      %v429 = vsub.s32 0, %v428
      %v430 = vrot.slane %v425, %v429
      %v432 = vmul.f32 %v420, %v430
      %v433 = vmul.f32 %v421, %v430
      %v434 = vmul.f32 %v422, %v430
      %v435 = vmul.f32 %v423, %v430
      %v436 = vadd.f32 %v416, %v432
      %v437 = vadd.f32 %v417, %v433
      %v438 = vadd.f32 %v418, %v434
      %v439 = vadd.f32 %v419, %v435
      %v440 = vld [vmem:[%s372] sm:$0xff]
      %v441 = vld [vmem:[%s372 + $0x20] sm:$0xff]
      %v442 = vld [vmem:[%s372 + $0x40] sm:$0xff]
      %v443 = vld [vmem:[%s372 + $0x60] sm:$0xff]
      %s444 = scalar_lea.vmem %s1, 3
      %v445 = vld [vmem:[%s444] sm:$0x1]
      %v447 = vlaneseq
      %v448 = vshrl.u32 %v447, 7
      %v449 = vsub.s32 0, %v448
      %v450 = vrot.slane %v445, %v449
      %v452 = vmul.f32 %v440, %v450
      %v453 = vmul.f32 %v441, %v450
      %v454 = vmul.f32 %v442, %v450
      %v455 = vmul.f32 %v443, %v450
      %v456 = vadd.f32 %v436, %v452
      %v457 = vadd.f32 %v437, %v453
      %v458 = vadd.f32 %v438, %v454
      %v459 = vadd.f32 %v439, %v455
      %v460 = vld [vmem:[%s372 + $0x1] sm:$0xff]
      %v461 = vld [vmem:[%s372 + $0x21] sm:$0xff]
      %v462 = vld [vmem:[%s372 + $0x41] sm:$0xff]
      %v463 = vld [vmem:[%s372 + $0x61] sm:$0xff]
      %s464 = scalar_lea.vmem %s1, 4
      %v465 = vld [vmem:[%s464] sm:$0x1]
      %v467 = vlaneseq
      %v468 = vshrl.u32 %v467, 7
      %v469 = vsub.s32 0, %v468
      %v470 = vrot.slane %v465, %v469
      %v472 = vmul.f32 %v460, %v470
      %v473 = vmul.f32 %v461, %v470
      %v474 = vmul.f32 %v462, %v470
      %v475 = vmul.f32 %v463, %v470
      %v476 = vadd.f32 %v456, %v472
      %v477 = vadd.f32 %v457, %v473
      %v478 = vadd.f32 %v458, %v474
      %v479 = vadd.f32 %v459, %v475
      %v480 = vld [vmem:[%s372 + $0x2] sm:$0xff]
      %v481 = vld [vmem:[%s372 + $0x22] sm:$0xff]
      %v482 = vld [vmem:[%s372 + $0x42] sm:$0xff]
      %v483 = vld [vmem:[%s372 + $0x62] sm:$0xff]
      %s484 = scalar_lea.vmem %s1, 5
      %v485 = vld [vmem:[%s484] sm:$0x1]
      %v487 = vlaneseq
      %v488 = vshrl.u32 %v487, 7
      %v489 = vsub.s32 0, %v488
      %v490 = vrot.slane %v485, %v489
      %v492 = vmul.f32 %v480, %v490
      %v493 = vmul.f32 %v481, %v490
      %v494 = vmul.f32 %v482, %v490
      %v495 = vmul.f32 %v483, %v490
      %v496 = vadd.f32 %v476, %v492
      %v497 = vadd.f32 %v477, %v493
      %v498 = vadd.f32 %v478, %v494
      %v499 = vadd.f32 %v479, %v495
      %s500 = scalar_lea.vmem [#allocation2], 32
      %v501 = vld [vmem:[%s500] sm:$0xff]
      %v502 = vld [vmem:[%s500 + $0x20] sm:$0xff]
      %v503 = vld [vmem:[%s500 + $0x40] sm:$0xff]
      %v504 = vld [vmem:[%s500 + $0x60] sm:$0xff]
      %s505 = scalar_lea.vmem %s1, 6
      %v506 = vld [vmem:[%s505] sm:$0x1]
      %v508 = vlaneseq
      %v509 = vshrl.u32 %v508, 7
      %v510 = vsub.s32 0, %v509
      %v511 = vrot.slane %v506, %v510
      %v513 = vmul.f32 %v501, %v511
      %v514 = vmul.f32 %v502, %v511
      %v515 = vmul.f32 %v503, %v511
      %v516 = vmul.f32 %v504, %v511
      %v517 = vadd.f32 %v496, %v513
      %v518 = vadd.f32 %v497, %v514
      %v519 = vadd.f32 %v498, %v515
      %v520 = vadd.f32 %v499, %v516
      %v521 = vld [vmem:[%s500 + $0x1] sm:$0xff]
      %v522 = vld [vmem:[%s500 + $0x21] sm:$0xff]
      %v523 = vld [vmem:[%s500 + $0x41] sm:$0xff]
      %v524 = vld [vmem:[%s500 + $0x61] sm:$0xff]
      %s525 = scalar_lea.vmem %s1, 7
      %v526 = vld [vmem:[%s525] sm:$0x1]
      %v528 = vlaneseq
      %v529 = vshrl.u32 %v528, 7
      %v530 = vsub.s32 0, %v529
      %v531 = vrot.slane %v526, %v530
      %v533 = vmul.f32 %v521, %v531
      %v534 = vmul.f32 %v522, %v531
      %v535 = vmul.f32 %v523, %v531
      %v536 = vmul.f32 %v524, %v531
      %v537 = vadd.f32 %v517, %v533
      %v538 = vadd.f32 %v518, %v534
      %v539 = vadd.f32 %v519, %v535
      %v540 = vadd.f32 %v520, %v536
      %v541 = vld [vmem:[%s500 + $0x2] sm:$0xff]
      %v542 = vld [vmem:[%s500 + $0x22] sm:$0xff]
      %v543 = vld [vmem:[%s500 + $0x42] sm:$0xff]
      %v544 = vld [vmem:[%s500 + $0x62] sm:$0xff]
      %s545 = scalar_lea.vmem %s1, 8
      %v546 = vld [vmem:[%s545] sm:$0x1]
      %v548 = vlaneseq
      %v549 = vshrl.u32 %v548, 7
      %v550 = vsub.s32 0, %v549
      %v551 = vrot.slane %v546, %v550
      %v553 = vmul.f32 %v541, %v551
      %v554 = vmul.f32 %v542, %v551
      %v555 = vmul.f32 %v543, %v551
      %v556 = vmul.f32 %v544, %v551
      %v557 = vadd.f32 %v537, %v553
      %v558 = vadd.f32 %v538, %v554
      %v559 = vadd.f32 %v539, %v555
      %v560 = vadd.f32 %v540, %v556
      %v561 = vld [vmem:[%s2] sm:$0x1]
      %v563 = vlaneseq
      %v564 = vshrl.u32 %v563, 7
      %v565 = vsub.s32 0, %v564
      %v566 = vrot.slane %v561, %v565
      %v568 = vadd.f32 %v557, %v566
      %v569 = vadd.f32 %v558, %v566
      %v570 = vadd.f32 %v559, %v566
      %v571 = vadd.f32 %v560, %v566
      %v572 = vmax.f32 %v568, 0.0
      %v573 = vmax.f32 %v569, 0.0
      %v574 = vmax.f32 %v570, 0.0
      %v575 = vmax.f32 %v571, 0.0
      %v580 = vcombine.high %v572, %v572
      %v582 = vunpack.c.l.s4 1983009808
      %v583 = vunpack.c.0.s8 %v582
      %v584 = vlaneseq
      %v585 = vshrl.u32 %v584, 7
      %v586 = vsub.s32 %v583, %v585
      %v587 = vrot.slane %v572, %v586
      %v589 = vunpack.c.l.s4 1983009808
      %v590 = vunpack.c.0.s8 %v589
      %v591 = vlaneseq
      %v592 = vshrl.u32 %v591, 7
      %v593 = vsub.s32 %v590, %v592
      %v594 = vrot.slane %v580, %v593
      %v595 = vcombine.high %v587, %v587
      %v596 = vcombine.high %v594, %v594
      %v597 = vcombine.high %v573, %v573
      %v599 = vunpack.c.l.s4 1983009808
      %v600 = vunpack.c.0.s8 %v599
      %v601 = vlaneseq
      %v602 = vshrl.u32 %v601, 7
      %v603 = vsub.s32 %v600, %v602
      %v604 = vrot.slane %v573, %v603
      %v606 = vunpack.c.l.s4 1983009808
      %v607 = vunpack.c.0.s8 %v606
      %v608 = vlaneseq
      %v609 = vshrl.u32 %v608, 7
      %v610 = vsub.s32 %v607, %v609
      %v611 = vrot.slane %v597, %v610
      %v612 = vcombine.high %v604, %v604
      %v613 = vcombine.high %v611, %v611
      %v614 = vcombine.high %v574, %v574
      %v616 = vunpack.c.l.s4 1983009808
      %v617 = vunpack.c.0.s8 %v616
      %v618 = vlaneseq
      %v619 = vshrl.u32 %v618, 7
      %v620 = vsub.s32 %v617, %v619
      %v621 = vrot.slane %v574, %v620
      %v623 = vunpack.c.l.s4 1983009808
      %v624 = vunpack.c.0.s8 %v623
      %v625 = vlaneseq
      %v626 = vshrl.u32 %v625, 7
      %v627 = vsub.s32 %v624, %v626
      %v628 = vrot.slane %v614, %v627
      %v629 = vcombine.high %v621, %v621
      %v630 = vcombine.high %v628, %v628
      %v631 = vcombine.high %v575, %v575
      %v633 = vunpack.c.l.s4 1983009808
      %v634 = vunpack.c.0.s8 %v633
      %v635 = vlaneseq
      %v636 = vshrl.u32 %v635, 7
      %v637 = vsub.s32 %v634, %v636
      %v638 = vrot.slane %v575, %v637
      %v640 = vunpack.c.l.s4 1983009808
      %v641 = vunpack.c.0.s8 %v640
      %v642 = vlaneseq
      %v643 = vshrl.u32 %v642, 7
      %v644 = vsub.s32 %v641, %v643
      %v645 = vrot.slane %v631, %v644
      %v646 = vcombine.high %v638, %v638
      %v647 = vcombine.high %v645, %v645
      %v664 = vlaneseq
      %v665 = vshrl.u32 %v664, 7
      %v666 = vsub.s32 0, %v665
      %v667 = vrot.slane %v587, %v666
      %v668 = vlaneseq
      %v669 = vshrl.u32 %v668, 7
      %v670 = vsub.s32 0, %v669
      %v671 = vrot.slane %v595, %v670
      %v672 = vlaneseq
      %v673 = vshrl.u32 %v672, 7
      %v674 = vsub.s32 0, %v673
      %v675 = vrot.slane %v594, %v674
      %v676 = vlaneseq
      %v677 = vshrl.u32 %v676, 7
      %v678 = vsub.s32 0, %v677
      %v679 = vrot.slane %v596, %v678
      %v680 = vlaneseq
      %v681 = vshrl.u32 %v680, 7
      %v682 = vsub.s32 0, %v681
      %v683 = vrot.slane %v604, %v682
      %v684 = vlaneseq
      %v685 = vshrl.u32 %v684, 7
      %v686 = vsub.s32 0, %v685
      %v687 = vrot.slane %v612, %v686
      %v688 = vlaneseq
      %v689 = vshrl.u32 %v688, 7
      %v690 = vsub.s32 0, %v689
      %v691 = vrot.slane %v611, %v690
      %v692 = vlaneseq
      %v693 = vshrl.u32 %v692, 7
      %v694 = vsub.s32 0, %v693
      %v695 = vrot.slane %v613, %v694
      %v696 = vlaneseq
      %v697 = vshrl.u32 %v696, 7
      %v698 = vsub.s32 0, %v697
      %v699 = vrot.slane %v621, %v698
      %v700 = vlaneseq
      %v701 = vshrl.u32 %v700, 7
      %v702 = vsub.s32 0, %v701
      %v703 = vrot.slane %v629, %v702
      %v704 = vlaneseq
      %v705 = vshrl.u32 %v704, 7
      %v706 = vsub.s32 0, %v705
      %v707 = vrot.slane %v628, %v706
      %v708 = vlaneseq
      %v709 = vshrl.u32 %v708, 7
      %v710 = vsub.s32 0, %v709
      %v711 = vrot.slane %v630, %v710
      %v712 = vlaneseq
      %v713 = vshrl.u32 %v712, 7
      %v714 = vsub.s32 0, %v713
      %v715 = vrot.slane %v638, %v714
      %v716 = vlaneseq
      %v717 = vshrl.u32 %v716, 7
      %v718 = vsub.s32 0, %v717
      %v719 = vrot.slane %v646, %v718
      %v720 = vlaneseq
      %v721 = vshrl.u32 %v720, 7
      %v722 = vsub.s32 0, %v721
      %v723 = vrot.slane %v645, %v722
      %v724 = vlaneseq
      %v725 = vshrl.u32 %v724, 7
      %v726 = vsub.s32 0, %v725
      %v727 = vrot.slane %v647, %v726
      %vm728 = vcmask 1041409
      %v729 = vsel %vm728, %v671, %v667
      %vm730 = vcmask 1042434
      %v731 = vsel %vm730, %v675, %v729
      %vm732 = vcmask 1043459
      %v733 = vsel %vm732, %v679, %v731
      %vm734 = vcmask 1044484
      %v735 = vsel %vm734, %v683, %v733
      %vm736 = vcmask 1045509
      %v737 = vsel %vm736, %v687, %v735
      %vm738 = vcmask 1046534
      %v739 = vsel %vm738, %v691, %v737
      %vm740 = vcmask 1047559
      %v741 = vsel %vm740, %v695, %v739
      %v742 = vsel %vm728, %v703, %v699
      %v743 = vsel %vm730, %v707, %v742
      %v744 = vsel %vm732, %v711, %v743
      %v745 = vsel %vm734, %v715, %v744
      %v746 = vsel %vm736, %v719, %v745
      %v747 = vsel %vm738, %v723, %v746
      %v748 = vsel %vm740, %v727, %v747
      %v751 = vsel %vm350, %v741, 0.0
      %v752 = vsel %vm350, %v748, 0.0
      %v753 = vadd.f32 %v751, %v752
      %v754 = vrot.slane %v753, 4
      %v755 = vadd.f32 %v753, %v754
      %v756 = vrot.slane %v755, 2
      %v757 = vadd.f32 %v755, %v756
      %v758 = vrot.slane %v757, 1
      %v759 = vadd.f32 %v757, %v758
      %v760 = vrcp.pop 16.0
      %v761 = vmul.f32 %v759, %v760
      %v762 = vld [vmem:[%s3] sm:$0xff]
      %v763 = vld [vmem:[%s3 + $0x8] sm:$0xff]
      %v764 = vld [vmem:[%s4] sm:$0x1]
      %v766 = vsel %vm350, %v761, 0
      %768 = vmatprep.subr.mxu0 0.0
      %769 = vmatpush1.msra.mxu0 %v762
      %770 = vmatprep.subr.mxu0 0.0
      %771 = vmatpush1.msra.mxu0 %v763
      %772 = vmatprep.subr.mxu0 0.0
      %773 = vmatpush1.msra.mxu0 0.0
      %774 = vmatprep.subr.mxu0 0.0
      %775 = vmatpush1.msra.mxu0 0.0
      %776 = vmatprep.subr.mxu0 0.0
      %777 = vmatpush1.msra.mxu0 0.0
      %778 = vmatprep.subr.mxu0 0.0
      %779 = vmatpush1.msra.mxu0 0.0
      %780 = vmatprep.subr.mxu0 0.0
      %781 = vmatpush1.msra.mxu0 0.0
      %782 = vmatprep.subr.mxu0 0.0
      %783 = vmatpush1.msra.mxu0 0.0
      %784 = vmatprep.subr.mxu0 0.0
      %785 = vmatpush1.msra.mxu0 0.0
      %786 = vmatprep.subr.mxu0 0.0
      %787 = vmatpush1.msra.mxu0 0.0
      %788 = vmatprep.subr.mxu0 0.0
      %789 = vmatpush1.msra.mxu0 0.0
      %790 = vmatprep.subr.mxu0 0.0
      %791 = vmatpush1.msra.mxu0 0.0
      %792 = vmatprep.subr.mxu0 0.0
      %793 = vmatpush1.msra.mxu0 0.0
      %794 = vmatprep.subr.mxu0 0.0
      %795 = vmatpush1.msra.mxu0 0.0
      %796 = vmatprep.subr.mxu0 0.0
      %797 = vmatpush1.msra.mxu0 0.0
      %798 = vmatprep.subr.mxu0 0.0
      %799 = vmatpush1.msra.mxu0 0.0
      %800 = vmatprep.subr.mxu0 0.0
      %801 = vmatpush1.msra.mxu0 0.0
      %802 = vmatprep.subr.mxu0 0.0
      %803 = vmatpush1.msra.mxu0 0.0
      %804 = vmatprep.subr.mxu0 0.0
      %805 = vmatpush1.msra.mxu0 0.0
      %806 = vmatprep.subr.mxu0 0.0
      %807 = vmatpush1.msra.mxu0 0.0
      %808 = vmatprep.subr.mxu0 0.0
      %809 = vmatpush1.msra.mxu0 0.0
      %810 = vmatprep.subr.mxu0 0.0
      %811 = vmatpush1.msra.mxu0 0.0
      %812 = vmatprep.subr.mxu0 0.0
      %813 = vmatpush1.msra.mxu0 0.0
      %814 = vmatprep.subr.mxu0 0.0
      %815 = vmatpush1.msra.mxu0 0.0
      %816 = vmatprep.subr.mxu0 0.0
      %817 = vmatpush1.msra.mxu0 0.0
      %818 = vmatprep.subr.mxu0 0.0
      %819 = vmatpush1.msra.mxu0 0.0
      %820 = vmatprep.subr.mxu0 0.0
      %821 = vmatpush1.msra.mxu0 0.0
      %822 = vmatprep.subr.mxu0 0.0
      %823 = vmatpush1.msra.mxu0 0.0
      %824 = vmatprep.subr.mxu0 0.0
      %825 = vmatpush1.msra.mxu0 0.0
      %826 = vmatprep.subr.mxu0 0.0
      %827 = vmatpush1.msra.mxu0 0.0
      %828 = vmatprep.subr.mxu0 0.0
      %829 = vmatpush1.msra.mxu0 0.0
      %830 = vmatprep.subr.mxu0 0.0
      %831 = vmatpush1.msra.mxu0 0.0
      %832 = vmatprep.mubr.f32.mxu0 0.0
      %833 = vmatmul.mubr.f32.gmra.mrb[0].mxu0 %v766
      %v834 = vpop.f32.mrb[0].mxu0
      %v835 = vadd.f32 %v764, %v834
      %v836 = vpop.f32.mrb[0].mxu0
      %837 = vdwg.mxu0
      %v838 = vmax.f32 %v835, 0.0
      %v839 = vld [vmem:[%s5] sm:$0xff]
      %v840 = vld [vmem:[%s6] sm:$0x1]
      %vm841 = vcmask 64512
      %v843 = vsel %vm841, %v838, 0
      %845 = vmatprep.subr.mxu0 0.0
      %846 = vmatpush1.msra.mxu0 %v839
      %847 = vmatprep.subr.mxu0 0.0
      %848 = vmatpush1.msra.mxu0 0.0
      %849 = vmatprep.subr.mxu0 0.0
      %850 = vmatpush1.msra.mxu0 0.0
      %851 = vmatprep.subr.mxu0 0.0
      %852 = vmatpush1.msra.mxu0 0.0
      %853 = vmatprep.subr.mxu0 0.0
      %854 = vmatpush1.msra.mxu0 0.0
      %855 = vmatprep.subr.mxu0 0.0
      %856 = vmatpush1.msra.mxu0 0.0
      %857 = vmatprep.subr.mxu0 0.0
      %858 = vmatpush1.msra.mxu0 0.0
      %859 = vmatprep.subr.mxu0 0.0
      %860 = vmatpush1.msra.mxu0 0.0
      %861 = vmatprep.subr.mxu0 0.0
      %862 = vmatpush1.msra.mxu0 0.0
      %863 = vmatprep.subr.mxu0 0.0
      %864 = vmatpush1.msra.mxu0 0.0
      %865 = vmatprep.subr.mxu0 0.0
      %866 = vmatpush1.msra.mxu0 0.0
      %867 = vmatprep.subr.mxu0 0.0
      %868 = vmatpush1.msra.mxu0 0.0
      %869 = vmatprep.subr.mxu0 0.0
      %870 = vmatpush1.msra.mxu0 0.0
      %871 = vmatprep.subr.mxu0 0.0
      %872 = vmatpush1.msra.mxu0 0.0
      %873 = vmatprep.subr.mxu0 0.0
      %874 = vmatpush1.msra.mxu0 0.0
      %875 = vmatprep.subr.mxu0 0.0
      %876 = vmatpush1.msra.mxu0 0.0
      %877 = vmatprep.subr.mxu0 0.0
      %878 = vmatpush1.msra.mxu0 0.0
      %879 = vmatprep.subr.mxu0 0.0
      %880 = vmatpush1.msra.mxu0 0.0
      %881 = vmatprep.subr.mxu0 0.0
      %882 = vmatpush1.msra.mxu0 0.0
      %883 = vmatprep.subr.mxu0 0.0
      %884 = vmatpush1.msra.mxu0 0.0
      %885 = vmatprep.subr.mxu0 0.0
      %886 = vmatpush1.msra.mxu0 0.0
      %887 = vmatprep.subr.mxu0 0.0
      %888 = vmatpush1.msra.mxu0 0.0
      %889 = vmatprep.subr.mxu0 0.0
      %890 = vmatpush1.msra.mxu0 0.0
      %891 = vmatprep.subr.mxu0 0.0
      %892 = vmatpush1.msra.mxu0 0.0
      %893 = vmatprep.subr.mxu0 0.0
      %894 = vmatpush1.msra.mxu0 0.0
      %895 = vmatprep.subr.mxu0 0.0
      %896 = vmatpush1.msra.mxu0 0.0
      %897 = vmatprep.subr.mxu0 0.0
      %898 = vmatpush1.msra.mxu0 0.0
      %899 = vmatprep.subr.mxu0 0.0
      %900 = vmatpush1.msra.mxu0 0.0
      %901 = vmatprep.subr.mxu0 0.0
      %902 = vmatpush1.msra.mxu0 0.0
      %903 = vmatprep.subr.mxu0 0.0
      %904 = vmatpush1.msra.mxu0 0.0
      %905 = vmatprep.subr.mxu0 0.0
      %906 = vmatpush1.msra.mxu0 0.0
      %907 = vmatprep.subr.mxu0 0.0
      %908 = vmatpush1.msra.mxu0 0.0
      %909 = vmatprep.mubr.f32.mxu0 0.0
      %910 = vmatmul.mubr.f32.gmra.mrb[0].mxu0 %v843
      %v911 = vpop.f32.mrb[0].mxu0
      %v912 = vadd.f32 %v840, %v911
      %v913 = vpop.f32.mrb[0].mxu0
      %914 = vdwg.mxu0
      %v915 = vadd.f32 %v912, 3.0
      %v916 = vmax.f32 %v915, 0.0
      %v917 = vmin.f32 %v916, 6.0
      %v918 = vmul.f32 %v917, 0.16666667
      %v919 = vlaneseq
      %v920 = vshrl.u32 %v919, 7
      %v921 = vsub.s32 0, %v920
      %v922 = vrot.slane %v918, %v921
      %v925 = vunpack.c.l.s4 1983009808
      %v926 = vunpack.c.0.s8 %v925
      %v927 = vlaneseq
      %v928 = vshrl.u32 %v927, 7
      %v929 = vsub.s32 %v926, %v928
      %v930 = vrot.slane %v922, %v929
      %v931 = vcombine.high %v930, %v930
      %v932 = vrot.slane %v930, 1
      %v933 = vrot.slane %v931, 1
      %v938 = vmul.f32 %v587, %v930
      %v939 = vmul.f32 %v595, %v932
      %v940 = vmul.f32 %v594, %v931
      %v941 = vmul.f32 %v596, %v933
      %v942 = vmul.f32 %v604, %v930
      %v943 = vmul.f32 %v612, %v932
      %v944 = vmul.f32 %v611, %v931
      %v945 = vmul.f32 %v613, %v933
      %v946 = vmul.f32 %v621, %v930
      %v947 = vmul.f32 %v629, %v932
      %v948 = vmul.f32 %v628, %v931
      %v949 = vmul.f32 %v630, %v933
      %v950 = vmul.f32 %v638, %v930
      %v951 = vmul.f32 %v646, %v932
      %v952 = vmul.f32 %v645, %v931
      %v953 = vmul.f32 %v647, %v933
      %v954 = vpack.c.bf16 %v938, %v938
      %v955 = vpack.c.bf16 %v939, %v939
      %v956 = vpack.c.bf16 %v940, %v940
      %v957 = vpack.c.bf16 %v941, %v941
      %v958 = vpack.c.bf16 %v942, %v942
      %v959 = vpack.c.bf16 %v943, %v943
      %v960 = vpack.c.bf16 %v944, %v944
      %v961 = vpack.c.bf16 %v945, %v945
      %v962 = vpack.c.bf16 %v946, %v946
      %v963 = vpack.c.bf16 %v947, %v947
      %v964 = vpack.c.bf16 %v948, %v948
      %v965 = vpack.c.bf16 %v949, %v949
      %v966 = vpack.c.bf16 %v950, %v950
      %v967 = vpack.c.bf16 %v951, %v951
      %v968 = vpack.c.bf16 %v952, %v952
      %v969 = vpack.c.bf16 %v953, %v953
      %v970 = vld [vmem:[%s7] sm:$0xf]
      %v971 = vld [vmem:[%s7 + $0x4] sm:$0xf]
      %v972 = vld [vmem:[%s8] sm:$0x1]
      %v974 = vlaneseq
      %v975 = vshrl.u32 %v974, 7
      %v976 = vsub.s32 0, %v975
      %v977 = vrot.slane %v972, %v976
      %v995 = vunpack.c.l.b16 %v954
      %v996 = vunpack.c.l.b16 %v955
      %v997 = vunpack.c.l.b16 %v956
      %v998 = vunpack.c.l.b16 %v957
      %v999 = vunpack.c.l.b16 %v958
      %v1000 = vunpack.c.l.b16 %v959
      %v1001 = vunpack.c.l.b16 %v960
      %v1002 = vunpack.c.l.b16 %v961
      %v1003 = vunpack.c.l.b16 %v962
      %v1004 = vunpack.c.l.b16 %v963
      %v1005 = vunpack.c.l.b16 %v964
      %v1006 = vunpack.c.l.b16 %v965
      %v1007 = vunpack.c.l.b16 %v966
      %v1008 = vunpack.c.l.b16 %v967
      %v1009 = vunpack.c.l.b16 %v968
      %v1010 = vunpack.c.l.b16 %v969
      %v1011 = vrot.slane %v996, 7
      %v1012 = vsel %vm728, %v1011, %v995
      %v1013 = vrot.slane %v997, 6
      %v1014 = vsel %vm730, %v1013, %v1012
      %v1015 = vrot.slane %v998, 5
      %v1016 = vsel %vm732, %v1015, %v1014
      %v1017 = vrot.slane %v999, 4
      %v1018 = vsel %vm734, %v1017, %v1016
      %v1019 = vrot.slane %v1000, 3
      %v1020 = vsel %vm736, %v1019, %v1018
      %v1021 = vrot.slane %v1001, 2
      %v1022 = vsel %vm738, %v1021, %v1020
      %v1023 = vrot.slane %v1002, 1
      %v1024 = vsel %vm740, %v1023, %v1022
      %v1025 = vrot.slane %v1004, 7
      %v1026 = vsel %vm728, %v1025, %v1003
      %v1027 = vrot.slane %v1005, 6
      %v1028 = vsel %vm730, %v1027, %v1026
      %v1029 = vrot.slane %v1006, 5
      %v1030 = vsel %vm732, %v1029, %v1028
      %v1031 = vrot.slane %v1007, 4
      %v1032 = vsel %vm734, %v1031, %v1030
      %v1033 = vrot.slane %v1008, 3
      %v1034 = vsel %vm736, %v1033, %v1032
      %v1035 = vrot.slane %v1009, 2
      %v1036 = vsel %vm738, %v1035, %v1034
      %v1037 = vrot.slane %v1010, 1
      %v1038 = vsel %vm740, %v1037, %v1036
      %v1039 = vpack.c.b16 %v1038, %v1024
      %v1042 = vunpack.c.l.b16 %v970
      %v1043 = vunpack.c.l.b16 %v971
      %v1044 = vpack.c.b16 %v1043, %v1042
      %v1047 = vsel %vm350, %v1039, 0
      %1049 = vmatprep.subr.bf16.mxu0 0
      %1050 = vmatpush1.bf16.msra.mxu0 %v1044
      %1051 = vmatprep.subr.bf16.mxu0 0
      %1052 = vmatpush1.bf16.msra.mxu0 0
      %1053 = vmatprep.subr.bf16.mxu0 0
      %1054 = vmatpush1.bf16.msra.mxu0 0
      %1055 = vmatprep.subr.bf16.mxu0 0
      %1056 = vmatpush1.bf16.msra.mxu0 0
      %1057 = vmatprep.subr.bf16.mxu0 0
      %1058 = vmatpush1.bf16.msra.mxu0 0
      %1059 = vmatprep.subr.bf16.mxu0 0
      %1060 = vmatpush1.bf16.msra.mxu0 0
      %1061 = vmatprep.subr.bf16.mxu0 0
      %1062 = vmatpush1.bf16.msra.mxu0 0
      %1063 = vmatprep.subr.bf16.mxu0 0
      %1064 = vmatpush1.bf16.msra.mxu0 0
      %1065 = vmatprep.subr.bf16.mxu0 0
      %1066 = vmatpush1.bf16.msra.mxu0 0
      %1067 = vmatprep.subr.bf16.mxu0 0
      %1068 = vmatpush1.bf16.msra.mxu0 0
      %1069 = vmatprep.subr.bf16.mxu0 0
      %1070 = vmatpush1.bf16.msra.mxu0 0
      %1071 = vmatprep.subr.bf16.mxu0 0
      %1072 = vmatpush1.bf16.msra.mxu0 0
      %1073 = vmatprep.subr.bf16.mxu0 0
      %1074 = vmatpush1.bf16.msra.mxu0 0
      %1075 = vmatprep.subr.bf16.mxu0 0
      %1076 = vmatpush1.bf16.msra.mxu0 0
      %1077 = vmatprep.subr.bf16.mxu0 0
      %1078 = vmatpush1.bf16.msra.mxu0 0
      %1079 = vmatprep.subr.bf16.mxu0 0
      %1080 = vmatpush1.bf16.msra.mxu0 0
      %1081 = vmatprep.mubr.bf16.mxu0 0
      %1082 = vmatmul.mubr.bf16.gmra.mrb[0].mxu0 %v1047
      %v1083 = vpop.f32.mrb[0].mxu0
      %v1084 = vadd.f32 %v977, %v1083
      %v1085 = vpop.f32.mrb[0].mxu0
      %v1086 = vpop.f32.mrb[0].mxu0
      %v1087 = vadd.f32 %v977, %v1086
      %v1088 = vpop.f32.mrb[0].mxu0
      %1089 = vdwg.mxu0
      %v1092 = vcombine.high %v1084, %v1084
      %v1093 = vcombine.high %v1087, %v1087
      %v1096 = vpack.c.bf16 %v1084, %v1084
      %v1097 = vpack.c.bf16 %v1092, %v1092
      %v1098 = vpack.c.bf16 %v1087, %v1087
      %v1099 = vpack.c.bf16 %v1093, %v1093
      %1100 = vst.msk [vmem:[%s332] sm:$0x3] %vm352, %v1096
      %1101 = vst.msk [vmem:[%s332 + $0x2] sm:$0x3] %vm352, %v1097
      %1102 = vst.msk [vmem:[%s332 + $0x4] sm:$0x3] %vm352, %v1098
      %1103 = vst.msk [vmem:[%s332 + $0x6] sm:$0x3] %vm352, %v1099
      %p1104 = scmp.lt.s32.totalorder %s20, 1
      %s1105 = scalar_select %p1104, %s20, 1
      %s1106 = smul.addr %s1105, 4
      %s1107 = smul.addr %s1106, 2
      %s1108 = scalar_lea.vmem %s9, %s1107
      // Predicated region
      $region57: #{_lambda_.8} parent=55 // pred_check
        %p1109 = pneg %p232
      $region58: #{_lambda_.8} parent=55 // pred_check_branch
        %1111 = sbr.rel (%p1109) target = $region60
      $region59: #{_lambda_.8} parent=55 // pred_region
        _
      $region60: #{_lambda_.8} parent=55 // pred_fallthru
        _
    $region56: #{_lambda_.8} parent=5 // pred_fallthru
      _
    %p1112 = scmp.le.s32.totalorder 2, %s15
    // Predicated region
    $region61: #{_lambda_.8} parent=5 // pred_check
      %p1113 = pneg %p1112
    $region62: #{_lambda_.8} parent=5 // pred_check_branch
      %1115 = sbr.rel (%p1113) target = $region64
    $region63: #{_lambda_.8} parent=5 // pred_region
      %s1116 = ssub.s32 %s15, 2
      // Predicated region
      $region65: #{_lambda_.8} parent=63 // pred_check
        %p1117 = pneg %p238
      $region66: #{_lambda_.8} parent=63 // pred_check_branch
        %1119 = sbr.rel (%p1117) target = $region68
      $region67: #{_lambda_.8} parent=63 // pred_region
        %p1120 = scmp.lt.s32.totalorder %s21, 1
        %s1121 = scalar_select %p1120, %s21, 1
        %s1122 = smul.addr %s1121, 4
        %s1123 = smul.addr %s1122, 2
        %s1124 = scalar_lea.vmem %s9, %s1123
      $region68: #{_lambda_.8} parent=63 // pred_fallthru
        _
    $region64: #{_lambda_.8} parent=5 // pred_fallthru
      _
  $region6: #{_lambda_.8} parent=0 // loop_footer
    %s19 = sadd.s32 1, %s15
  $region7: #{_lambda_.8} parent=0 // loop_footer_branch
    %14 = sbr.rel target = $region3
  $region8: #{_lambda_.8} parent=0 // loop_exit
    _

// kernel: _lambda_.9
$region0: #{_lambda_.9}
  #allocation0 [shape = 'u32[]', space=smem, size = 0x4, offset = 0x4, fixed_abs, tag = 'smem constant byte address 0x4 - core index']
  #allocation1 [shape = 'u32[144,128]{1,0:T(1,128)}', space=vmem, size = 0x12000, scoped, tag = 'internal scratch']
  #allocation2 [shape = 'f32[6,6,72]{2,1,0:T(8,128)}', space=vmem, size = 0x6000, scoped, tag = 'scratch operand']
  %s0 = inlined_call_operand.vmem [shape: bf16[2,4,4,16], index: 0, kind: input, shape index: {}]
  %s1 = inlined_call_operand.vmem [shape: bf16[16,72], index: 1, kind: input, shape index: {}]
  %s2 = inlined_call_operand.vmem [shape: f32[1,72], index: 2, kind: input, shape index: {}]
  %s3 = inlined_call_operand.vmem [shape: f32[9,1,1,72], index: 3, kind: input, shape index: {}]
  %s4 = inlined_call_operand.vmem [shape: f32[1,1,72], index: 4, kind: input, shape index: {}]
  %s5 = inlined_call_operand.vmem [shape: bf16[72,24], index: 5, kind: input, shape index: {}]
  %s6 = inlined_call_operand.vmem [shape: f32[1,24], index: 6, kind: input, shape index: {}]
  %s7 = inlined_call_operand.vmem [shape: bf16[2,2,2,24], index: 7, kind: output, shape index: {}]
  %s8 = sld [smem:[#allocation0]]
  $region61: #{_lambda_.9} parent=0
    _
  %s10 = ssub.s32 1, %s8
  %s11 = scalar_select 0, %s10, %s8
  loop: start=0, step=1, limit=4
  $region2: #{_lambda_.9} parent=0 // loop_pre_header
    _
  $region3: #{_lambda_.9} parent=0 // loop_header
    %s13 = sphi 0, %s17
    %p14 = scmp.ge.s32.totalorder %s13, 4
    %s23 = sphi 0, %s25
    %s26 = sphi 0, %s23
    %s27 = sphi 0, %s26
    %s43 = sphi 0, %s27
    %s47 = sphi 0, %s47
    %s49 = sphi 0, %s47
    %s50 = sphi 0, %s49
    %s64 = sphi 0, %s50
    %s68 = sphi 0, %s68
    %s70 = sphi 0, %s68
    %s71 = sphi 0, %s70
    %s85 = sphi 0, %s71
    %s89 = sphi 0, %s89
    %s91 = sphi 0, %s89
    %s92 = sphi 0, %s91
    %s106 = sphi 0, %s92
    %s110 = sphi 0, %s110
    %s112 = sphi 0, %s110
    %s113 = sphi 0, %s112
    %s127 = sphi 0, %s113
    %s131 = sphi 0, %s131
    %s133 = sphi 0, %s131
    %s134 = sphi 0, %s133
    %s148 = sphi 0, %s134
    %s152 = sphi 0, %s152
    %s154 = sphi 0, %s152
    %s155 = sphi 0, %s154
    %s169 = sphi 0, %s155
    %s175 = sphi 0, %s177
    %s178 = sphi 0, %s175
    %s179 = sphi 0, %s178
    %s195 = sphi 0, %s179
  $region4: #{_lambda_.9} parent=0 // loop_header_branch
    %16 = sbr.rel (%p14) target = $region8
  $region5: #{_lambda_.9} parent=0 // loop_body
    %s18 = ssub.s32 %s13, 1
    %s19 = ssub.s32 %s13, 2
    %s20 = sadd.s32 %s13, 1
    %s21 = ssub.s32 %s13, %s20
    %p22 = scmp.eq.s32.totalorder %s21, 0
    %s24 = sadd.s32 %s23, 1
    %s25 = scalar_select %p22, %s23, %s24
    %p28 = pneg %p22
    %p29 = scmp.eq.s32.totalorder %s13, 1
    %p30 = por %p28, %p29
    %p31 = scmp.ne.s32.totalorder %s23, %s26
    %p32 = scmp.eq.s32.totalorder %s13, 0
    %p33 = por %p31, %p32
    %p34 = scmp.ne.s32.totalorder %s23, %s26
    %p35 = scmp.eq.s32.totalorder %s18, 1
    %p36 = por %p34, %p35
    %p37 = scmp.ne.s32.totalorder %s26, %s27
    %p38 = scmp.eq.s32.totalorder %s18, 0
    %p39 = por %p37, %p38
    %p40 = scmp.ne.s32.totalorder %s26, %s27
    %p41 = scmp.eq.s32.totalorder %s19, 1
    %p42 = por %p40, %p41
    %p44 = scmp.ne.s32.totalorder %s27, %s43
    %p45 = scmp.eq.s32.totalorder %s19, 0
    %p46 = por %p44, %p45
    %s48 = sadd.s32 %s47, 1
    %p51 = scmp.eq.s32.totalorder %s13, 1
    %p52 = scmp.ne.s32.totalorder %s47, %s49
    %p53 = scmp.eq.s32.totalorder %s13, 0
    %p54 = por %p52, %p53
    %p55 = scmp.ne.s32.totalorder %s47, %s49
    %p56 = scmp.eq.s32.totalorder %s18, 1
    %p57 = por %p55, %p56
    %p58 = scmp.ne.s32.totalorder %s49, %s50
    %p59 = scmp.eq.s32.totalorder %s18, 0
    %p60 = por %p58, %p59
    %p61 = scmp.ne.s32.totalorder %s49, %s50
    %p62 = scmp.eq.s32.totalorder %s19, 1
    %p63 = por %p61, %p62
    %p65 = scmp.ne.s32.totalorder %s50, %s64
    %p66 = scmp.eq.s32.totalorder %s19, 0
    %p67 = por %p65, %p66
    %s69 = sadd.s32 %s68, 1
    %p72 = scmp.eq.s32.totalorder %s13, 1
    %p73 = scmp.ne.s32.totalorder %s68, %s70
    %p74 = scmp.eq.s32.totalorder %s13, 0
    %p75 = por %p73, %p74
    %p76 = scmp.ne.s32.totalorder %s68, %s70
    %p77 = scmp.eq.s32.totalorder %s18, 1
    %p78 = por %p76, %p77
    %p79 = scmp.ne.s32.totalorder %s70, %s71
    %p80 = scmp.eq.s32.totalorder %s18, 0
    %p81 = por %p79, %p80
    %p82 = scmp.ne.s32.totalorder %s70, %s71
    %p83 = scmp.eq.s32.totalorder %s19, 1
    %p84 = por %p82, %p83
    %p86 = scmp.ne.s32.totalorder %s71, %s85
    %p87 = scmp.eq.s32.totalorder %s19, 0
    %p88 = por %p86, %p87
    %s90 = sadd.s32 %s89, 1
    %p93 = scmp.eq.s32.totalorder %s13, 1
    %p94 = scmp.ne.s32.totalorder %s89, %s91
    %p95 = scmp.eq.s32.totalorder %s13, 0
    %p96 = por %p94, %p95
    %p97 = scmp.ne.s32.totalorder %s89, %s91
    %p98 = scmp.eq.s32.totalorder %s18, 1
    %p99 = por %p97, %p98
    %p100 = scmp.ne.s32.totalorder %s91, %s92
    %p101 = scmp.eq.s32.totalorder %s18, 0
    %p102 = por %p100, %p101
    %p103 = scmp.ne.s32.totalorder %s91, %s92
    %p104 = scmp.eq.s32.totalorder %s19, 1
    %p105 = por %p103, %p104
    %p107 = scmp.ne.s32.totalorder %s92, %s106
    %p108 = scmp.eq.s32.totalorder %s19, 0
    %p109 = por %p107, %p108
    %s111 = sadd.s32 %s110, 1
    %p114 = scmp.eq.s32.totalorder %s13, 1
    %p115 = scmp.ne.s32.totalorder %s110, %s112
    %p116 = scmp.eq.s32.totalorder %s13, 0
    %p117 = por %p115, %p116
    %p118 = scmp.ne.s32.totalorder %s110, %s112
    %p119 = scmp.eq.s32.totalorder %s18, 1
    %p120 = por %p118, %p119
    %p121 = scmp.ne.s32.totalorder %s112, %s113
    %p122 = scmp.eq.s32.totalorder %s18, 0
    %p123 = por %p121, %p122
    %p124 = scmp.ne.s32.totalorder %s112, %s113
    %p125 = scmp.eq.s32.totalorder %s19, 1
    %p126 = por %p124, %p125
    %p128 = scmp.ne.s32.totalorder %s113, %s127
    %p129 = scmp.eq.s32.totalorder %s19, 0
    %p130 = por %p128, %p129
    %s132 = sadd.s32 %s131, 1
    %p135 = scmp.eq.s32.totalorder %s13, 1
    %p136 = scmp.ne.s32.totalorder %s131, %s133
    %p137 = scmp.eq.s32.totalorder %s13, 0
    %p138 = por %p136, %p137
    %p139 = scmp.ne.s32.totalorder %s131, %s133
    %p140 = scmp.eq.s32.totalorder %s18, 1
    %p141 = por %p139, %p140
    %p142 = scmp.ne.s32.totalorder %s133, %s134
    %p143 = scmp.eq.s32.totalorder %s18, 0
    %p144 = por %p142, %p143
    %p145 = scmp.ne.s32.totalorder %s133, %s134
    %p146 = scmp.eq.s32.totalorder %s19, 1
    %p147 = por %p145, %p146
    %p149 = scmp.ne.s32.totalorder %s134, %s148
    %p150 = scmp.eq.s32.totalorder %s19, 0
    %p151 = por %p149, %p150
    %s153 = sadd.s32 %s152, 1
    %p156 = scmp.eq.s32.totalorder %s13, 1
    %p157 = scmp.ne.s32.totalorder %s152, %s154
    %p158 = scmp.eq.s32.totalorder %s13, 0
    %p159 = por %p157, %p158
    %p160 = scmp.ne.s32.totalorder %s152, %s154
    %p161 = scmp.eq.s32.totalorder %s18, 1
    %p162 = por %p160, %p161
    %p163 = scmp.ne.s32.totalorder %s154, %s155
    %p164 = scmp.eq.s32.totalorder %s18, 0
    %p165 = por %p163, %p164
    %p166 = scmp.ne.s32.totalorder %s154, %s155
    %p167 = scmp.eq.s32.totalorder %s19, 1
    %p168 = por %p166, %p167
    %p170 = scmp.ne.s32.totalorder %s155, %s169
    %p171 = scmp.eq.s32.totalorder %s19, 0
    %p172 = por %p170, %p171
    %s173 = ssub.s32 %s13, %s20
    %p174 = scmp.eq.s32.totalorder %s173, 0
    %s176 = sadd.s32 %s175, 1
    %s177 = scalar_select %p174, %s175, %s176
    %p180 = pneg %p174
    %p181 = scmp.eq.s32.totalorder %s13, 1
    %p182 = por %p180, %p181
    %p183 = scmp.ne.s32.totalorder %s175, %s178
    %p184 = scmp.eq.s32.totalorder %s13, 0
    %p185 = por %p183, %p184
    %p186 = scmp.ne.s32.totalorder %s175, %s178
    %p187 = scmp.eq.s32.totalorder %s18, 1
    %p188 = por %p186, %p187
    %p189 = scmp.ne.s32.totalorder %s178, %s179
    %p190 = scmp.eq.s32.totalorder %s18, 0
    %p191 = por %p189, %p190
    %p192 = scmp.ne.s32.totalorder %s178, %s179
    %p193 = scmp.eq.s32.totalorder %s19, 1
    %p194 = por %p192, %p193
    %p196 = scmp.ne.s32.totalorder %s179, %s195
    %p197 = scmp.eq.s32.totalorder %s19, 0
    %p198 = por %p196, %p197
    %p199 = scmp.le.s32.totalorder 1, %s13
    %p200 = scmp.lt.s32.totalorder %s13, 3
    %p201 = pnand %p199, %p200
    %p202 = pneg %p201
    // Predicated region
    $region9: #{_lambda_.9} parent=5 // pred_check
      _
    $region10: #{_lambda_.9} parent=5 // pred_check_branch
      %204 = sbr.rel (%p201) target = $region12
    $region11: #{_lambda_.9} parent=5 // pred_region
      %s205 = ssub.s32 %s13, 1
      // Predicated region
      $region13: #{_lambda_.9} parent=11 // pred_check
        %p206 = pneg %p60
      $region14: #{_lambda_.9} parent=11 // pred_check_branch
        %208 = sbr.rel (%p206) target = $region16
      $region15: #{_lambda_.9} parent=11 // pred_region
        _
      $region16: #{_lambda_.9} parent=11 // pred_fallthru
        _
      // Predicated region
      $region17: #{_lambda_.9} parent=11 // pred_check
        %p209 = pneg %p81
      $region18: #{_lambda_.9} parent=11 // pred_check_branch
        %211 = sbr.rel (%p209) target = $region20
      $region19: #{_lambda_.9} parent=11 // pred_region
        _
      $region20: #{_lambda_.9} parent=11 // pred_fallthru
        _
      // Predicated region
      $region21: #{_lambda_.9} parent=11 // pred_check
        %p212 = pneg %p102
      $region22: #{_lambda_.9} parent=11 // pred_check_branch
        %214 = sbr.rel (%p212) target = $region24
      $region23: #{_lambda_.9} parent=11 // pred_region
        _
      $region24: #{_lambda_.9} parent=11 // pred_fallthru
        _
      // Predicated region
      $region25: #{_lambda_.9} parent=11 // pred_check
        %p215 = pneg %p123
      $region26: #{_lambda_.9} parent=11 // pred_check_branch
        %217 = sbr.rel (%p215) target = $region28
      $region27: #{_lambda_.9} parent=11 // pred_region
        _
      $region28: #{_lambda_.9} parent=11 // pred_fallthru
        _
      // Predicated region
      $region29: #{_lambda_.9} parent=11 // pred_check
        %p218 = pneg %p144
      $region30: #{_lambda_.9} parent=11 // pred_check_branch
        %220 = sbr.rel (%p218) target = $region32
      $region31: #{_lambda_.9} parent=11 // pred_region
        _
      $region32: #{_lambda_.9} parent=11 // pred_fallthru
        _
      // Predicated region
      $region33: #{_lambda_.9} parent=11 // pred_check
        %p221 = pneg %p165
      $region34: #{_lambda_.9} parent=11 // pred_check_branch
        %223 = sbr.rel (%p221) target = $region36
      $region35: #{_lambda_.9} parent=11 // pred_region
        _
      $region36: #{_lambda_.9} parent=11 // pred_fallthru
        _
    $region12: #{_lambda_.9} parent=5 // pred_fallthru
      _
    %p224 = scmp.lt.s32.totalorder %s13, 2
    // Predicated region
    $region37: #{_lambda_.9} parent=5 // pred_check
      %p225 = pneg %p224
    $region38: #{_lambda_.9} parent=5 // pred_check_branch
      %227 = sbr.rel (%p225) target = $region40
    $region39: #{_lambda_.9} parent=5 // pred_region
      // Predicated region
      $region41: #{_lambda_.9} parent=39 // pred_check
        %p228 = pneg %p33
      $region42: #{_lambda_.9} parent=39 // pred_check_branch
        %230 = sbr.rel (%p228) target = $region44
      $region43: #{_lambda_.9} parent=39 // pred_region
        %p231 = scmp.lt.s32.totalorder %s13, 1
        %s232 = scalar_select %p231, %s13, 1
        %s233 = smul.addr %s232, 4
        %s234 = smul.addr %s233, 2
        %s235 = scalar_lea.vmem %s0, %s234
      $region44: #{_lambda_.9} parent=39 // pred_fallthru
        _
    $region40: #{_lambda_.9} parent=5 // pred_fallthru
      _
    %p236 = scmp.le.s32.totalorder 1, %s13
    %p237 = scmp.lt.s32.totalorder %s13, 3
    %p238 = pnand %p236, %p237
    %p239 = pneg %p238
    // Predicated region
    $region45: #{_lambda_.9} parent=5 // pred_check
      _
    $region46: #{_lambda_.9} parent=5 // pred_check_branch
      %241 = sbr.rel (%p238) target = $region48
    $region47: #{_lambda_.9} parent=5 // pred_region
      %s242 = ssub.s32 %s13, 1
      %p243 = scmp.lt.s32.totalorder %s18, 1
      %s244 = scalar_select %p243, %s18, 1
      %s245 = smul.addr %s244, 4
      %s246 = smul.addr %s245, 2
      %s247 = scalar_lea.vmem %s0, %s246
      %p248 = pneg %p39
      %p249 = pneg %p36
      %p250 = pneg %p60
      %p251 = pneg %p57
      %p252 = pneg %p81
      %p253 = pneg %p78
      %p254 = pneg %p102
      %p255 = pneg %p99
      %p256 = pneg %p123
      %p257 = pneg %p120
      %p258 = pneg %p144
      %p259 = pneg %p141
      %p260 = pneg %p165
      %p261 = pneg %p162
      %p262 = pneg %p191
      %p263 = pneg %p188
      %p264 = scmp.lt.s32.totalorder %s18, 1
      %s265 = scalar_select %p264, %s18, 1
      %s266 = smul.addr %s265, 2
      %s267 = scalar_lea.vmem %s7, %s266
      %p268 = scmp.lt.s32.totalorder %s18, 1
      %s269 = scalar_select %p268, %s18, 1
      %s270 = smul.addr %s269, 4
      %s271 = smul.addr %s270, 2
      %s272 = scalar_lea.vmem %s0, %s271
      %p273 = scmp.lt.s32.totalorder %s18, 1
      %s274 = scalar_select %p273, %s18, 1
      %s275 = smul.addr %s274, 2
      %s276 = scalar_lea.vmem %s7, %s275
      %v278 = vld [vmem:[%s272] sm:$0x3]
      %v279 = vld [vmem:[%s272 + $0x2] sm:$0x3]
      %v280 = vld [vmem:[%s272 + $0x4] sm:$0x3]
      %v281 = vld [vmem:[%s272 + $0x6] sm:$0x3]
      %v282 = vld [vmem:[%s1] sm:$0xf]
      %v283 = vld [vmem:[%s1 + $0x4] sm:$0xf]
      %v284 = vld [vmem:[%s2] sm:$0x1]
      %v286 = vlaneseq
      %v287 = vshrl.u32 %v286, 7
      %v288 = vsub.s32 0, %v287
      %v289 = vrot.slane %v284, %v288
      %v295 = vcombine.low %v278, %v279
      %v296 = vcombine.low %v280, %v281
      %v298 = vunpack.c.l.s4 1983009808
      %v299 = vunpack.c.0.s8 %v298
      %v300 = vlaneseq
      %v301 = vshrl.u32 %v300, 7
      %v302 = vsub.s32 %v299, %v301
      %v303 = vrot.slane %v295, %v302
      %v305 = vunpack.c.l.s4 1983009808
      %v306 = vunpack.c.0.s8 %v305
      %v307 = vlaneseq
      %v308 = vshrl.u32 %v307, 7
      %v309 = vsub.s32 %v306, %v308
      %v310 = vrot.slane %v296, %v309
      %v311 = vcombine.low %v303, %v310
      %v314 = vunpack.c.l.b16 %v282
      %v315 = vunpack.c.l.b16 %v283
      %v316 = vpack.c.b16 %v315, %v314
      %vm318 = vcmask 130048
      %v320 = vsel %vm318, %v311, 0
      %322 = vmatprep.subr.bf16.mxu0 0
      %323 = vmatpush1.bf16.msra.mxu0 %v316
      %324 = vmatprep.subr.bf16.mxu0 0
      %325 = vmatpush1.bf16.msra.mxu0 0
      %326 = vmatprep.subr.bf16.mxu0 0
      %327 = vmatpush1.bf16.msra.mxu0 0
      %328 = vmatprep.subr.bf16.mxu0 0
      %329 = vmatpush1.bf16.msra.mxu0 0
      %330 = vmatprep.subr.bf16.mxu0 0
      %331 = vmatpush1.bf16.msra.mxu0 0
      %332 = vmatprep.subr.bf16.mxu0 0
      %333 = vmatpush1.bf16.msra.mxu0 0
      %334 = vmatprep.subr.bf16.mxu0 0
      %335 = vmatpush1.bf16.msra.mxu0 0
      %336 = vmatprep.subr.bf16.mxu0 0
      %337 = vmatpush1.bf16.msra.mxu0 0
      %338 = vmatprep.subr.bf16.mxu0 0
      %339 = vmatpush1.bf16.msra.mxu0 0
      %340 = vmatprep.subr.bf16.mxu0 0
      %341 = vmatpush1.bf16.msra.mxu0 0
      %342 = vmatprep.subr.bf16.mxu0 0
      %343 = vmatpush1.bf16.msra.mxu0 0
      %344 = vmatprep.subr.bf16.mxu0 0
      %345 = vmatpush1.bf16.msra.mxu0 0
      %346 = vmatprep.subr.bf16.mxu0 0
      %347 = vmatpush1.bf16.msra.mxu0 0
      %348 = vmatprep.subr.bf16.mxu0 0
      %349 = vmatpush1.bf16.msra.mxu0 0
      %350 = vmatprep.subr.bf16.mxu0 0
      %351 = vmatpush1.bf16.msra.mxu0 0
      %352 = vmatprep.subr.bf16.mxu0 0
      %353 = vmatpush1.bf16.msra.mxu0 0
      %354 = vmatprep.mubr.bf16.mxu0 0
      %355 = vmatmul.mubr.bf16.gmra.mrb[0].mxu0 %v320
      %v356 = vpop.f32.mrb[0].mxu0
      %v357 = vadd.f32 %v289, %v356
      %v358 = vpop.f32.mrb[0].mxu0
      %v359 = vpop.f32.mrb[0].mxu0
      %v360 = vadd.f32 %v289, %v359
      %v361 = vpop.f32.mrb[0].mxu0
      %362 = vdwg.mxu0
      %v363 = vmax.f32 %v357, 0.0
      %v364 = vmax.f32 %v360, 0.0
      %vm365 = vcmask 586752
      %366 = vst.msk [vmem:[#allocation2] sm:$0x3f] %vm365, 0.0
      %367 = vst.msk [vmem:[#allocation2 + $0x8] sm:$0x3f] %vm365, 0.0
      %368 = vst.msk [vmem:[#allocation2 + $0x10] sm:$0x3f] %vm365, 0.0
      %369 = vst.msk [vmem:[#allocation2 + $0x18] sm:$0x3f] %vm365, 0.0
      %370 = vst.msk [vmem:[#allocation2 + $0x20] sm:$0x3f] %vm365, 0.0
      %371 = vst.msk [vmem:[#allocation2 + $0x28] sm:$0x3f] %vm365, 0.0
      %v374 = vcombine.high %v363, %v363
      %v375 = vcombine.high %v364, %v364
      %s378 = scalar_lea.vmem [#allocation2], 8
      %vm379 = vcmask 584704
      %380 = vst.msk [vmem:[%s378 + $0x1] sm:$0xf] %vm379, %v363
      %381 = vst.msk [vmem:[%s378 + $0x9] sm:$0xf] %vm379, %v374
      %382 = vst.msk [vmem:[%s378 + $0x11] sm:$0xf] %vm379, %v364
      %383 = vst.msk [vmem:[%s378 + $0x19] sm:$0xf] %vm379, %v375
      %v384 = vld [vmem:[#allocation2] sm:$0xf]
      %v385 = vld [vmem:[#allocation2 + $0x10] sm:$0xf]
      %v386 = vld [vmem:[%s3] sm:$0x1]
      %v388 = vlaneseq
      %v389 = vshrl.u32 %v388, 7
      %v390 = vsub.s32 0, %v389
      %v391 = vrot.slane %v386, %v390
      %v393 = vmul.f32 %v384, %v391
      %v394 = vmul.f32 %v385, %v391
      %v395 = vadd.f32 %v393, 0.0
      %v396 = vadd.f32 %v394, 0.0
      %v397 = vld [vmem:[#allocation2 + $0x1] sm:$0xf]
      %v398 = vld [vmem:[#allocation2 + $0x11] sm:$0xf]
      %s399 = scalar_lea.vmem %s3, 1
      %v400 = vld [vmem:[%s399] sm:$0x1]
      %v402 = vlaneseq
      %v403 = vshrl.u32 %v402, 7
      %v404 = vsub.s32 0, %v403
      %v405 = vrot.slane %v400, %v404
      %v407 = vmul.f32 %v397, %v405
      %v408 = vmul.f32 %v398, %v405
      %v409 = vadd.f32 %v395, %v407
      %v410 = vadd.f32 %v396, %v408
      %v411 = vld [vmem:[#allocation2 + $0x2] sm:$0xf]
      %v412 = vld [vmem:[#allocation2 + $0x12] sm:$0xf]
      %s413 = scalar_lea.vmem %s3, 2
      %v414 = vld [vmem:[%s413] sm:$0x1]
      %v416 = vlaneseq
      %v417 = vshrl.u32 %v416, 7
      %v418 = vsub.s32 0, %v417
      %v419 = vrot.slane %v414, %v418
      %v421 = vmul.f32 %v411, %v419
      %v422 = vmul.f32 %v412, %v419
      %v423 = vadd.f32 %v409, %v421
      %v424 = vadd.f32 %v410, %v422
      %v425 = vld [vmem:[%s378] sm:$0xf]
      %v426 = vld [vmem:[%s378 + $0x10] sm:$0xf]
      %s427 = scalar_lea.vmem %s3, 3
      %v428 = vld [vmem:[%s427] sm:$0x1]
      %v430 = vlaneseq
      %v431 = vshrl.u32 %v430, 7
      %v432 = vsub.s32 0, %v431
      %v433 = vrot.slane %v428, %v432
      %v435 = vmul.f32 %v425, %v433
      %v436 = vmul.f32 %v426, %v433
      %v437 = vadd.f32 %v423, %v435
      %v438 = vadd.f32 %v424, %v436
      %v439 = vld [vmem:[%s378 + $0x1] sm:$0xf]
      %v440 = vld [vmem:[%s378 + $0x11] sm:$0xf]
      %s441 = scalar_lea.vmem %s3, 4
      %v442 = vld [vmem:[%s441] sm:$0x1]
      %v444 = vlaneseq
      %v445 = vshrl.u32 %v444, 7
      %v446 = vsub.s32 0, %v445
      %v447 = vrot.slane %v442, %v446
      %v449 = vmul.f32 %v439, %v447
      %v450 = vmul.f32 %v440, %v447
      %v451 = vadd.f32 %v437, %v449
      %v452 = vadd.f32 %v438, %v450
      %v453 = vld [vmem:[%s378 + $0x2] sm:$0xf]
      %v454 = vld [vmem:[%s378 + $0x12] sm:$0xf]
      %s455 = scalar_lea.vmem %s3, 5
      %v456 = vld [vmem:[%s455] sm:$0x1]
      %v458 = vlaneseq
      %v459 = vshrl.u32 %v458, 7
      %v460 = vsub.s32 0, %v459
      %v461 = vrot.slane %v456, %v460
      %v463 = vmul.f32 %v453, %v461
      %v464 = vmul.f32 %v454, %v461
      %v465 = vadd.f32 %v451, %v463
      %v466 = vadd.f32 %v452, %v464
      %s467 = scalar_lea.vmem [#allocation2], 16
      %v468 = vld [vmem:[%s467] sm:$0xf]
      %v469 = vld [vmem:[%s467 + $0x10] sm:$0xf]
      %s470 = scalar_lea.vmem %s3, 6
      %v471 = vld [vmem:[%s470] sm:$0x1]
      %v473 = vlaneseq
      %v474 = vshrl.u32 %v473, 7
      %v475 = vsub.s32 0, %v474
      %v476 = vrot.slane %v471, %v475
      %v478 = vmul.f32 %v468, %v476
      %v479 = vmul.f32 %v469, %v476
      %v480 = vadd.f32 %v465, %v478
      %v481 = vadd.f32 %v466, %v479
      %v482 = vld [vmem:[%s467 + $0x1] sm:$0xf]
      %v483 = vld [vmem:[%s467 + $0x11] sm:$0xf]
      %s484 = scalar_lea.vmem %s3, 7
      %v485 = vld [vmem:[%s484] sm:$0x1]
      %v487 = vlaneseq
      %v488 = vshrl.u32 %v487, 7
      %v489 = vsub.s32 0, %v488
      %v490 = vrot.slane %v485, %v489
      %v492 = vmul.f32 %v482, %v490
      %v493 = vmul.f32 %v483, %v490
      %v494 = vadd.f32 %v480, %v492
      %v495 = vadd.f32 %v481, %v493
      %v496 = vld [vmem:[%s467 + $0x2] sm:$0xf]
      %v497 = vld [vmem:[%s467 + $0x12] sm:$0xf]
      %s498 = scalar_lea.vmem %s3, 8
      %v499 = vld [vmem:[%s498] sm:$0x1]
      %v501 = vlaneseq
      %v502 = vshrl.u32 %v501, 7
      %v503 = vsub.s32 0, %v502
      %v504 = vrot.slane %v499, %v503
      %v506 = vmul.f32 %v496, %v504
      %v507 = vmul.f32 %v497, %v504
      %v508 = vadd.f32 %v494, %v506
      %v509 = vadd.f32 %v495, %v507
      %v510 = vld [vmem:[%s4] sm:$0x1]
      %v512 = vlaneseq
      %v513 = vshrl.u32 %v512, 7
      %v514 = vsub.s32 0, %v513
      %v515 = vrot.slane %v510, %v514
      %v517 = vadd.f32 %v508, %v515
      %v518 = vadd.f32 %v509, %v515
      %v519 = vmax.f32 %v517, 0.0
      %v520 = vmax.f32 %v518, 0.0
      %v524 = vunpack.c.l.s4 1983009808
      %v525 = vunpack.c.0.s8 %v524
      %v526 = vlaneseq
      %v527 = vshrl.u32 %v526, 7
      %v528 = vsub.s32 %v525, %v527
      %v529 = vrot.slane %v519, %v528
      %v530 = vcombine.high %v529, %v529
      %v532 = vunpack.c.l.s4 1983009808
      %v533 = vunpack.c.0.s8 %v532
      %v534 = vlaneseq
      %v535 = vshrl.u32 %v534, 7
      %v536 = vsub.s32 %v533, %v535
      %v537 = vrot.slane %v520, %v536
      %v538 = vcombine.high %v537, %v537
      %v543 = vpack.c.bf16 %v529, %v529
      %v544 = vpack.c.bf16 %v530, %v530
      %v545 = vpack.c.bf16 %v537, %v537
      %v546 = vpack.c.bf16 %v538, %v538
      %v547 = vld [vmem:[%s5] sm:$0xf]
      %v548 = vld [vmem:[%s5 + $0x4] sm:$0xf]
      %v549 = vld [vmem:[%s5 + $0x8] sm:$0xf]
      %v550 = vld [vmem:[%s5 + $0xc] sm:$0xf]
      %v551 = vld [vmem:[%s5 + $0x10] sm:$0xf]
      %v552 = vld [vmem:[%s5 + $0x14] sm:$0xf]
      %v553 = vld [vmem:[%s5 + $0x18] sm:$0xf]
      %v554 = vld [vmem:[%s5 + $0x1c] sm:$0xf]
      %v555 = vld [vmem:[%s5 + $0x20] sm:$0xf]
      %v556 = vld [vmem:[%s6] sm:$0x1]
      %v558 = vlaneseq
      %v559 = vshrl.u32 %v558, 7
      %v560 = vsub.s32 0, %v559
      %v561 = vrot.slane %v556, %v560
      %v567 = vunpack.c.l.b16 %v543
      %v568 = vunpack.c.l.b16 %v544
      %v569 = vunpack.c.l.b16 %v545
      %v570 = vunpack.c.l.b16 %v546
      %v571 = vrot.slane %v568, 7
      %vm572 = vcmask 1041409
      %v573 = vsel %vm572, %v571, %v567
      %v574 = vrot.slane %v569, 6
      %vm575 = vcmask 1042434
      %v576 = vsel %vm575, %v574, %v573
      %v577 = vrot.slane %v570, 5
      %vm578 = vcmask 1043459
      %v579 = vsel %vm578, %v577, %v576
      %v580 = vpack.c.b16 %v579, %v579
      %v590 = vunpack.c.l.b16 %v547
      %v591 = vunpack.c.l.b16 %v548
      %v592 = vunpack.c.l.b16 %v549
      %v593 = vunpack.c.l.b16 %v550
      %v594 = vunpack.c.l.b16 %v551
      %v595 = vunpack.c.l.b16 %v552
      %v596 = vunpack.c.l.b16 %v553
      %v597 = vunpack.c.l.b16 %v554
      %v598 = vunpack.c.l.b16 %v555
      %v599 = vpack.c.b16 %v591, %v590
      %v600 = vpack.c.b16 %v593, %v592
      %v601 = vpack.c.b16 %v595, %v594
      %v602 = vpack.c.b16 %v597, %v596
      %v603 = vpack.c.b16 %v598, %v598
      %vm608 = vcmask 588800
      %v610 = vsel %vm608, %v580, 0
      %vm612 = vcmask 1043456
      %v614 = vsel %vm612, %v603, 0
      %616 = vmatprep.subr.bf16.mxu0 0
      %617 = vmatpush1.bf16.msra.mxu0 %v599
      %618 = vmatprep.subr.bf16.mxu0 0
      %619 = vmatpush1.bf16.msra.mxu0 %v600
      %620 = vmatprep.subr.bf16.mxu0 0
      %621 = vmatpush1.bf16.msra.mxu0 %v601
      %622 = vmatprep.subr.bf16.mxu0 0
      %623 = vmatpush1.bf16.msra.mxu0 %v602
      %624 = vmatprep.subr.bf16.mxu0 0
      %625 = vmatpush1.bf16.msra.mxu0 %v614
      %626 = vmatprep.subr.bf16.mxu0 0
      %627 = vmatpush1.bf16.msra.mxu0 0
      %628 = vmatprep.subr.bf16.mxu0 0
      %629 = vmatpush1.bf16.msra.mxu0 0
      %630 = vmatprep.subr.bf16.mxu0 0
      %631 = vmatpush1.bf16.msra.mxu0 0
      %632 = vmatprep.subr.bf16.mxu0 0
      %633 = vmatpush1.bf16.msra.mxu0 0
      %634 = vmatprep.subr.bf16.mxu0 0
      %635 = vmatpush1.bf16.msra.mxu0 0
      %636 = vmatprep.subr.bf16.mxu0 0
      %637 = vmatpush1.bf16.msra.mxu0 0
      %638 = vmatprep.subr.bf16.mxu0 0
      %639 = vmatpush1.bf16.msra.mxu0 0
      %640 = vmatprep.subr.bf16.mxu0 0
      %641 = vmatpush1.bf16.msra.mxu0 0
      %642 = vmatprep.subr.bf16.mxu0 0
      %643 = vmatpush1.bf16.msra.mxu0 0
      %644 = vmatprep.subr.bf16.mxu0 0
      %645 = vmatpush1.bf16.msra.mxu0 0
      %646 = vmatprep.subr.bf16.mxu0 0
      %647 = vmatpush1.bf16.msra.mxu0 0
      %648 = vmatprep.mubr.bf16.mxu0 0
      %649 = vmatmul.mubr.bf16.gmra.mrb[0].mxu0 %v610
      %v650 = vpop.f32.mrb[0].mxu0
      %v651 = vadd.f32 %v561, %v650
      %v652 = vpop.f32.mrb[0].mxu0
      %v653 = vpop.f32.mrb[0].mxu0
      %v654 = vpop.f32.mrb[0].mxu0
      %655 = vdwg.mxu0
      %v658 = vunpack.c.l.s4 1983009808
      %v659 = vunpack.c.0.s8 %v658
      %v660 = vlaneseq
      %v661 = vshrl.u32 %v660, 7
      %v662 = vsub.s32 %v659, %v661
      %v663 = vrot.slane %v651, %v662
      %v664 = vcombine.high %v663, %v663
      %v667 = vpack.c.bf16 %v663, %v663
      %v668 = vpack.c.bf16 %v664, %v664
      %vm669 = vcmask 188416
      %670 = vst.msk [vmem:[%s276] sm:$0x1] %vm669, %v667
      %671 = vst.msk [vmem:[%s276 + $0x1] sm:$0x1] %vm669, %v668
      %p672 = scmp.lt.s32.totalorder %s18, 1
      %s673 = scalar_select %p672, %s18, 1
      %s674 = smul.addr %s673, 2
      %s675 = scalar_lea.vmem %s7, %s674
      // Predicated region
      $region49: #{_lambda_.9} parent=47 // pred_check
        %p676 = pneg %p188
      $region50: #{_lambda_.9} parent=47 // pred_check_branch
        %678 = sbr.rel (%p676) target = $region52
      $region51: #{_lambda_.9} parent=47 // pred_region
        _
      $region52: #{_lambda_.9} parent=47 // pred_fallthru
        _
    $region48: #{_lambda_.9} parent=5 // pred_fallthru
      _
    %p679 = scmp.le.s32.totalorder 2, %s13
    // Predicated region
    $region53: #{_lambda_.9} parent=5 // pred_check
      %p680 = pneg %p679
    $region54: #{_lambda_.9} parent=5 // pred_check_branch
      %682 = sbr.rel (%p680) target = $region56
    $region55: #{_lambda_.9} parent=5 // pred_region
      %s683 = ssub.s32 %s13, 2
      // Predicated region
      $region57: #{_lambda_.9} parent=55 // pred_check
        %p684 = pneg %p194
      $region58: #{_lambda_.9} parent=55 // pred_check_branch
        %686 = sbr.rel (%p684) target = $region60
      $region59: #{_lambda_.9} parent=55 // pred_region
        %p687 = scmp.lt.s32.totalorder %s19, 1
        %s688 = scalar_select %p687, %s19, 1
        %s689 = smul.addr %s688, 2
        %s690 = scalar_lea.vmem %s7, %s689
      $region60: #{_lambda_.9} parent=55 // pred_fallthru
        _
    $region56: #{_lambda_.9} parent=5 // pred_fallthru
      _
  $region6: #{_lambda_.9} parent=0 // loop_footer
    %s17 = sadd.s32 1, %s13
  $region7: #{_lambda_.9} parent=0 // loop_footer_branch
    %12 = sbr.rel target = $region3
  $region8: #{_lambda_.9} parent=0 // loop_exit
    _

// kernel: _lambda_.12
$region0: #{_lambda_.12}
  #allocation0 [shape = 'u32[]', space=smem, size = 0x4, offset = 0x4, fixed_abs, tag = 'smem constant byte address 0x4 - core index']
  #allocation1 [shape = 'u32[144,128]{1,0:T(1,128)}', space=vmem, size = 0x12000, scoped, tag = 'internal scratch']
  %s0 = inlined_call_operand.vmem [shape: bf16[8,40], index: 0, kind: input, shape index: {}]
  %s1 = inlined_call_operand.vmem [shape: bf16[40,240], index: 1, kind: input, shape index: {}]
  %s2 = inlined_call_operand.vmem [shape: f32[1,240], index: 2, kind: input, shape index: {}]
  %s3 = inlined_call_operand.vmem [shape: bf16[8,240], index: 3, kind: output, shape index: {}]
  %s4 = sld [smem:[#allocation0]]
  $region22: #{_lambda_.12} parent=0
    _
  %s6 = ssub.s32 1, %s4
  %s7 = scalar_select 0, %s6, %s4
  // Predicated region
  $region2: #{_lambda_.12} parent=0 // pred_check
    _
  $region3: #{_lambda_.12} parent=0 // pred_check_branch
    %9 = sbr.rel (0) target = $region5
  $region4: #{_lambda_.12} parent=0 // pred_region
    _
  $region5: #{_lambda_.12} parent=0 // pred_fallthru
    _
  // Predicated region
  $region6: #{_lambda_.12} parent=0 // pred_check
    _
  $region7: #{_lambda_.12} parent=0 // pred_check_branch
    %11 = sbr.rel (0) target = $region9
  $region8: #{_lambda_.12} parent=0 // pred_region
    _
  $region9: #{_lambda_.12} parent=0 // pred_fallthru
    _
  // Predicated region
  $region10: #{_lambda_.12} parent=0 // pred_check
    _
  $region11: #{_lambda_.12} parent=0 // pred_check_branch
    %13 = sbr.rel (0) target = $region13
  $region12: #{_lambda_.12} parent=0 // pred_region
    _
  $region13: #{_lambda_.12} parent=0 // pred_fallthru
    _
  %v15 = vld [vmem:[%s0] sm:$0xf]
  %v16 = vld [vmem:[%s1] sm:$0xff]
  %v17 = vld [vmem:[%s1 + $0x8] sm:$0xff]
  %v18 = vld [vmem:[%s1 + $0x10] sm:$0xff]
  %v19 = vld [vmem:[%s1 + $0x18] sm:$0xff]
  %v20 = vld [vmem:[%s1 + $0x20] sm:$0xff]
  %v21 = vld [vmem:[%s2] sm:$0x3]
  %v23 = vlaneseq
  %v24 = vshrl.u32 %v23, 7
  %v25 = vsub.s32 0, %v24
  %v26 = vrot.slane %v21, %v25
  %v27 = vlaneseq
  %v28 = vshrl.u32 %v27, 7
  %v29 = vsub.s32 1, %v28
  %v30 = vrot.slane %v21, %v29
  %v38 = vunpack.c.l.b16 %v16
  %v39 = vunpack.c.h.b16 %v16
  %v40 = vunpack.c.l.b16 %v17
  %v41 = vunpack.c.h.b16 %v17
  %v42 = vunpack.c.l.b16 %v18
  %v43 = vunpack.c.h.b16 %v18
  %v44 = vunpack.c.l.b16 %v19
  %v45 = vunpack.c.h.b16 %v19
  %v46 = vunpack.c.l.b16 %v20
  %v47 = vunpack.c.h.b16 %v20
  %v48 = vpack.c.b16 %v40, %v38
  %v49 = vpack.c.b16 %v41, %v39
  %v50 = vpack.c.b16 %v44, %v42
  %v51 = vpack.c.b16 %v45, %v43
  %v52 = vpack.c.b16 %v46, %v46
  %v53 = vpack.c.b16 %v47, %v47
  %vm58 = vcmask 326656
  %v60 = vsel %vm58, %v15, 0
  %vm62 = vcmask 1043456
  %v64 = vsel %vm62, %v52, 0
  %v67 = vsel %vm62, %v53, 0
  %69 = vmatprep.subr.bf16.mxu0 %v49
  %70 = vmatpush1.bf16.msra.mxu0 %v48
  %71 = vmatprep.subr.bf16.mxu0 %v51
  %72 = vmatpush1.bf16.msra.mxu0 %v50
  %73 = vmatprep.subr.bf16.mxu0 %v67
  %74 = vmatpush1.bf16.msra.mxu0 %v64
  %75 = vmatprep.subr.bf16.mxu0 0
  %76 = vmatpush1.bf16.msra.mxu0 0
  %77 = vmatprep.subr.bf16.mxu0 0
  %78 = vmatpush1.bf16.msra.mxu0 0
  %79 = vmatprep.subr.bf16.mxu0 0
  %80 = vmatpush1.bf16.msra.mxu0 0
  %81 = vmatprep.subr.bf16.mxu0 0
  %82 = vmatpush1.bf16.msra.mxu0 0
  %83 = vmatprep.subr.bf16.mxu0 0
  %84 = vmatpush1.bf16.msra.mxu0 0
  %85 = vmatprep.subr.bf16.mxu0 0
  %86 = vmatpush1.bf16.msra.mxu0 0
  %87 = vmatprep.subr.bf16.mxu0 0
  %88 = vmatpush1.bf16.msra.mxu0 0
  %89 = vmatprep.subr.bf16.mxu0 0
  %90 = vmatpush1.bf16.msra.mxu0 0
  %91 = vmatprep.subr.bf16.mxu0 0
  %92 = vmatpush1.bf16.msra.mxu0 0
  %93 = vmatprep.subr.bf16.mxu0 0
  %94 = vmatpush1.bf16.msra.mxu0 0
  %95 = vmatprep.subr.bf16.mxu0 0
  %96 = vmatpush1.bf16.msra.mxu0 0
  %97 = vmatprep.subr.bf16.mxu0 0
  %98 = vmatpush1.bf16.msra.mxu0 0
  %99 = vmatprep.subr.bf16.mxu0 0
  %100 = vmatpush1.bf16.msra.mxu0 0
  %101 = vmatprep.mubr.bf16.mxu0 0
  %102 = vmatmul.mubr.bf16.gmra.mrb[0].mxu0 %v60
  %v103 = vpop.f32.mrb[0].mxu0
  %v104 = vadd.f32 %v26, %v103
  %v105 = vpop.f32.mrb[0].mxu0
  %v106 = vadd.f32 %v30, %v105
  %v107 = vpop.f32.mrb[0].mxu0
  %v108 = vpop.f32.mrb[0].mxu0
  %109 = vdwg.mxu0
  %v110 = vadd.f32 %v104, 3.0
  %v111 = vadd.f32 %v106, 3.0
  %v112 = vmax.f32 %v110, 0.0
  %v113 = vmax.f32 %v111, 0.0
  %v114 = vmin.f32 %v112, 6.0
  %v115 = vmin.f32 %v113, 6.0
  %v116 = vmul.f32 %v104, %v114
  %v117 = vmul.f32 %v106, %v115
  %v118 = vmul.f32 %v116, 0.16666667
  %v119 = vmul.f32 %v117, 0.16666667
  %v120 = vpack.c.bf16 %v118, %v118
  %v121 = vpack.c.bf16 %v119, %v119
  %v124 = vunpack.c.l.b16 %v120
  %v125 = vunpack.c.l.b16 %v121
  %v126 = vpack.c.b16 %v125, %v124
  %vm128 = vcmask 916484
  %vm129 = vmor %vm128, %vm62
  %130 = vst.msk [vmem:[%s3] sm:$0xff] %vm129, %v126
  // Predicated region
  $region14: #{_lambda_.12} parent=0 // pred_check
    _
  $region15: #{_lambda_.12} parent=0 // pred_check_branch
    %132 = sbr.rel (0) target = $region17
  $region16: #{_lambda_.12} parent=0 // pred_region
    _
  $region17: #{_lambda_.12} parent=0 // pred_fallthru
    _
  // Predicated region
  $region18: #{_lambda_.12} parent=0 // pred_check
    _
  $region19: #{_lambda_.12} parent=0 // pred_check_branch
    %134 = sbr.rel (0) target = $region21
  $region20: #{_lambda_.12} parent=0 // pred_region
    _
  $region21: #{_lambda_.12} parent=0 // pred_fallthru
    _

// kernel: _lambda_.10
$region0: #{_lambda_.10}
  #allocation0 [shape = 'u32[]', space=smem, size = 0x4, offset = 0x4, fixed_abs, tag = 'smem constant byte address 0x4 - core index']
  #allocation1 [shape = 'u32[144,128]{1,0:T(1,128)}', space=vmem, size = 0x12000, scoped, tag = 'internal scratch']
  #allocation2 [shape = 'f32[4,4,88]{2,1,0:T(4,128)}', space=vmem, size = 0x2000, scoped, tag = 'scratch operand']
  %s0 = inlined_call_operand.vmem [shape: bf16[2,2,2,24], index: 0, kind: input, shape index: {}]
  %s1 = inlined_call_operand.vmem [shape: bf16[24,88], index: 1, kind: input, shape index: {}]
  %s2 = inlined_call_operand.vmem [shape: f32[1,88], index: 2, kind: input, shape index: {}]
  %s3 = inlined_call_operand.vmem [shape: f32[9,1,1,88], index: 3, kind: input, shape index: {}]
  %s4 = inlined_call_operand.vmem [shape: f32[1,1,88], index: 4, kind: input, shape index: {}]
  %s5 = inlined_call_operand.vmem [shape: bf16[88,24], index: 5, kind: input, shape index: {}]
  %s6 = inlined_call_operand.vmem [shape: f32[1,24], index: 6, kind: input, shape index: {}]
  %s7 = inlined_call_operand.vmem [shape: bf16[2,2,2,24], index: 7, kind: output, shape index: {}]
  %s8 = sld [smem:[#allocation0]]
  $region61: #{_lambda_.10} parent=0
    _
  %s10 = ssub.s32 1, %s8
  %s11 = scalar_select 0, %s10, %s8
  loop: start=0, step=1, limit=4
  $region2: #{_lambda_.10} parent=0 // loop_pre_header
    _
  $region3: #{_lambda_.10} parent=0 // loop_header
    %s13 = sphi 0, %s17
    %p14 = scmp.ge.s32.totalorder %s13, 4
    %s23 = sphi 0, %s25
    %s26 = sphi 0, %s23
    %s27 = sphi 0, %s26
    %s43 = sphi 0, %s27
    %s47 = sphi 0, %s47
    %s49 = sphi 0, %s47
    %s50 = sphi 0, %s49
    %s64 = sphi 0, %s50
    %s68 = sphi 0, %s68
    %s70 = sphi 0, %s68
    %s71 = sphi 0, %s70
    %s85 = sphi 0, %s71
    %s89 = sphi 0, %s89
    %s91 = sphi 0, %s89
    %s92 = sphi 0, %s91
    %s106 = sphi 0, %s92
    %s110 = sphi 0, %s110
    %s112 = sphi 0, %s110
    %s113 = sphi 0, %s112
    %s127 = sphi 0, %s113
    %s131 = sphi 0, %s131
    %s133 = sphi 0, %s131
    %s134 = sphi 0, %s133
    %s148 = sphi 0, %s134
    %s152 = sphi 0, %s152
    %s154 = sphi 0, %s152
    %s155 = sphi 0, %s154
    %s169 = sphi 0, %s155
    %s175 = sphi 0, %s177
    %s178 = sphi 0, %s175
    %s179 = sphi 0, %s178
    %s195 = sphi 0, %s179
  $region4: #{_lambda_.10} parent=0 // loop_header_branch
    %16 = sbr.rel (%p14) target = $region8
  $region5: #{_lambda_.10} parent=0 // loop_body
    %s18 = ssub.s32 %s13, 1
    %s19 = ssub.s32 %s13, 2
    %s20 = sadd.s32 %s13, 1
    %s21 = ssub.s32 %s13, %s20
    %p22 = scmp.eq.s32.totalorder %s21, 0
    %s24 = sadd.s32 %s23, 1
    %s25 = scalar_select %p22, %s23, %s24
    %p28 = pneg %p22
    %p29 = scmp.eq.s32.totalorder %s13, 1
    %p30 = por %p28, %p29
    %p31 = scmp.ne.s32.totalorder %s23, %s26
    %p32 = scmp.eq.s32.totalorder %s13, 0
    %p33 = por %p31, %p32
    %p34 = scmp.ne.s32.totalorder %s23, %s26
    %p35 = scmp.eq.s32.totalorder %s18, 1
    %p36 = por %p34, %p35
    %p37 = scmp.ne.s32.totalorder %s26, %s27
    %p38 = scmp.eq.s32.totalorder %s18, 0
    %p39 = por %p37, %p38
    %p40 = scmp.ne.s32.totalorder %s26, %s27
    %p41 = scmp.eq.s32.totalorder %s19, 1
    %p42 = por %p40, %p41
    %p44 = scmp.ne.s32.totalorder %s27, %s43
    %p45 = scmp.eq.s32.totalorder %s19, 0
    %p46 = por %p44, %p45
    %s48 = sadd.s32 %s47, 1
    %p51 = scmp.eq.s32.totalorder %s13, 1
    %p52 = scmp.ne.s32.totalorder %s47, %s49
    %p53 = scmp.eq.s32.totalorder %s13, 0
    %p54 = por %p52, %p53
    %p55 = scmp.ne.s32.totalorder %s47, %s49
    %p56 = scmp.eq.s32.totalorder %s18, 1
    %p57 = por %p55, %p56
    %p58 = scmp.ne.s32.totalorder %s49, %s50
    %p59 = scmp.eq.s32.totalorder %s18, 0
    %p60 = por %p58, %p59
    %p61 = scmp.ne.s32.totalorder %s49, %s50
    %p62 = scmp.eq.s32.totalorder %s19, 1
    %p63 = por %p61, %p62
    %p65 = scmp.ne.s32.totalorder %s50, %s64
    %p66 = scmp.eq.s32.totalorder %s19, 0
    %p67 = por %p65, %p66
    %s69 = sadd.s32 %s68, 1
    %p72 = scmp.eq.s32.totalorder %s13, 1
    %p73 = scmp.ne.s32.totalorder %s68, %s70
    %p74 = scmp.eq.s32.totalorder %s13, 0
    %p75 = por %p73, %p74
    %p76 = scmp.ne.s32.totalorder %s68, %s70
    %p77 = scmp.eq.s32.totalorder %s18, 1
    %p78 = por %p76, %p77
    %p79 = scmp.ne.s32.totalorder %s70, %s71
    %p80 = scmp.eq.s32.totalorder %s18, 0
    %p81 = por %p79, %p80
    %p82 = scmp.ne.s32.totalorder %s70, %s71
    %p83 = scmp.eq.s32.totalorder %s19, 1
    %p84 = por %p82, %p83
    %p86 = scmp.ne.s32.totalorder %s71, %s85
    %p87 = scmp.eq.s32.totalorder %s19, 0
    %p88 = por %p86, %p87
    %s90 = sadd.s32 %s89, 1
    %p93 = scmp.eq.s32.totalorder %s13, 1
    %p94 = scmp.ne.s32.totalorder %s89, %s91
    %p95 = scmp.eq.s32.totalorder %s13, 0
    %p96 = por %p94, %p95
    %p97 = scmp.ne.s32.totalorder %s89, %s91
    %p98 = scmp.eq.s32.totalorder %s18, 1
    %p99 = por %p97, %p98
    %p100 = scmp.ne.s32.totalorder %s91, %s92
    %p101 = scmp.eq.s32.totalorder %s18, 0
    %p102 = por %p100, %p101
    %p103 = scmp.ne.s32.totalorder %s91, %s92
    %p104 = scmp.eq.s32.totalorder %s19, 1
    %p105 = por %p103, %p104
    %p107 = scmp.ne.s32.totalorder %s92, %s106
    %p108 = scmp.eq.s32.totalorder %s19, 0
    %p109 = por %p107, %p108
    %s111 = sadd.s32 %s110, 1
    %p114 = scmp.eq.s32.totalorder %s13, 1
    %p115 = scmp.ne.s32.totalorder %s110, %s112
    %p116 = scmp.eq.s32.totalorder %s13, 0
    %p117 = por %p115, %p116
    %p118 = scmp.ne.s32.totalorder %s110, %s112
    %p119 = scmp.eq.s32.totalorder %s18, 1
    %p120 = por %p118, %p119
    %p121 = scmp.ne.s32.totalorder %s112, %s113
    %p122 = scmp.eq.s32.totalorder %s18, 0
    %p123 = por %p121, %p122
    %p124 = scmp.ne.s32.totalorder %s112, %s113
    %p125 = scmp.eq.s32.totalorder %s19, 1
    %p126 = por %p124, %p125
    %p128 = scmp.ne.s32.totalorder %s113, %s127
    %p129 = scmp.eq.s32.totalorder %s19, 0
    %p130 = por %p128, %p129
    %s132 = sadd.s32 %s131, 1
    %p135 = scmp.eq.s32.totalorder %s13, 1
    %p136 = scmp.ne.s32.totalorder %s131, %s133
    %p137 = scmp.eq.s32.totalorder %s13, 0
    %p138 = por %p136, %p137
    %p139 = scmp.ne.s32.totalorder %s131, %s133
    %p140 = scmp.eq.s32.totalorder %s18, 1
    %p141 = por %p139, %p140
    %p142 = scmp.ne.s32.totalorder %s133, %s134
    %p143 = scmp.eq.s32.totalorder %s18, 0
    %p144 = por %p142, %p143
    %p145 = scmp.ne.s32.totalorder %s133, %s134
    %p146 = scmp.eq.s32.totalorder %s19, 1
    %p147 = por %p145, %p146
    %p149 = scmp.ne.s32.totalorder %s134, %s148
    %p150 = scmp.eq.s32.totalorder %s19, 0
    %p151 = por %p149, %p150
    %s153 = sadd.s32 %s152, 1
    %p156 = scmp.eq.s32.totalorder %s13, 1
    %p157 = scmp.ne.s32.totalorder %s152, %s154
    %p158 = scmp.eq.s32.totalorder %s13, 0
    %p159 = por %p157, %p158
    %p160 = scmp.ne.s32.totalorder %s152, %s154
    %p161 = scmp.eq.s32.totalorder %s18, 1
    %p162 = por %p160, %p161
    %p163 = scmp.ne.s32.totalorder %s154, %s155
    %p164 = scmp.eq.s32.totalorder %s18, 0
    %p165 = por %p163, %p164
    %p166 = scmp.ne.s32.totalorder %s154, %s155
    %p167 = scmp.eq.s32.totalorder %s19, 1
    %p168 = por %p166, %p167
    %p170 = scmp.ne.s32.totalorder %s155, %s169
    %p171 = scmp.eq.s32.totalorder %s19, 0
    %p172 = por %p170, %p171
    %s173 = ssub.s32 %s13, %s20
    %p174 = scmp.eq.s32.totalorder %s173, 0
    %s176 = sadd.s32 %s175, 1
    %s177 = scalar_select %p174, %s175, %s176
    %p180 = pneg %p174
    %p181 = scmp.eq.s32.totalorder %s13, 1
    %p182 = por %p180, %p181
    %p183 = scmp.ne.s32.totalorder %s175, %s178
    %p184 = scmp.eq.s32.totalorder %s13, 0
    %p185 = por %p183, %p184
    %p186 = scmp.ne.s32.totalorder %s175, %s178
    %p187 = scmp.eq.s32.totalorder %s18, 1
    %p188 = por %p186, %p187
    %p189 = scmp.ne.s32.totalorder %s178, %s179
    %p190 = scmp.eq.s32.totalorder %s18, 0
    %p191 = por %p189, %p190
    %p192 = scmp.ne.s32.totalorder %s178, %s179
    %p193 = scmp.eq.s32.totalorder %s19, 1
    %p194 = por %p192, %p193
    %p196 = scmp.ne.s32.totalorder %s179, %s195
    %p197 = scmp.eq.s32.totalorder %s19, 0
    %p198 = por %p196, %p197
    %p199 = scmp.le.s32.totalorder 1, %s13
    %p200 = scmp.lt.s32.totalorder %s13, 3
    %p201 = pnand %p199, %p200
    %p202 = pneg %p201
    // Predicated region
    $region9: #{_lambda_.10} parent=5 // pred_check
      _
    $region10: #{_lambda_.10} parent=5 // pred_check_branch
      %204 = sbr.rel (%p201) target = $region12
    $region11: #{_lambda_.10} parent=5 // pred_region
      %s205 = ssub.s32 %s13, 1
      // Predicated region
      $region13: #{_lambda_.10} parent=11 // pred_check
        %p206 = pneg %p60
      $region14: #{_lambda_.10} parent=11 // pred_check_branch
        %208 = sbr.rel (%p206) target = $region16
      $region15: #{_lambda_.10} parent=11 // pred_region
        _
      $region16: #{_lambda_.10} parent=11 // pred_fallthru
        _
      // Predicated region
      $region17: #{_lambda_.10} parent=11 // pred_check
        %p209 = pneg %p81
      $region18: #{_lambda_.10} parent=11 // pred_check_branch
        %211 = sbr.rel (%p209) target = $region20
      $region19: #{_lambda_.10} parent=11 // pred_region
        _
      $region20: #{_lambda_.10} parent=11 // pred_fallthru
        _
      // Predicated region
      $region21: #{_lambda_.10} parent=11 // pred_check
        %p212 = pneg %p102
      $region22: #{_lambda_.10} parent=11 // pred_check_branch
        %214 = sbr.rel (%p212) target = $region24
      $region23: #{_lambda_.10} parent=11 // pred_region
        _
      $region24: #{_lambda_.10} parent=11 // pred_fallthru
        _
      // Predicated region
      $region25: #{_lambda_.10} parent=11 // pred_check
        %p215 = pneg %p123
      $region26: #{_lambda_.10} parent=11 // pred_check_branch
        %217 = sbr.rel (%p215) target = $region28
      $region27: #{_lambda_.10} parent=11 // pred_region
        _
      $region28: #{_lambda_.10} parent=11 // pred_fallthru
        _
      // Predicated region
      $region29: #{_lambda_.10} parent=11 // pred_check
        %p218 = pneg %p144
      $region30: #{_lambda_.10} parent=11 // pred_check_branch
        %220 = sbr.rel (%p218) target = $region32
      $region31: #{_lambda_.10} parent=11 // pred_region
        _
      $region32: #{_lambda_.10} parent=11 // pred_fallthru
        _
      // Predicated region
      $region33: #{_lambda_.10} parent=11 // pred_check
        %p221 = pneg %p165
      $region34: #{_lambda_.10} parent=11 // pred_check_branch
        %223 = sbr.rel (%p221) target = $region36
      $region35: #{_lambda_.10} parent=11 // pred_region
        _
      $region36: #{_lambda_.10} parent=11 // pred_fallthru
        _
    $region12: #{_lambda_.10} parent=5 // pred_fallthru
      _
    %p224 = scmp.lt.s32.totalorder %s13, 2
    // Predicated region
    $region37: #{_lambda_.10} parent=5 // pred_check
      %p225 = pneg %p224
    $region38: #{_lambda_.10} parent=5 // pred_check_branch
      %227 = sbr.rel (%p225) target = $region40
    $region39: #{_lambda_.10} parent=5 // pred_region
      // Predicated region
      $region41: #{_lambda_.10} parent=39 // pred_check
        %p228 = pneg %p33
      $region42: #{_lambda_.10} parent=39 // pred_check_branch
        %230 = sbr.rel (%p228) target = $region44
      $region43: #{_lambda_.10} parent=39 // pred_region
        %p231 = scmp.lt.s32.totalorder %s13, 1
        %s232 = scalar_select %p231, %s13, 1
        %s233 = smul.addr %s232, 2
        %s234 = scalar_lea.vmem %s0, %s233
      $region44: #{_lambda_.10} parent=39 // pred_fallthru
        _
    $region40: #{_lambda_.10} parent=5 // pred_fallthru
      _
    %p235 = scmp.le.s32.totalorder 1, %s13
    %p236 = scmp.lt.s32.totalorder %s13, 3
    %p237 = pnand %p235, %p236
    %p238 = pneg %p237
    // Predicated region
    $region45: #{_lambda_.10} parent=5 // pred_check
      _
    $region46: #{_lambda_.10} parent=5 // pred_check_branch
      %240 = sbr.rel (%p237) target = $region48
    $region47: #{_lambda_.10} parent=5 // pred_region
      %s241 = ssub.s32 %s13, 1
      %p242 = scmp.lt.s32.totalorder %s18, 1
      %s243 = scalar_select %p242, %s18, 1
      %s244 = smul.addr %s243, 2
      %s245 = scalar_lea.vmem %s0, %s244
      %p246 = pneg %p39
      %p247 = pneg %p36
      %p248 = pneg %p60
      %p249 = pneg %p57
      %p250 = pneg %p81
      %p251 = pneg %p78
      %p252 = pneg %p102
      %p253 = pneg %p99
      %p254 = pneg %p123
      %p255 = pneg %p120
      %p256 = pneg %p144
      %p257 = pneg %p141
      %p258 = pneg %p165
      %p259 = pneg %p162
      %p260 = pneg %p191
      %p261 = pneg %p188
      %p262 = scmp.lt.s32.totalorder %s18, 1
      %s263 = scalar_select %p262, %s18, 1
      %s264 = smul.addr %s263, 2
      %s265 = scalar_lea.vmem %s7, %s264
      %p266 = scmp.lt.s32.totalorder %s18, 1
      %s267 = scalar_select %p266, %s18, 1
      %s268 = smul.addr %s267, 2
      %s269 = scalar_lea.vmem %s0, %s268
      %p270 = scmp.lt.s32.totalorder %s18, 1
      %s271 = scalar_select %p270, %s18, 1
      %s272 = smul.addr %s271, 2
      %s273 = scalar_lea.vmem %s7, %s272
      %v275 = vld [vmem:[%s269] sm:$0x1]
      %v276 = vld [vmem:[%s269 + $0x1] sm:$0x1]
      %v277 = vld [vmem:[%s1] sm:$0xf]
      %v278 = vld [vmem:[%s1 + $0x4] sm:$0xf]
      %v279 = vld [vmem:[%s1 + $0x8] sm:$0xf]
      %v280 = vld [vmem:[%s2] sm:$0x1]
      %v282 = vlaneseq
      %v283 = vshrl.u32 %v282, 7
      %v284 = vsub.s32 0, %v283
      %v285 = vrot.slane %v280, %v284
      %v289 = vcombine.low %v275, %v276
      %v291 = vunpack.c.l.s4 1966171168
      %v292 = vunpack.c.0.s8 %v291
      %v293 = vlaneseq
      %v294 = vshrl.u32 %v293, 7
      %v295 = vsub.s32 %v292, %v294
      %v296 = vrot.slane %v289, %v295
      %v298 = vunpack.c.l.s4 1966171168
      %v299 = vunpack.c.0.s8 %v298
      %v300 = vlaneseq
      %v301 = vshrl.u32 %v300, 7
      %v302 = vsub.s32 %v299, %v301
      %v303 = vrot.slane %v296, %v302
      %v307 = vunpack.c.l.b16 %v277
      %v308 = vunpack.c.l.b16 %v278
      %v309 = vunpack.c.l.b16 %v279
      %v310 = vpack.c.b16 %v308, %v307
      %v311 = vpack.c.b16 %v309, %v309
      %vm313 = vcmask 195584
      %v315 = vsel %vm313, %v303, 0
      %vm317 = vcmask 1043456
      %v319 = vsel %vm317, %v311, 0
      %321 = vmatprep.subr.bf16.mxu0 0
      %322 = vmatpush1.bf16.msra.mxu0 %v310
      %323 = vmatprep.subr.bf16.mxu0 0
      %324 = vmatpush1.bf16.msra.mxu0 %v319
      %325 = vmatprep.subr.bf16.mxu0 0
      %326 = vmatpush1.bf16.msra.mxu0 0
      %327 = vmatprep.subr.bf16.mxu0 0
      %328 = vmatpush1.bf16.msra.mxu0 0
      %329 = vmatprep.subr.bf16.mxu0 0
      %330 = vmatpush1.bf16.msra.mxu0 0
      %331 = vmatprep.subr.bf16.mxu0 0
      %332 = vmatpush1.bf16.msra.mxu0 0
      %333 = vmatprep.subr.bf16.mxu0 0
      %334 = vmatpush1.bf16.msra.mxu0 0
      %335 = vmatprep.subr.bf16.mxu0 0
      %336 = vmatpush1.bf16.msra.mxu0 0
      %337 = vmatprep.subr.bf16.mxu0 0
      %338 = vmatpush1.bf16.msra.mxu0 0
      %339 = vmatprep.subr.bf16.mxu0 0
      %340 = vmatpush1.bf16.msra.mxu0 0
      %341 = vmatprep.subr.bf16.mxu0 0
      %342 = vmatpush1.bf16.msra.mxu0 0
      %343 = vmatprep.subr.bf16.mxu0 0
      %344 = vmatpush1.bf16.msra.mxu0 0
      %345 = vmatprep.subr.bf16.mxu0 0
      %346 = vmatpush1.bf16.msra.mxu0 0
      %347 = vmatprep.subr.bf16.mxu0 0
      %348 = vmatpush1.bf16.msra.mxu0 0
      %349 = vmatprep.subr.bf16.mxu0 0
      %350 = vmatpush1.bf16.msra.mxu0 0
      %351 = vmatprep.subr.bf16.mxu0 0
      %352 = vmatpush1.bf16.msra.mxu0 0
      %353 = vmatprep.mubr.bf16.mxu0 0
      %354 = vmatmul.mubr.bf16.gmra.mrb[0].mxu0 %v315
      %v355 = vpop.f32.mrb[0].mxu0
      %v356 = vadd.f32 %v285, %v355
      %v357 = vpop.f32.mrb[0].mxu0
      %v358 = vpop.f32.mrb[0].mxu0
      %v359 = vpop.f32.mrb[0].mxu0
      %360 = vdwg.mxu0
      %v361 = vmax.f32 %v356, 0.0
      %vm362 = vcmask 715776
      %363 = vst.msk [vmem:[#allocation2] sm:$0xf] %vm362, 0.0
      %364 = vst.msk [vmem:[#allocation2 + $0x4] sm:$0xf] %vm362, 0.0
      %365 = vst.msk [vmem:[#allocation2 + $0x8] sm:$0xf] %vm362, 0.0
      %366 = vst.msk [vmem:[#allocation2 + $0xc] sm:$0xf] %vm362, 0.0
      %v369 = vunpack.c.l.s4 1983009808
      %v370 = vunpack.c.0.s8 %v369
      %v371 = vlaneseq
      %v372 = vshrl.u32 %v371, 7
      %v373 = vsub.s32 %v370, %v372
      %v374 = vrot.slane %v361, %v373
      %v375 = vcombine.high %v374, %v374
      %s378 = scalar_lea.vmem [#allocation2], 4
      %vm379 = vcmask 713728
      %380 = vst.msk [vmem:[%s378 + $0x1] sm:$0x3] %vm379, %v374
      %381 = vst.msk [vmem:[%s378 + $0x5] sm:$0x3] %vm379, %v375
      %v382 = vld [vmem:[#allocation2] sm:$0x3]
      %v383 = vld [vmem:[#allocation2 + $0x4] sm:$0x3]
      %v384 = vld [vmem:[%s3] sm:$0x1]
      %v386 = vlaneseq
      %v387 = vshrl.u32 %v386, 7
      %v388 = vsub.s32 0, %v387
      %v389 = vrot.slane %v384, %v388
      %v391 = vmul.f32 %v382, %v389
      %v392 = vmul.f32 %v383, %v389
      %v393 = vadd.f32 %v391, 0.0
      %v394 = vadd.f32 %v392, 0.0
      %v395 = vld [vmem:[#allocation2 + $0x1] sm:$0x3]
      %v396 = vld [vmem:[#allocation2 + $0x5] sm:$0x3]
      %s397 = scalar_lea.vmem %s3, 1
      %v398 = vld [vmem:[%s397] sm:$0x1]
      %v400 = vlaneseq
      %v401 = vshrl.u32 %v400, 7
      %v402 = vsub.s32 0, %v401
      %v403 = vrot.slane %v398, %v402
      %v405 = vmul.f32 %v395, %v403
      %v406 = vmul.f32 %v396, %v403
      %v407 = vadd.f32 %v393, %v405
      %v408 = vadd.f32 %v394, %v406
      %v409 = vld [vmem:[#allocation2 + $0x2] sm:$0x3]
      %v410 = vld [vmem:[#allocation2 + $0x6] sm:$0x3]
      %s411 = scalar_lea.vmem %s3, 2
      %v412 = vld [vmem:[%s411] sm:$0x1]
      %v414 = vlaneseq
      %v415 = vshrl.u32 %v414, 7
      %v416 = vsub.s32 0, %v415
      %v417 = vrot.slane %v412, %v416
      %v419 = vmul.f32 %v409, %v417
      %v420 = vmul.f32 %v410, %v417
      %v421 = vadd.f32 %v407, %v419
      %v422 = vadd.f32 %v408, %v420
      %v423 = vld [vmem:[%s378] sm:$0x3]
      %v424 = vld [vmem:[%s378 + $0x4] sm:$0x3]
      %s425 = scalar_lea.vmem %s3, 3
      %v426 = vld [vmem:[%s425] sm:$0x1]
      %v428 = vlaneseq
      %v429 = vshrl.u32 %v428, 7
      %v430 = vsub.s32 0, %v429
      %v431 = vrot.slane %v426, %v430
      %v433 = vmul.f32 %v423, %v431
      %v434 = vmul.f32 %v424, %v431
      %v435 = vadd.f32 %v421, %v433
      %v436 = vadd.f32 %v422, %v434
      %v437 = vld [vmem:[%s378 + $0x1] sm:$0x3]
      %v438 = vld [vmem:[%s378 + $0x5] sm:$0x3]
      %s439 = scalar_lea.vmem %s3, 4
      %v440 = vld [vmem:[%s439] sm:$0x1]
      %v442 = vlaneseq
      %v443 = vshrl.u32 %v442, 7
      %v444 = vsub.s32 0, %v443
      %v445 = vrot.slane %v440, %v444
      %v447 = vmul.f32 %v437, %v445
      %v448 = vmul.f32 %v438, %v445
      %v449 = vadd.f32 %v435, %v447
      %v450 = vadd.f32 %v436, %v448
      %v451 = vld [vmem:[%s378 + $0x2] sm:$0x3]
      %v452 = vld [vmem:[%s378 + $0x6] sm:$0x3]
      %s453 = scalar_lea.vmem %s3, 5
      %v454 = vld [vmem:[%s453] sm:$0x1]
      %v456 = vlaneseq
      %v457 = vshrl.u32 %v456, 7
      %v458 = vsub.s32 0, %v457
      %v459 = vrot.slane %v454, %v458
      %v461 = vmul.f32 %v451, %v459
      %v462 = vmul.f32 %v452, %v459
      %v463 = vadd.f32 %v449, %v461
      %v464 = vadd.f32 %v450, %v462
      %s465 = scalar_lea.vmem [#allocation2], 8
      %v466 = vld [vmem:[%s465] sm:$0x3]
      %v467 = vld [vmem:[%s465 + $0x4] sm:$0x3]
      %s468 = scalar_lea.vmem %s3, 6
      %v469 = vld [vmem:[%s468] sm:$0x1]
      %v471 = vlaneseq
      %v472 = vshrl.u32 %v471, 7
      %v473 = vsub.s32 0, %v472
      %v474 = vrot.slane %v469, %v473
      %v476 = vmul.f32 %v466, %v474
      %v477 = vmul.f32 %v467, %v474
      %v478 = vadd.f32 %v463, %v476
      %v479 = vadd.f32 %v464, %v477
      %v480 = vld [vmem:[%s465 + $0x1] sm:$0x3]
      %v481 = vld [vmem:[%s465 + $0x5] sm:$0x3]
      %s482 = scalar_lea.vmem %s3, 7
      %v483 = vld [vmem:[%s482] sm:$0x1]
      %v485 = vlaneseq
      %v486 = vshrl.u32 %v485, 7
      %v487 = vsub.s32 0, %v486
      %v488 = vrot.slane %v483, %v487
      %v490 = vmul.f32 %v480, %v488
      %v491 = vmul.f32 %v481, %v488
      %v492 = vadd.f32 %v478, %v490
      %v493 = vadd.f32 %v479, %v491
      %v494 = vld [vmem:[%s465 + $0x2] sm:$0x3]
      %v495 = vld [vmem:[%s465 + $0x6] sm:$0x3]
      %s496 = scalar_lea.vmem %s3, 8
      %v497 = vld [vmem:[%s496] sm:$0x1]
      %v499 = vlaneseq
      %v500 = vshrl.u32 %v499, 7
      %v501 = vsub.s32 0, %v500
      %v502 = vrot.slane %v497, %v501
      %v504 = vmul.f32 %v494, %v502
      %v505 = vmul.f32 %v495, %v502
      %v506 = vadd.f32 %v492, %v504
      %v507 = vadd.f32 %v493, %v505
      %v508 = vld [vmem:[%s4] sm:$0x1]
      %v510 = vlaneseq
      %v511 = vshrl.u32 %v510, 7
      %v512 = vsub.s32 0, %v511
      %v513 = vrot.slane %v508, %v512
      %v515 = vadd.f32 %v506, %v513
      %v516 = vadd.f32 %v507, %v513
      %v517 = vmax.f32 %v515, 0.0
      %v518 = vmax.f32 %v516, 0.0
      %v521 = vcombine.low %v517, %v518
      %v523 = vunpack.c.l.s4 1983009808
      %v524 = vunpack.c.0.s8 %v523
      %v525 = vlaneseq
      %v526 = vshrl.u32 %v525, 7
      %v527 = vsub.s32 %v524, %v526
      %v528 = vrot.slane %v521, %v527
      %v530 = vpack.c.bf16 %v528, %v528
      %v531 = vld [vmem:[%s5] sm:$0xf]
      %v532 = vld [vmem:[%s5 + $0x4] sm:$0xf]
      %v533 = vld [vmem:[%s5 + $0x8] sm:$0xf]
      %v534 = vld [vmem:[%s5 + $0xc] sm:$0xf]
      %v535 = vld [vmem:[%s5 + $0x10] sm:$0xf]
      %v536 = vld [vmem:[%s5 + $0x14] sm:$0xf]
      %v537 = vld [vmem:[%s5 + $0x18] sm:$0xf]
      %v538 = vld [vmem:[%s5 + $0x1c] sm:$0xf]
      %v539 = vld [vmem:[%s5 + $0x20] sm:$0xf]
      %v540 = vld [vmem:[%s5 + $0x24] sm:$0xf]
      %v541 = vld [vmem:[%s5 + $0x28] sm:$0xf]
      %v542 = vld [vmem:[%s6] sm:$0x1]
      %v544 = vlaneseq
      %v545 = vshrl.u32 %v544, 7
      %v546 = vsub.s32 0, %v545
      %v547 = vrot.slane %v542, %v546
      %v560 = vunpack.c.l.b16 %v531
      %v561 = vunpack.c.l.b16 %v532
      %v562 = vunpack.c.l.b16 %v533
      %v563 = vunpack.c.l.b16 %v534
      %v564 = vunpack.c.l.b16 %v535
      %v565 = vunpack.c.l.b16 %v536
      %v566 = vunpack.c.l.b16 %v537
      %v567 = vunpack.c.l.b16 %v538
      %v568 = vunpack.c.l.b16 %v539
      %v569 = vunpack.c.l.b16 %v540
      %v570 = vunpack.c.l.b16 %v541
      %v571 = vpack.c.b16 %v561, %v560
      %v572 = vpack.c.b16 %v563, %v562
      %v573 = vpack.c.b16 %v565, %v564
      %v574 = vpack.c.b16 %v567, %v566
      %v575 = vpack.c.b16 %v569, %v568
      %v576 = vpack.c.b16 %v570, %v570
      %vm582 = vcmask 719872
      %v584 = vsel %vm582, %v530, 0
      %v587 = vsel %vm317, %v576, 0
      %589 = vmatprep.subr.bf16.mxu0 0
      %590 = vmatpush1.bf16.msra.mxu0 %v571
      %591 = vmatprep.subr.bf16.mxu0 0
      %592 = vmatpush1.bf16.msra.mxu0 %v572
      %593 = vmatprep.subr.bf16.mxu0 0
      %594 = vmatpush1.bf16.msra.mxu0 %v573
      %595 = vmatprep.subr.bf16.mxu0 0
      %596 = vmatpush1.bf16.msra.mxu0 %v574
      %597 = vmatprep.subr.bf16.mxu0 0
      %598 = vmatpush1.bf16.msra.mxu0 %v575
      %599 = vmatprep.subr.bf16.mxu0 0
      %600 = vmatpush1.bf16.msra.mxu0 %v587
      %601 = vmatprep.subr.bf16.mxu0 0
      %602 = vmatpush1.bf16.msra.mxu0 0
      %603 = vmatprep.subr.bf16.mxu0 0
      %604 = vmatpush1.bf16.msra.mxu0 0
      %605 = vmatprep.subr.bf16.mxu0 0
      %606 = vmatpush1.bf16.msra.mxu0 0
      %607 = vmatprep.subr.bf16.mxu0 0
      %608 = vmatpush1.bf16.msra.mxu0 0
      %609 = vmatprep.subr.bf16.mxu0 0
      %610 = vmatpush1.bf16.msra.mxu0 0
      %611 = vmatprep.subr.bf16.mxu0 0
      %612 = vmatpush1.bf16.msra.mxu0 0
      %613 = vmatprep.subr.bf16.mxu0 0
      %614 = vmatpush1.bf16.msra.mxu0 0
      %615 = vmatprep.subr.bf16.mxu0 0
      %616 = vmatpush1.bf16.msra.mxu0 0
      %617 = vmatprep.subr.bf16.mxu0 0
      %618 = vmatpush1.bf16.msra.mxu0 0
      %619 = vmatprep.subr.bf16.mxu0 0
      %620 = vmatpush1.bf16.msra.mxu0 0
      %621 = vmatprep.mubr.bf16.mxu0 0
      %622 = vmatmul.mubr.bf16.gmra.mrb[0].mxu0 %v584
      %v623 = vpop.f32.mrb[0].mxu0
      %v624 = vadd.f32 %v547, %v623
      %v625 = vpop.f32.mrb[0].mxu0
      %v626 = vpop.f32.mrb[0].mxu0
      %v627 = vpop.f32.mrb[0].mxu0
      %628 = vdwg.mxu0
      %v629 = vunpack.c.l.bf16 %v275
      %v630 = vunpack.c.l.bf16 %v276
      %v633 = vcombine.low %v629, %v630
      %v635 = vunpack.c.l.s4 1983009808
      %v636 = vunpack.c.0.s8 %v635
      %v637 = vlaneseq
      %v638 = vshrl.u32 %v637, 7
      %v639 = vsub.s32 %v636, %v638
      %v640 = vrot.slane %v633, %v639
      %v642 = vadd.f32 %v624, %v640
      %v645 = vunpack.c.l.s4 1983009808
      %v646 = vunpack.c.0.s8 %v645
      %v647 = vlaneseq
      %v648 = vshrl.u32 %v647, 7
      %v649 = vsub.s32 %v646, %v648
      %v650 = vrot.slane %v642, %v649
      %v651 = vcombine.high %v650, %v650
      %v654 = vpack.c.bf16 %v650, %v650
      %v655 = vpack.c.bf16 %v651, %v651
      %vm656 = vcmask 188416
      %657 = vst.msk [vmem:[%s273] sm:$0x1] %vm656, %v654
      %658 = vst.msk [vmem:[%s273 + $0x1] sm:$0x1] %vm656, %v655
      %p659 = scmp.lt.s32.totalorder %s18, 1
      %s660 = scalar_select %p659, %s18, 1
      %s661 = smul.addr %s660, 2
      %s662 = scalar_lea.vmem %s7, %s661
      // Predicated region
      $region49: #{_lambda_.10} parent=47 // pred_check
        %p663 = pneg %p188
      $region50: #{_lambda_.10} parent=47 // pred_check_branch
        %665 = sbr.rel (%p663) target = $region52
      $region51: #{_lambda_.10} parent=47 // pred_region
        _
      $region52: #{_lambda_.10} parent=47 // pred_fallthru
        _
    $region48: #{_lambda_.10} parent=5 // pred_fallthru
      _
    %p666 = scmp.le.s32.totalorder 2, %s13
    // Predicated region
    $region53: #{_lambda_.10} parent=5 // pred_check
      %p667 = pneg %p666
    $region54: #{_lambda_.10} parent=5 // pred_check_branch
      %669 = sbr.rel (%p667) target = $region56
    $region55: #{_lambda_.10} parent=5 // pred_region
      %s670 = ssub.s32 %s13, 2
      // Predicated region
      $region57: #{_lambda_.10} parent=55 // pred_check
        %p671 = pneg %p194
      $region58: #{_lambda_.10} parent=55 // pred_check_branch
        %673 = sbr.rel (%p671) target = $region60
      $region59: #{_lambda_.10} parent=55 // pred_region
        %p674 = scmp.lt.s32.totalorder %s19, 1
        %s675 = scalar_select %p674, %s19, 1
        %s676 = smul.addr %s675, 2
        %s677 = scalar_lea.vmem %s7, %s676
      $region60: #{_lambda_.10} parent=55 // pred_fallthru
        _
    $region56: #{_lambda_.10} parent=5 // pred_fallthru
      _
  $region6: #{_lambda_.10} parent=0 // loop_footer
    %s17 = sadd.s32 1, %s13
  $region7: #{_lambda_.10} parent=0 // loop_footer_branch
    %12 = sbr.rel target = $region3
  $region8: #{_lambda_.10} parent=0 // loop_exit
    _

// kernel: _lambda_.13
$region0: #{_lambda_.13}
  #allocation0 [shape = 'u32[]', space=smem, size = 0x4, offset = 0x4, fixed_abs, tag = 'smem constant byte address 0x4 - core index']
  #allocation1 [shape = 'u32[144,128]{1,0:T(1,128)}', space=vmem, size = 0x12000, scoped, tag = 'internal scratch']
  #allocation2 [shape = 'f32[1,1]{1,0:T(1,128)S(1)}', space=vmem, size = 0x200, scoped, tag = 'scoped memory for _lambda_.13']
  %s0 = inlined_call_operand.vmem [shape: bf16[2,2,2,240], index: 0, kind: input, shape index: {}]
  %s1 = inlined_call_operand.vmem [shape: f32[240,64], index: 1, kind: input, shape index: {}]
  %s2 = inlined_call_operand.vmem [shape: f32[1,64], index: 2, kind: input, shape index: {}]
  %s3 = inlined_call_operand.vmem [shape: f32[64,1], index: 3, kind: input, shape index: {}]
  %s4 = inlined_call_operand.<no memory space> [shape: f32[1,1], index: 4, kind: input, shape index: {}]
  %s5 = inlined_call_operand.vmem [shape: f32[2,1], index: 5, kind: output, shape index: {}]
  %s6 = sld [smem:[#allocation0]]
  $region30: #{_lambda_.13} parent=0
    _
  %s8 = ssub.s32 1, %s6
  %s9 = scalar_select 0, %s8, %s6
  %v10 = vstv %s4
  %11 = vst [vmem:[#allocation2] sm:$0x1] %v10
  // Predicated region
  $region2: #{_lambda_.13} parent=0 // pred_check
    _
  $region3: #{_lambda_.13} parent=0 // pred_check_branch
    %13 = sbr.rel (0) target = $region5
  $region4: #{_lambda_.13} parent=0 // pred_region
    _
  $region5: #{_lambda_.13} parent=0 // pred_fallthru
    _
  // Predicated region
  $region6: #{_lambda_.13} parent=0 // pred_check
    _
  $region7: #{_lambda_.13} parent=0 // pred_check_branch
    %15 = sbr.rel (0) target = $region9
  $region8: #{_lambda_.13} parent=0 // pred_region
    _
  $region9: #{_lambda_.13} parent=0 // pred_fallthru
    _
  // Predicated region
  $region10: #{_lambda_.13} parent=0 // pred_check
    _
  $region11: #{_lambda_.13} parent=0 // pred_check_branch
    %17 = sbr.rel (0) target = $region13
  $region12: #{_lambda_.13} parent=0 // pred_region
    _
  $region13: #{_lambda_.13} parent=0 // pred_fallthru
    _
  // Predicated region
  $region14: #{_lambda_.13} parent=0 // pred_check
    _
  $region15: #{_lambda_.13} parent=0 // pred_check_branch
    %19 = sbr.rel (0) target = $region17
  $region16: #{_lambda_.13} parent=0 // pred_region
    _
  $region17: #{_lambda_.13} parent=0 // pred_fallthru
    _
  // Predicated region
  $region18: #{_lambda_.13} parent=0 // pred_check
    _
  $region19: #{_lambda_.13} parent=0 // pred_check_branch
    %21 = sbr.rel (0) target = $region21
  $region20: #{_lambda_.13} parent=0 // pred_region
    _
  $region21: #{_lambda_.13} parent=0 // pred_fallthru
    _
  %v22 = vld [vmem:[%s0] sm:$0x3]
  %v23 = vld [vmem:[%s0 + $0x2] sm:$0x3]
  %v24 = vld [vmem:[%s0 + $0x4] sm:$0x3]
  %v25 = vld [vmem:[%s0 + $0x6] sm:$0x3]
  %v26 = vunpack.c.l.bf16 %v22
  %v27 = vunpack.c.l.bf16 %v23
  %v28 = vunpack.c.l.bf16 %v24
  %v29 = vunpack.c.l.bf16 %v25
  %v34 = vcombine.low %v26, %v27
  %v36 = vunpack.c.l.s4 1983009808
  %v37 = vunpack.c.0.s8 %v36
  %v38 = vlaneseq
  %v39 = vshrl.u32 %v38, 7
  %v40 = vsub.s32 %v37, %v39
  %v41 = vrot.slane %v34, %v40
  %v42 = vcombine.high %v41, %v41
  %v43 = vcombine.low %v28, %v29
  %v45 = vunpack.c.l.s4 1983009808
  %v46 = vunpack.c.0.s8 %v45
  %v47 = vlaneseq
  %v48 = vshrl.u32 %v47, 7
  %v49 = vsub.s32 %v46, %v48
  %v50 = vrot.slane %v43, %v49
  %v51 = vcombine.high %v50, %v50
  %vm56 = vcmask 1043456
  %v57 = vsel %vm56, %v41, 0.0
  %v58 = vrot.slane %v57, 4
  %v59 = vadd.f32 %v57, %v58
  %v60 = vrot.slane %v59, 2
  %v61 = vadd.f32 %v59, %v60
  %v62 = vrot.slane %v61, 1
  %v63 = vadd.f32 %v61, %v62
  %vm64 = vcmask 912384
  %v65 = vsel %vm64, %v42, 0.0
  %v66 = vrot.slane %v65, 4
  %v67 = vadd.f32 %v65, %v66
  %v68 = vrot.slane %v67, 2
  %v69 = vadd.f32 %v67, %v68
  %v70 = vrot.slane %v69, 1
  %v71 = vadd.f32 %v69, %v70
  %v72 = vsel %vm56, %v50, 0.0
  %v73 = vrot.slane %v72, 4
  %v74 = vadd.f32 %v72, %v73
  %v75 = vrot.slane %v74, 2
  %v76 = vadd.f32 %v74, %v75
  %v77 = vrot.slane %v76, 1
  %v78 = vadd.f32 %v76, %v77
  %v79 = vsel %vm64, %v51, 0.0
  %v80 = vrot.slane %v79, 4
  %v81 = vadd.f32 %v79, %v80
  %v82 = vrot.slane %v81, 2
  %v83 = vadd.f32 %v81, %v82
  %v84 = vrot.slane %v83, 1
  %v85 = vadd.f32 %v83, %v84
  %v86 = vrcp.pop 4.0
  %v87 = vmul.f32 %v63, %v86
  %v88 = vmul.f32 %v71, %v86
  %v89 = vmul.f32 %v78, %v86
  %v90 = vmul.f32 %v85, %v86
  %v91 = vld [vmem:[%s1] sm:$0xff]
  %v92 = vld [vmem:[%s1 + $0x8] sm:$0xff]
  %v93 = vld [vmem:[%s1 + $0x10] sm:$0xff]
  %v94 = vld [vmem:[%s1 + $0x18] sm:$0xff]
  %v95 = vld [vmem:[%s1 + $0x20] sm:$0xff]
  %v96 = vld [vmem:[%s1 + $0x28] sm:$0xff]
  %v97 = vld [vmem:[%s1 + $0x30] sm:$0xff]
  %v98 = vld [vmem:[%s1 + $0x38] sm:$0xff]
  %v99 = vld [vmem:[%s1 + $0x40] sm:$0xff]
  %v100 = vld [vmem:[%s1 + $0x48] sm:$0xff]
  %v101 = vld [vmem:[%s1 + $0x50] sm:$0xff]
  %v102 = vld [vmem:[%s1 + $0x58] sm:$0xff]
  %v103 = vld [vmem:[%s1 + $0x60] sm:$0xff]
  %v104 = vld [vmem:[%s1 + $0x68] sm:$0xff]
  %v105 = vld [vmem:[%s1 + $0x70] sm:$0xff]
  %v106 = vld [vmem:[%s1 + $0x78] sm:$0xff]
  %v107 = vld [vmem:[%s1 + $0x80] sm:$0xff]
  %v108 = vld [vmem:[%s1 + $0x88] sm:$0xff]
  %v109 = vld [vmem:[%s1 + $0x90] sm:$0xff]
  %v110 = vld [vmem:[%s1 + $0x98] sm:$0xff]
  %v111 = vld [vmem:[%s1 + $0xa0] sm:$0xff]
  %v112 = vld [vmem:[%s1 + $0xa8] sm:$0xff]
  %v113 = vld [vmem:[%s1 + $0xb0] sm:$0xff]
  %v114 = vld [vmem:[%s1 + $0xb8] sm:$0xff]
  %v115 = vld [vmem:[%s1 + $0xc0] sm:$0xff]
  %v116 = vld [vmem:[%s1 + $0xc8] sm:$0xff]
  %v117 = vld [vmem:[%s1 + $0xd0] sm:$0xff]
  %v118 = vld [vmem:[%s1 + $0xd8] sm:$0xff]
  %v119 = vld [vmem:[%s1 + $0xe0] sm:$0xff]
  %v120 = vld [vmem:[%s1 + $0xe8] sm:$0xff]
  %v121 = vld [vmem:[%s2] sm:$0x1]
  %v123 = vlaneseq
  %v124 = vshrl.u32 %v123, 7
  %v125 = vsub.s32 0, %v124
  %v126 = vrot.slane %v121, %v125
  %vm132 = vcmask 1041409
  %v133 = vsel %vm132, %v89, %v87
  %v134 = vsel %vm132, %v90, %v88
  %vm136 = vcmask 916480
  %v137 = vsel %vm136, %v134, 0
  %139 = vmatprep.subr.mxu0 0.0
  %140 = vmatpush1.msra.mxu0 %v91
  %141 = vmatprep.subr.mxu0 0.0
  %142 = vmatpush1.msra.mxu0 %v92
  %143 = vmatprep.subr.mxu0 0.0
  %144 = vmatpush1.msra.mxu0 %v93
  %145 = vmatprep.subr.mxu0 0.0
  %146 = vmatpush1.msra.mxu0 %v94
  %147 = vmatprep.subr.mxu0 0.0
  %148 = vmatpush1.msra.mxu0 %v95
  %149 = vmatprep.subr.mxu0 0.0
  %150 = vmatpush1.msra.mxu0 %v96
  %151 = vmatprep.subr.mxu0 0.0
  %152 = vmatpush1.msra.mxu0 %v97
  %153 = vmatprep.subr.mxu0 0.0
  %154 = vmatpush1.msra.mxu0 %v98
  %155 = vmatprep.subr.mxu0 0.0
  %156 = vmatpush1.msra.mxu0 %v99
  %157 = vmatprep.subr.mxu0 0.0
  %158 = vmatpush1.msra.mxu0 %v100
  %159 = vmatprep.subr.mxu0 0.0
  %160 = vmatpush1.msra.mxu0 %v101
  %161 = vmatprep.subr.mxu0 0.0
  %162 = vmatpush1.msra.mxu0 %v102
  %163 = vmatprep.subr.mxu0 0.0
  %164 = vmatpush1.msra.mxu0 %v103
  %165 = vmatprep.subr.mxu0 0.0
  %166 = vmatpush1.msra.mxu0 %v104
  %167 = vmatprep.subr.mxu0 0.0
  %168 = vmatpush1.msra.mxu0 %v105
  %169 = vmatprep.subr.mxu0 0.0
  %170 = vmatpush1.msra.mxu0 %v106
  %171 = vmatprep.subr.mxu0 0.0
  %172 = vmatpush1.msra.mxu0 %v107
  %173 = vmatprep.subr.mxu0 0.0
  %174 = vmatpush1.msra.mxu0 %v108
  %175 = vmatprep.subr.mxu0 0.0
  %176 = vmatpush1.msra.mxu0 %v109
  %177 = vmatprep.subr.mxu0 0.0
  %178 = vmatpush1.msra.mxu0 %v110
  %179 = vmatprep.subr.mxu0 0.0
  %180 = vmatpush1.msra.mxu0 %v111
  %181 = vmatprep.subr.mxu0 0.0
  %182 = vmatpush1.msra.mxu0 %v112
  %183 = vmatprep.subr.mxu0 0.0
  %184 = vmatpush1.msra.mxu0 %v113
  %185 = vmatprep.subr.mxu0 0.0
  %186 = vmatpush1.msra.mxu0 %v114
  %187 = vmatprep.subr.mxu0 0.0
  %188 = vmatpush1.msra.mxu0 %v115
  %189 = vmatprep.subr.mxu0 0.0
  %190 = vmatpush1.msra.mxu0 %v116
  %191 = vmatprep.subr.mxu0 0.0
  %192 = vmatpush1.msra.mxu0 %v117
  %193 = vmatprep.subr.mxu0 0.0
  %194 = vmatpush1.msra.mxu0 %v118
  %195 = vmatprep.subr.mxu0 0.0
  %196 = vmatpush1.msra.mxu0 %v119
  %197 = vmatprep.subr.mxu0 0.0
  %198 = vmatpush1.msra.mxu0 %v120
  %199 = vmatprep.subr.mxu0 0.0
  %200 = vmatpush1.msra.mxu0 0.0
  %201 = vmatprep.subr.mxu0 0.0
  %202 = vmatpush1.msra.mxu0 0.0
  %203 = vmatprep.mubr.f32.mxu0 %v137
  %204 = vmatmul.mubr.f32.gmra.mrb[0].mxu0 %v133
  %v205 = vpop.f32.mrb[0].mxu0
  %v206 = vadd.f32 %v126, %v205
  %v207 = vpop.f32.mrb[0].mxu0
  %208 = vdwg.mxu0
  %v209 = vadd.f32 %v206, 3.0
  %v210 = vmax.f32 %v209, 0.0
  %v211 = vmin.f32 %v210, 6.0
  %v212 = vmul.f32 %v206, %v211
  %v213 = vmul.f32 %v212, 0.16666667
  %v214 = vld [vmem:[%s3] sm:$0xff]
  %v215 = vld [vmem:[%s3 + $0x8] sm:$0xff]
  %v216 = vld [vmem:[%s3 + $0x10] sm:$0xff]
  %v217 = vld [vmem:[%s3 + $0x18] sm:$0xff]
  %v218 = vld [vmem:[%s3 + $0x20] sm:$0xff]
  %v219 = vld [vmem:[%s3 + $0x28] sm:$0xff]
  %v220 = vld [vmem:[%s3 + $0x30] sm:$0xff]
  %v221 = vld [vmem:[%s3 + $0x38] sm:$0xff]
  %v222 = vld [vmem:[#allocation2] sm:$0x1]
  %v224 = vlaneseq
  %v225 = vshrl.u32 %v224, 7
  %v226 = vsub.s32 0, %v225
  %v227 = vrot.slane %v222, %v226
  %vm229 = vcmask 523264
  %v231 = vsel %vm229, %v213, 0
  %233 = vmatprep.subr.mxu0 0.0
  %234 = vmatpush1.msra.mxu0 %v214
  %235 = vmatprep.subr.mxu0 0.0
  %236 = vmatpush1.msra.mxu0 %v215
  %237 = vmatprep.subr.mxu0 0.0
  %238 = vmatpush1.msra.mxu0 %v216
  %239 = vmatprep.subr.mxu0 0.0
  %240 = vmatpush1.msra.mxu0 %v217
  %241 = vmatprep.subr.mxu0 0.0
  %242 = vmatpush1.msra.mxu0 %v218
  %243 = vmatprep.subr.mxu0 0.0
  %244 = vmatpush1.msra.mxu0 %v219
  %245 = vmatprep.subr.mxu0 0.0
  %246 = vmatpush1.msra.mxu0 %v220
  %247 = vmatprep.subr.mxu0 0.0
  %248 = vmatpush1.msra.mxu0 %v221
  %249 = vmatprep.subr.mxu0 0.0
  %250 = vmatpush1.msra.mxu0 0.0
  %251 = vmatprep.subr.mxu0 0.0
  %252 = vmatpush1.msra.mxu0 0.0
  %253 = vmatprep.subr.mxu0 0.0
  %254 = vmatpush1.msra.mxu0 0.0
  %255 = vmatprep.subr.mxu0 0.0
  %256 = vmatpush1.msra.mxu0 0.0
  %257 = vmatprep.subr.mxu0 0.0
  %258 = vmatpush1.msra.mxu0 0.0
  %259 = vmatprep.subr.mxu0 0.0
  %260 = vmatpush1.msra.mxu0 0.0
  %261 = vmatprep.subr.mxu0 0.0
  %262 = vmatpush1.msra.mxu0 0.0
  %263 = vmatprep.subr.mxu0 0.0
  %264 = vmatpush1.msra.mxu0 0.0
  %265 = vmatprep.subr.mxu0 0.0
  %266 = vmatpush1.msra.mxu0 0.0
  %267 = vmatprep.subr.mxu0 0.0
  %268 = vmatpush1.msra.mxu0 0.0
  %269 = vmatprep.subr.mxu0 0.0
  %270 = vmatpush1.msra.mxu0 0.0
  %271 = vmatprep.subr.mxu0 0.0
  %272 = vmatpush1.msra.mxu0 0.0
  %273 = vmatprep.subr.mxu0 0.0
  %274 = vmatpush1.msra.mxu0 0.0
  %275 = vmatprep.subr.mxu0 0.0
  %276 = vmatpush1.msra.mxu0 0.0
  %277 = vmatprep.subr.mxu0 0.0
  %278 = vmatpush1.msra.mxu0 0.0
  %279 = vmatprep.subr.mxu0 0.0
  %280 = vmatpush1.msra.mxu0 0.0
  %281 = vmatprep.subr.mxu0 0.0
  %282 = vmatpush1.msra.mxu0 0.0
  %283 = vmatprep.subr.mxu0 0.0
  %284 = vmatpush1.msra.mxu0 0.0
  %285 = vmatprep.subr.mxu0 0.0
  %286 = vmatpush1.msra.mxu0 0.0
  %287 = vmatprep.subr.mxu0 0.0
  %288 = vmatpush1.msra.mxu0 0.0
  %289 = vmatprep.subr.mxu0 0.0
  %290 = vmatpush1.msra.mxu0 0.0
  %291 = vmatprep.subr.mxu0 0.0
  %292 = vmatpush1.msra.mxu0 0.0
  %293 = vmatprep.subr.mxu0 0.0
  %294 = vmatpush1.msra.mxu0 0.0
  %295 = vmatprep.subr.mxu0 0.0
  %296 = vmatpush1.msra.mxu0 0.0
  %297 = vmatprep.mubr.f32.mxu0 0.0
  %298 = vmatmul.mubr.f32.gmra.mrb[0].mxu0 %v231
  %v299 = vpop.f32.mrb[0].mxu0
  %v300 = vadd.f32 %v227, %v299
  %v301 = vpop.f32.mrb[0].mxu0
  %302 = vdwg.mxu0
  %vm303 = vcmask 1024
  %304 = vst.msk [vmem:[%s5] sm:$0x3] %vm303, %v300
  // Predicated region
  $region22: #{_lambda_.13} parent=0 // pred_check
    _
  $region23: #{_lambda_.13} parent=0 // pred_check_branch
    %306 = sbr.rel (0) target = $region25
  $region24: #{_lambda_.13} parent=0 // pred_region
    _
  $region25: #{_lambda_.13} parent=0 // pred_fallthru
    _
  // Predicated region
  $region26: #{_lambda_.13} parent=0 // pred_check
    _
  $region27: #{_lambda_.13} parent=0 // pred_check_branch
    %308 = sbr.rel (0) target = $region29
  $region28: #{_lambda_.13} parent=0 // pred_region
    _
  $region29: #{_lambda_.13} parent=0 // pred_fallthru
    _

// kernel: _lambda_.11
$region0: #{_lambda_.11}
  #allocation0 [shape = 'u32[]', space=smem, size = 0x4, offset = 0x4, fixed_abs, tag = 'smem constant byte address 0x4 - core index']
  #allocation1 [shape = 'u32[144,128]{1,0:T(1,128)}', space=vmem, size = 0x12000, scoped, tag = 'internal scratch']
  #allocation2 [shape = 'f32[6,6,96]{2,1,0:T(8,128)}', space=vmem, size = 0x6000, scoped, tag = 'scratch operand']
  %s0 = inlined_call_operand.vmem [shape: bf16[2,2,2,24], index: 0, kind: input, shape index: {}]
  %s1 = inlined_call_operand.vmem [shape: bf16[24,96], index: 1, kind: input, shape index: {}]
  %s2 = inlined_call_operand.vmem [shape: f32[1,96], index: 2, kind: input, shape index: {}]
  %s3 = inlined_call_operand.vmem [shape: f32[25,1,1,96], index: 3, kind: input, shape index: {}]
  %s4 = inlined_call_operand.vmem [shape: f32[1,1,96], index: 4, kind: input, shape index: {}]
  %s5 = inlined_call_operand.vmem [shape: f32[96,24], index: 5, kind: input, shape index: {}]
  %s6 = inlined_call_operand.vmem [shape: f32[1,24], index: 6, kind: input, shape index: {}]
  %s7 = inlined_call_operand.vmem [shape: f32[24,96], index: 7, kind: input, shape index: {}]
  %s8 = inlined_call_operand.vmem [shape: f32[1,96], index: 8, kind: input, shape index: {}]
  %s9 = inlined_call_operand.vmem [shape: bf16[96,40], index: 9, kind: input, shape index: {}]
  %s10 = inlined_call_operand.vmem [shape: f32[1,40], index: 10, kind: input, shape index: {}]
  %s11 = inlined_call_operand.vmem [shape: bf16[2,2,2,40], index: 11, kind: output, shape index: {}]
  %s12 = sld [smem:[#allocation0]]
  $region77: #{_lambda_.11} parent=0
    _
  %s14 = ssub.s32 1, %s12
  %s15 = scalar_select 0, %s14, %s12
  loop: start=0, step=1, limit=4
  $region2: #{_lambda_.11} parent=0 // loop_pre_header
    _
  $region3: #{_lambda_.11} parent=0 // loop_header
    %s17 = sphi 0, %s21
    %p18 = scmp.ge.s32.totalorder %s17, 4
    %s27 = sphi 0, %s29
    %s30 = sphi 0, %s27
    %s31 = sphi 0, %s30
    %s47 = sphi 0, %s31
    %s51 = sphi 0, %s51
    %s53 = sphi 0, %s51
    %s54 = sphi 0, %s53
    %s68 = sphi 0, %s54
    %s72 = sphi 0, %s72
    %s74 = sphi 0, %s72
    %s75 = sphi 0, %s74
    %s89 = sphi 0, %s75
    %s93 = sphi 0, %s93
    %s95 = sphi 0, %s93
    %s96 = sphi 0, %s95
    %s110 = sphi 0, %s96
    %s114 = sphi 0, %s114
    %s116 = sphi 0, %s114
    %s117 = sphi 0, %s116
    %s131 = sphi 0, %s117
    %s135 = sphi 0, %s135
    %s137 = sphi 0, %s135
    %s138 = sphi 0, %s137
    %s152 = sphi 0, %s138
    %s156 = sphi 0, %s156
    %s158 = sphi 0, %s156
    %s159 = sphi 0, %s158
    %s173 = sphi 0, %s159
    %s177 = sphi 0, %s177
    %s179 = sphi 0, %s177
    %s180 = sphi 0, %s179
    %s194 = sphi 0, %s180
    %s198 = sphi 0, %s198
    %s200 = sphi 0, %s198
    %s201 = sphi 0, %s200
    %s215 = sphi 0, %s201
    %s219 = sphi 0, %s219
    %s221 = sphi 0, %s219
    %s222 = sphi 0, %s221
    %s236 = sphi 0, %s222
    %s240 = sphi 0, %s240
    %s242 = sphi 0, %s240
    %s243 = sphi 0, %s242
    %s257 = sphi 0, %s243
    %s263 = sphi 0, %s265
    %s266 = sphi 0, %s263
    %s267 = sphi 0, %s266
    %s283 = sphi 0, %s267
  $region4: #{_lambda_.11} parent=0 // loop_header_branch
    %20 = sbr.rel (%p18) target = $region8
  $region5: #{_lambda_.11} parent=0 // loop_body
    %s22 = ssub.s32 %s17, 1
    %s23 = ssub.s32 %s17, 2
    %s24 = sadd.s32 %s17, 1
    %s25 = ssub.s32 %s17, %s24
    %p26 = scmp.eq.s32.totalorder %s25, 0
    %s28 = sadd.s32 %s27, 1
    %s29 = scalar_select %p26, %s27, %s28
    %p32 = pneg %p26
    %p33 = scmp.eq.s32.totalorder %s17, 1
    %p34 = por %p32, %p33
    %p35 = scmp.ne.s32.totalorder %s27, %s30
    %p36 = scmp.eq.s32.totalorder %s17, 0
    %p37 = por %p35, %p36
    %p38 = scmp.ne.s32.totalorder %s27, %s30
    %p39 = scmp.eq.s32.totalorder %s22, 1
    %p40 = por %p38, %p39
    %p41 = scmp.ne.s32.totalorder %s30, %s31
    %p42 = scmp.eq.s32.totalorder %s22, 0
    %p43 = por %p41, %p42
    %p44 = scmp.ne.s32.totalorder %s30, %s31
    %p45 = scmp.eq.s32.totalorder %s23, 1
    %p46 = por %p44, %p45
    %p48 = scmp.ne.s32.totalorder %s31, %s47
    %p49 = scmp.eq.s32.totalorder %s23, 0
    %p50 = por %p48, %p49
    %s52 = sadd.s32 %s51, 1
    %p55 = scmp.eq.s32.totalorder %s17, 1
    %p56 = scmp.ne.s32.totalorder %s51, %s53
    %p57 = scmp.eq.s32.totalorder %s17, 0
    %p58 = por %p56, %p57
    %p59 = scmp.ne.s32.totalorder %s51, %s53
    %p60 = scmp.eq.s32.totalorder %s22, 1
    %p61 = por %p59, %p60
    %p62 = scmp.ne.s32.totalorder %s53, %s54
    %p63 = scmp.eq.s32.totalorder %s22, 0
    %p64 = por %p62, %p63
    %p65 = scmp.ne.s32.totalorder %s53, %s54
    %p66 = scmp.eq.s32.totalorder %s23, 1
    %p67 = por %p65, %p66
    %p69 = scmp.ne.s32.totalorder %s54, %s68
    %p70 = scmp.eq.s32.totalorder %s23, 0
    %p71 = por %p69, %p70
    %s73 = sadd.s32 %s72, 1
    %p76 = scmp.eq.s32.totalorder %s17, 1
    %p77 = scmp.ne.s32.totalorder %s72, %s74
    %p78 = scmp.eq.s32.totalorder %s17, 0
    %p79 = por %p77, %p78
    %p80 = scmp.ne.s32.totalorder %s72, %s74
    %p81 = scmp.eq.s32.totalorder %s22, 1
    %p82 = por %p80, %p81
    %p83 = scmp.ne.s32.totalorder %s74, %s75
    %p84 = scmp.eq.s32.totalorder %s22, 0
    %p85 = por %p83, %p84
    %p86 = scmp.ne.s32.totalorder %s74, %s75
    %p87 = scmp.eq.s32.totalorder %s23, 1
    %p88 = por %p86, %p87
    %p90 = scmp.ne.s32.totalorder %s75, %s89
    %p91 = scmp.eq.s32.totalorder %s23, 0
    %p92 = por %p90, %p91
    %s94 = sadd.s32 %s93, 1
    %p97 = scmp.eq.s32.totalorder %s17, 1
    %p98 = scmp.ne.s32.totalorder %s93, %s95
    %p99 = scmp.eq.s32.totalorder %s17, 0
    %p100 = por %p98, %p99
    %p101 = scmp.ne.s32.totalorder %s93, %s95
    %p102 = scmp.eq.s32.totalorder %s22, 1
    %p103 = por %p101, %p102
    %p104 = scmp.ne.s32.totalorder %s95, %s96
    %p105 = scmp.eq.s32.totalorder %s22, 0
    %p106 = por %p104, %p105
    %p107 = scmp.ne.s32.totalorder %s95, %s96
    %p108 = scmp.eq.s32.totalorder %s23, 1
    %p109 = por %p107, %p108
    %p111 = scmp.ne.s32.totalorder %s96, %s110
    %p112 = scmp.eq.s32.totalorder %s23, 0
    %p113 = por %p111, %p112
    %s115 = sadd.s32 %s114, 1
    %p118 = scmp.eq.s32.totalorder %s17, 1
    %p119 = scmp.ne.s32.totalorder %s114, %s116
    %p120 = scmp.eq.s32.totalorder %s17, 0
    %p121 = por %p119, %p120
    %p122 = scmp.ne.s32.totalorder %s114, %s116
    %p123 = scmp.eq.s32.totalorder %s22, 1
    %p124 = por %p122, %p123
    %p125 = scmp.ne.s32.totalorder %s116, %s117
    %p126 = scmp.eq.s32.totalorder %s22, 0
    %p127 = por %p125, %p126
    %p128 = scmp.ne.s32.totalorder %s116, %s117
    %p129 = scmp.eq.s32.totalorder %s23, 1
    %p130 = por %p128, %p129
    %p132 = scmp.ne.s32.totalorder %s117, %s131
    %p133 = scmp.eq.s32.totalorder %s23, 0
    %p134 = por %p132, %p133
    %s136 = sadd.s32 %s135, 1
    %p139 = scmp.eq.s32.totalorder %s17, 1
    %p140 = scmp.ne.s32.totalorder %s135, %s137
    %p141 = scmp.eq.s32.totalorder %s17, 0
    %p142 = por %p140, %p141
    %p143 = scmp.ne.s32.totalorder %s135, %s137
    %p144 = scmp.eq.s32.totalorder %s22, 1
    %p145 = por %p143, %p144
    %p146 = scmp.ne.s32.totalorder %s137, %s138
    %p147 = scmp.eq.s32.totalorder %s22, 0
    %p148 = por %p146, %p147
    %p149 = scmp.ne.s32.totalorder %s137, %s138
    %p150 = scmp.eq.s32.totalorder %s23, 1
    %p151 = por %p149, %p150
    %p153 = scmp.ne.s32.totalorder %s138, %s152
    %p154 = scmp.eq.s32.totalorder %s23, 0
    %p155 = por %p153, %p154
    %s157 = sadd.s32 %s156, 1
    %p160 = scmp.eq.s32.totalorder %s17, 1
    %p161 = scmp.ne.s32.totalorder %s156, %s158
    %p162 = scmp.eq.s32.totalorder %s17, 0
    %p163 = por %p161, %p162
    %p164 = scmp.ne.s32.totalorder %s156, %s158
    %p165 = scmp.eq.s32.totalorder %s22, 1
    %p166 = por %p164, %p165
    %p167 = scmp.ne.s32.totalorder %s158, %s159
    %p168 = scmp.eq.s32.totalorder %s22, 0
    %p169 = por %p167, %p168
    %p170 = scmp.ne.s32.totalorder %s158, %s159
    %p171 = scmp.eq.s32.totalorder %s23, 1
    %p172 = por %p170, %p171
    %p174 = scmp.ne.s32.totalorder %s159, %s173
    %p175 = scmp.eq.s32.totalorder %s23, 0
    %p176 = por %p174, %p175
    %s178 = sadd.s32 %s177, 1
    %p181 = scmp.eq.s32.totalorder %s17, 1
    %p182 = scmp.ne.s32.totalorder %s177, %s179
    %p183 = scmp.eq.s32.totalorder %s17, 0
    %p184 = por %p182, %p183
    %p185 = scmp.ne.s32.totalorder %s177, %s179
    %p186 = scmp.eq.s32.totalorder %s22, 1
    %p187 = por %p185, %p186
    %p188 = scmp.ne.s32.totalorder %s179, %s180
    %p189 = scmp.eq.s32.totalorder %s22, 0
    %p190 = por %p188, %p189
    %p191 = scmp.ne.s32.totalorder %s179, %s180
    %p192 = scmp.eq.s32.totalorder %s23, 1
    %p193 = por %p191, %p192
    %p195 = scmp.ne.s32.totalorder %s180, %s194
    %p196 = scmp.eq.s32.totalorder %s23, 0
    %p197 = por %p195, %p196
    %s199 = sadd.s32 %s198, 1
    %p202 = scmp.eq.s32.totalorder %s17, 1
    %p203 = scmp.ne.s32.totalorder %s198, %s200
    %p204 = scmp.eq.s32.totalorder %s17, 0
    %p205 = por %p203, %p204
    %p206 = scmp.ne.s32.totalorder %s198, %s200
    %p207 = scmp.eq.s32.totalorder %s22, 1
    %p208 = por %p206, %p207
    %p209 = scmp.ne.s32.totalorder %s200, %s201
    %p210 = scmp.eq.s32.totalorder %s22, 0
    %p211 = por %p209, %p210
    %p212 = scmp.ne.s32.totalorder %s200, %s201
    %p213 = scmp.eq.s32.totalorder %s23, 1
    %p214 = por %p212, %p213
    %p216 = scmp.ne.s32.totalorder %s201, %s215
    %p217 = scmp.eq.s32.totalorder %s23, 0
    %p218 = por %p216, %p217
    %s220 = sadd.s32 %s219, 1
    %p223 = scmp.eq.s32.totalorder %s17, 1
    %p224 = scmp.ne.s32.totalorder %s219, %s221
    %p225 = scmp.eq.s32.totalorder %s17, 0
    %p226 = por %p224, %p225
    %p227 = scmp.ne.s32.totalorder %s219, %s221
    %p228 = scmp.eq.s32.totalorder %s22, 1
    %p229 = por %p227, %p228
    %p230 = scmp.ne.s32.totalorder %s221, %s222
    %p231 = scmp.eq.s32.totalorder %s22, 0
    %p232 = por %p230, %p231
    %p233 = scmp.ne.s32.totalorder %s221, %s222
    %p234 = scmp.eq.s32.totalorder %s23, 1
    %p235 = por %p233, %p234
    %p237 = scmp.ne.s32.totalorder %s222, %s236
    %p238 = scmp.eq.s32.totalorder %s23, 0
    %p239 = por %p237, %p238
    %s241 = sadd.s32 %s240, 1
    %p244 = scmp.eq.s32.totalorder %s17, 1
    %p245 = scmp.ne.s32.totalorder %s240, %s242
    %p246 = scmp.eq.s32.totalorder %s17, 0
    %p247 = por %p245, %p246
    %p248 = scmp.ne.s32.totalorder %s240, %s242
    %p249 = scmp.eq.s32.totalorder %s22, 1
    %p250 = por %p248, %p249
    %p251 = scmp.ne.s32.totalorder %s242, %s243
    %p252 = scmp.eq.s32.totalorder %s22, 0
    %p253 = por %p251, %p252
    %p254 = scmp.ne.s32.totalorder %s242, %s243
    %p255 = scmp.eq.s32.totalorder %s23, 1
    %p256 = por %p254, %p255
    %p258 = scmp.ne.s32.totalorder %s243, %s257
    %p259 = scmp.eq.s32.totalorder %s23, 0
    %p260 = por %p258, %p259
    %s261 = ssub.s32 %s17, %s24
    %p262 = scmp.eq.s32.totalorder %s261, 0
    %s264 = sadd.s32 %s263, 1
    %s265 = scalar_select %p262, %s263, %s264
    %p268 = pneg %p262
    %p269 = scmp.eq.s32.totalorder %s17, 1
    %p270 = por %p268, %p269
    %p271 = scmp.ne.s32.totalorder %s263, %s266
    %p272 = scmp.eq.s32.totalorder %s17, 0
    %p273 = por %p271, %p272
    %p274 = scmp.ne.s32.totalorder %s263, %s266
    %p275 = scmp.eq.s32.totalorder %s22, 1
    %p276 = por %p274, %p275
    %p277 = scmp.ne.s32.totalorder %s266, %s267
    %p278 = scmp.eq.s32.totalorder %s22, 0
    %p279 = por %p277, %p278
    %p280 = scmp.ne.s32.totalorder %s266, %s267
    %p281 = scmp.eq.s32.totalorder %s23, 1
    %p282 = por %p280, %p281
    %p284 = scmp.ne.s32.totalorder %s267, %s283
    %p285 = scmp.eq.s32.totalorder %s23, 0
    %p286 = por %p284, %p285
    %p287 = scmp.le.s32.totalorder 1, %s17
    %p288 = scmp.lt.s32.totalorder %s17, 3
    %p289 = pnand %p287, %p288
    %p290 = pneg %p289
    // Predicated region
    $region9: #{_lambda_.11} parent=5 // pred_check
      _
    $region10: #{_lambda_.11} parent=5 // pred_check_branch
      %292 = sbr.rel (%p289) target = $region12
    $region11: #{_lambda_.11} parent=5 // pred_region
      %s293 = ssub.s32 %s17, 1
      // Predicated region
      $region13: #{_lambda_.11} parent=11 // pred_check
        %p294 = pneg %p64
      $region14: #{_lambda_.11} parent=11 // pred_check_branch
        %296 = sbr.rel (%p294) target = $region16
      $region15: #{_lambda_.11} parent=11 // pred_region
        _
      $region16: #{_lambda_.11} parent=11 // pred_fallthru
        _
      // Predicated region
      $region17: #{_lambda_.11} parent=11 // pred_check
        %p297 = pneg %p85
      $region18: #{_lambda_.11} parent=11 // pred_check_branch
        %299 = sbr.rel (%p297) target = $region20
      $region19: #{_lambda_.11} parent=11 // pred_region
        _
      $region20: #{_lambda_.11} parent=11 // pred_fallthru
        _
      // Predicated region
      $region21: #{_lambda_.11} parent=11 // pred_check
        %p300 = pneg %p106
      $region22: #{_lambda_.11} parent=11 // pred_check_branch
        %302 = sbr.rel (%p300) target = $region24
      $region23: #{_lambda_.11} parent=11 // pred_region
        _
      $region24: #{_lambda_.11} parent=11 // pred_fallthru
        _
      // Predicated region
      $region25: #{_lambda_.11} parent=11 // pred_check
        %p303 = pneg %p127
      $region26: #{_lambda_.11} parent=11 // pred_check_branch
        %305 = sbr.rel (%p303) target = $region28
      $region27: #{_lambda_.11} parent=11 // pred_region
        _
      $region28: #{_lambda_.11} parent=11 // pred_fallthru
        _
      // Predicated region
      $region29: #{_lambda_.11} parent=11 // pred_check
        %p306 = pneg %p148
      $region30: #{_lambda_.11} parent=11 // pred_check_branch
        %308 = sbr.rel (%p306) target = $region32
      $region31: #{_lambda_.11} parent=11 // pred_region
        _
      $region32: #{_lambda_.11} parent=11 // pred_fallthru
        _
      // Predicated region
      $region33: #{_lambda_.11} parent=11 // pred_check
        %p309 = pneg %p169
      $region34: #{_lambda_.11} parent=11 // pred_check_branch
        %311 = sbr.rel (%p309) target = $region36
      $region35: #{_lambda_.11} parent=11 // pred_region
        _
      $region36: #{_lambda_.11} parent=11 // pred_fallthru
        _
      // Predicated region
      $region37: #{_lambda_.11} parent=11 // pred_check
        %p312 = pneg %p190
      $region38: #{_lambda_.11} parent=11 // pred_check_branch
        %314 = sbr.rel (%p312) target = $region40
      $region39: #{_lambda_.11} parent=11 // pred_region
        _
      $region40: #{_lambda_.11} parent=11 // pred_fallthru
        _
      // Predicated region
      $region41: #{_lambda_.11} parent=11 // pred_check
        %p315 = pneg %p211
      $region42: #{_lambda_.11} parent=11 // pred_check_branch
        %317 = sbr.rel (%p315) target = $region44
      $region43: #{_lambda_.11} parent=11 // pred_region
        _
      $region44: #{_lambda_.11} parent=11 // pred_fallthru
        _
      // Predicated region
      $region45: #{_lambda_.11} parent=11 // pred_check
        %p318 = pneg %p232
      $region46: #{_lambda_.11} parent=11 // pred_check_branch
        %320 = sbr.rel (%p318) target = $region48
      $region47: #{_lambda_.11} parent=11 // pred_region
        _
      $region48: #{_lambda_.11} parent=11 // pred_fallthru
        _
      // Predicated region
      $region49: #{_lambda_.11} parent=11 // pred_check
        %p321 = pneg %p253
      $region50: #{_lambda_.11} parent=11 // pred_check_branch
        %323 = sbr.rel (%p321) target = $region52
      $region51: #{_lambda_.11} parent=11 // pred_region
        _
      $region52: #{_lambda_.11} parent=11 // pred_fallthru
        _
    $region12: #{_lambda_.11} parent=5 // pred_fallthru
      _
    %p324 = scmp.lt.s32.totalorder %s17, 2
    // Predicated region
    $region53: #{_lambda_.11} parent=5 // pred_check
      %p325 = pneg %p324
    $region54: #{_lambda_.11} parent=5 // pred_check_branch
      %327 = sbr.rel (%p325) target = $region56
    $region55: #{_lambda_.11} parent=5 // pred_region
      // Predicated region
      $region57: #{_lambda_.11} parent=55 // pred_check
        %p328 = pneg %p37
      $region58: #{_lambda_.11} parent=55 // pred_check_branch
        %330 = sbr.rel (%p328) target = $region60
      $region59: #{_lambda_.11} parent=55 // pred_region
        %p331 = scmp.lt.s32.totalorder %s17, 1
        %s332 = scalar_select %p331, %s17, 1
        %s333 = smul.addr %s332, 2
        %s334 = scalar_lea.vmem %s0, %s333
      $region60: #{_lambda_.11} parent=55 // pred_fallthru
        _
    $region56: #{_lambda_.11} parent=5 // pred_fallthru
      _
    %p335 = scmp.le.s32.totalorder 1, %s17
    %p336 = scmp.lt.s32.totalorder %s17, 3
    %p337 = pnand %p335, %p336
    %p338 = pneg %p337
    // Predicated region
    $region61: #{_lambda_.11} parent=5 // pred_check
      _
    $region62: #{_lambda_.11} parent=5 // pred_check_branch
      %340 = sbr.rel (%p337) target = $region64
    $region63: #{_lambda_.11} parent=5 // pred_region
      %s341 = ssub.s32 %s17, 1
      %p342 = scmp.lt.s32.totalorder %s22, 1
      %s343 = scalar_select %p342, %s22, 1
      %s344 = smul.addr %s343, 2
      %s345 = scalar_lea.vmem %s0, %s344
      %p346 = pneg %p43
      %p347 = pneg %p40
      %p348 = pneg %p64
      %p349 = pneg %p61
      %p350 = pneg %p85
      %p351 = pneg %p82
      %p352 = pneg %p106
      %p353 = pneg %p103
      %p354 = pneg %p127
      %p355 = pneg %p124
      %p356 = pneg %p148
      %p357 = pneg %p145
      %p358 = pneg %p169
      %p359 = pneg %p166
      %p360 = pneg %p190
      %p361 = pneg %p187
      %p362 = pneg %p211
      %p363 = pneg %p208
      %p364 = pneg %p232
      %p365 = pneg %p229
      %p366 = pneg %p253
      %p367 = pneg %p250
      %p368 = pneg %p279
      %p369 = pneg %p276
      %p370 = scmp.lt.s32.totalorder %s22, 1
      %s371 = scalar_select %p370, %s22, 1
      %s372 = smul.addr %s371, 2
      %s373 = scalar_lea.vmem %s11, %s372
      %p374 = scmp.lt.s32.totalorder %s22, 1
      %s375 = scalar_select %p374, %s22, 1
      %s376 = smul.addr %s375, 2
      %s377 = scalar_lea.vmem %s0, %s376
      %p378 = scmp.lt.s32.totalorder %s22, 1
      %s379 = scalar_select %p378, %s22, 1
      %s380 = smul.addr %s379, 2
      %s381 = scalar_lea.vmem %s11, %s380
      %v383 = vld [vmem:[%s377] sm:$0x1]
      %v384 = vld [vmem:[%s377 + $0x1] sm:$0x1]
      %v385 = vld [vmem:[%s1] sm:$0xf]
      %v386 = vld [vmem:[%s1 + $0x4] sm:$0xf]
      %v387 = vld [vmem:[%s1 + $0x8] sm:$0xf]
      %v388 = vld [vmem:[%s2] sm:$0x1]
      %v390 = vlaneseq
      %v391 = vshrl.u32 %v390, 7
      %v392 = vsub.s32 0, %v391
      %v393 = vrot.slane %v388, %v392
      %v397 = vcombine.low %v383, %v384
      %v399 = vunpack.c.l.s4 1966171168
      %v400 = vunpack.c.0.s8 %v399
      %v401 = vlaneseq
      %v402 = vshrl.u32 %v401, 7
      %v403 = vsub.s32 %v400, %v402
      %v404 = vrot.slane %v397, %v403
      %v406 = vunpack.c.l.s4 1966171168
      %v407 = vunpack.c.0.s8 %v406
      %v408 = vlaneseq
      %v409 = vshrl.u32 %v408, 7
      %v410 = vsub.s32 %v407, %v409
      %v411 = vrot.slane %v404, %v410
      %v415 = vunpack.c.l.b16 %v385
      %v416 = vunpack.c.l.b16 %v386
      %v417 = vunpack.c.l.b16 %v387
      %v418 = vpack.c.b16 %v416, %v415
      %v419 = vpack.c.b16 %v417, %v417
      %vm421 = vcmask 195584
      %v423 = vsel %vm421, %v411, 0
      %vm425 = vcmask 1043456
      %v427 = vsel %vm425, %v419, 0
      %429 = vmatprep.subr.bf16.mxu0 0
      %430 = vmatpush1.bf16.msra.mxu0 %v418
      %431 = vmatprep.subr.bf16.mxu0 0
      %432 = vmatpush1.bf16.msra.mxu0 %v427
      %433 = vmatprep.subr.bf16.mxu0 0
      %434 = vmatpush1.bf16.msra.mxu0 0
      %435 = vmatprep.subr.bf16.mxu0 0
      %436 = vmatpush1.bf16.msra.mxu0 0
      %437 = vmatprep.subr.bf16.mxu0 0
      %438 = vmatpush1.bf16.msra.mxu0 0
      %439 = vmatprep.subr.bf16.mxu0 0
      %440 = vmatpush1.bf16.msra.mxu0 0
      %441 = vmatprep.subr.bf16.mxu0 0
      %442 = vmatpush1.bf16.msra.mxu0 0
      %443 = vmatprep.subr.bf16.mxu0 0
      %444 = vmatpush1.bf16.msra.mxu0 0
      %445 = vmatprep.subr.bf16.mxu0 0
      %446 = vmatpush1.bf16.msra.mxu0 0
      %447 = vmatprep.subr.bf16.mxu0 0
      %448 = vmatpush1.bf16.msra.mxu0 0
      %449 = vmatprep.subr.bf16.mxu0 0
      %450 = vmatpush1.bf16.msra.mxu0 0
      %451 = vmatprep.subr.bf16.mxu0 0
      %452 = vmatpush1.bf16.msra.mxu0 0
      %453 = vmatprep.subr.bf16.mxu0 0
      %454 = vmatpush1.bf16.msra.mxu0 0
      %455 = vmatprep.subr.bf16.mxu0 0
      %456 = vmatpush1.bf16.msra.mxu0 0
      %457 = vmatprep.subr.bf16.mxu0 0
      %458 = vmatpush1.bf16.msra.mxu0 0
      %459 = vmatprep.subr.bf16.mxu0 0
      %460 = vmatpush1.bf16.msra.mxu0 0
      %461 = vmatprep.mubr.bf16.mxu0 0
      %462 = vmatmul.mubr.bf16.gmra.mrb[0].mxu0 %v423
      %v463 = vpop.f32.mrb[0].mxu0
      %v464 = vadd.f32 %v393, %v463
      %v465 = vpop.f32.mrb[0].mxu0
      %v466 = vpop.f32.mrb[0].mxu0
      %v467 = vpop.f32.mrb[0].mxu0
      %468 = vdwg.mxu0
      %v469 = vadd.f32 %v464, 3.0
      %v470 = vmax.f32 %v469, 0.0
      %v471 = vmin.f32 %v470, 6.0
      %v472 = vmul.f32 %v464, %v471
      %v473 = vmul.f32 %v472, 0.16666667
      %vm474 = vcmask 783360
      %475 = vst.msk [vmem:[#allocation2] sm:$0x3f] %vm474, 0.0
      %476 = vst.msk [vmem:[#allocation2 + $0x8] sm:$0x3f] %vm474, 0.0
      %477 = vst.msk [vmem:[#allocation2 + $0x10] sm:$0x3f] %vm474, 0.0
      %478 = vst.msk [vmem:[#allocation2 + $0x18] sm:$0x3f] %vm474, 0.0
      %479 = vst.msk [vmem:[#allocation2 + $0x20] sm:$0x3f] %vm474, 0.0
      %480 = vst.msk [vmem:[#allocation2 + $0x28] sm:$0x3f] %vm474, 0.0
      %v483 = vunpack.c.l.s4 1983009808
      %v484 = vunpack.c.0.s8 %v483
      %v485 = vlaneseq
      %v486 = vshrl.u32 %v485, 7
      %v487 = vsub.s32 %v484, %v486
      %v488 = vrot.slane %v473, %v487
      %v489 = vcombine.high %v488, %v488
      %s492 = scalar_lea.vmem [#allocation2], 16
      %vm493 = vcmask 779264
      %494 = vst.msk [vmem:[%s492 + $0x2] sm:$0x3] %vm493, %v488
      %495 = vst.msk [vmem:[%s492 + $0xa] sm:$0x3] %vm493, %v489
      %v496 = vld [vmem:[#allocation2] sm:$0x3]
      %v497 = vld [vmem:[#allocation2 + $0x8] sm:$0x3]
      %v498 = vld [vmem:[%s3] sm:$0x1]
      %v500 = vlaneseq
      %v501 = vshrl.u32 %v500, 7
      %v502 = vsub.s32 0, %v501
      %v503 = vrot.slane %v498, %v502
      %v505 = vmul.f32 %v496, %v503
      %v506 = vmul.f32 %v497, %v503
      %v507 = vadd.f32 %v505, 0.0
      %v508 = vadd.f32 %v506, 0.0
      %v509 = vld [vmem:[#allocation2 + $0x1] sm:$0x3]
      %v510 = vld [vmem:[#allocation2 + $0x9] sm:$0x3]
      %s511 = scalar_lea.vmem %s3, 1
      %v512 = vld [vmem:[%s511] sm:$0x1]
      %v514 = vlaneseq
      %v515 = vshrl.u32 %v514, 7
      %v516 = vsub.s32 0, %v515
      %v517 = vrot.slane %v512, %v516
      %v519 = vmul.f32 %v509, %v517
      %v520 = vmul.f32 %v510, %v517
      %v521 = vadd.f32 %v507, %v519
      %v522 = vadd.f32 %v508, %v520
      %v523 = vld [vmem:[#allocation2 + $0x2] sm:$0x3]
      %v524 = vld [vmem:[#allocation2 + $0xa] sm:$0x3]
      %s525 = scalar_lea.vmem %s3, 2
      %v526 = vld [vmem:[%s525] sm:$0x1]
      %v528 = vlaneseq
      %v529 = vshrl.u32 %v528, 7
      %v530 = vsub.s32 0, %v529
      %v531 = vrot.slane %v526, %v530
      %v533 = vmul.f32 %v523, %v531
      %v534 = vmul.f32 %v524, %v531
      %v535 = vadd.f32 %v521, %v533
      %v536 = vadd.f32 %v522, %v534
      %v537 = vld [vmem:[#allocation2 + $0x3] sm:$0x3]
      %v538 = vld [vmem:[#allocation2 + $0xb] sm:$0x3]
      %s539 = scalar_lea.vmem %s3, 3
      %v540 = vld [vmem:[%s539] sm:$0x1]
      %v542 = vlaneseq
      %v543 = vshrl.u32 %v542, 7
      %v544 = vsub.s32 0, %v543
      %v545 = vrot.slane %v540, %v544
      %v547 = vmul.f32 %v537, %v545
      %v548 = vmul.f32 %v538, %v545
      %v549 = vadd.f32 %v535, %v547
      %v550 = vadd.f32 %v536, %v548
      %v551 = vld [vmem:[#allocation2 + $0x4] sm:$0x3]
      %v552 = vld [vmem:[#allocation2 + $0xc] sm:$0x3]
      %s553 = scalar_lea.vmem %s3, 4
      %v554 = vld [vmem:[%s553] sm:$0x1]
      %v556 = vlaneseq
      %v557 = vshrl.u32 %v556, 7
      %v558 = vsub.s32 0, %v557
      %v559 = vrot.slane %v554, %v558
      %v561 = vmul.f32 %v551, %v559
      %v562 = vmul.f32 %v552, %v559
      %v563 = vadd.f32 %v549, %v561
      %v564 = vadd.f32 %v550, %v562
      %s565 = scalar_lea.vmem [#allocation2], 8
      %v566 = vld [vmem:[%s565] sm:$0x3]
      %v567 = vld [vmem:[%s565 + $0x8] sm:$0x3]
      %s568 = scalar_lea.vmem %s3, 5
      %v569 = vld [vmem:[%s568] sm:$0x1]
      %v571 = vlaneseq
      %v572 = vshrl.u32 %v571, 7
      %v573 = vsub.s32 0, %v572
      %v574 = vrot.slane %v569, %v573
      %v576 = vmul.f32 %v566, %v574
      %v577 = vmul.f32 %v567, %v574
      %v578 = vadd.f32 %v563, %v576
      %v579 = vadd.f32 %v564, %v577
      %v580 = vld [vmem:[%s565 + $0x1] sm:$0x3]
      %v581 = vld [vmem:[%s565 + $0x9] sm:$0x3]
      %s582 = scalar_lea.vmem %s3, 6
      %v583 = vld [vmem:[%s582] sm:$0x1]
      %v585 = vlaneseq
      %v586 = vshrl.u32 %v585, 7
      %v587 = vsub.s32 0, %v586
      %v588 = vrot.slane %v583, %v587
      %v590 = vmul.f32 %v580, %v588
      %v591 = vmul.f32 %v581, %v588
      %v592 = vadd.f32 %v578, %v590
      %v593 = vadd.f32 %v579, %v591
      %v594 = vld [vmem:[%s565 + $0x2] sm:$0x3]
      %v595 = vld [vmem:[%s565 + $0xa] sm:$0x3]
      %s596 = scalar_lea.vmem %s3, 7
      %v597 = vld [vmem:[%s596] sm:$0x1]
      %v599 = vlaneseq
      %v600 = vshrl.u32 %v599, 7
      %v601 = vsub.s32 0, %v600
      %v602 = vrot.slane %v597, %v601
      %v604 = vmul.f32 %v594, %v602
      %v605 = vmul.f32 %v595, %v602
      %v606 = vadd.f32 %v592, %v604
      %v607 = vadd.f32 %v593, %v605
      %v608 = vld [vmem:[%s565 + $0x3] sm:$0x3]
      %v609 = vld [vmem:[%s565 + $0xb] sm:$0x3]
      %s610 = scalar_lea.vmem %s3, 8
      %v611 = vld [vmem:[%s610] sm:$0x1]
      %v613 = vlaneseq
      %v614 = vshrl.u32 %v613, 7
      %v615 = vsub.s32 0, %v614
      %v616 = vrot.slane %v611, %v615
      %v618 = vmul.f32 %v608, %v616
      %v619 = vmul.f32 %v609, %v616
      %v620 = vadd.f32 %v606, %v618
      %v621 = vadd.f32 %v607, %v619
      %v622 = vld [vmem:[%s565 + $0x4] sm:$0x3]
      %v623 = vld [vmem:[%s565 + $0xc] sm:$0x3]
      %s624 = scalar_lea.vmem %s3, 9
      %v625 = vld [vmem:[%s624] sm:$0x1]
      %v627 = vlaneseq
      %v628 = vshrl.u32 %v627, 7
      %v629 = vsub.s32 0, %v628
      %v630 = vrot.slane %v625, %v629
      %v632 = vmul.f32 %v622, %v630
      %v633 = vmul.f32 %v623, %v630
      %v634 = vadd.f32 %v620, %v632
      %v635 = vadd.f32 %v621, %v633
      %v636 = vld [vmem:[%s492] sm:$0x3]
      %v637 = vld [vmem:[%s492 + $0x8] sm:$0x3]
      %s638 = scalar_lea.vmem %s3, 10
      %v639 = vld [vmem:[%s638] sm:$0x1]
      %v641 = vlaneseq
      %v642 = vshrl.u32 %v641, 7
      %v643 = vsub.s32 0, %v642
      %v644 = vrot.slane %v639, %v643
      %v646 = vmul.f32 %v636, %v644
      %v647 = vmul.f32 %v637, %v644
      %v648 = vadd.f32 %v634, %v646
      %v649 = vadd.f32 %v635, %v647
      %v650 = vld [vmem:[%s492 + $0x1] sm:$0x3]
      %v651 = vld [vmem:[%s492 + $0x9] sm:$0x3]
      %s652 = scalar_lea.vmem %s3, 11
      %v653 = vld [vmem:[%s652] sm:$0x1]
      %v655 = vlaneseq
      %v656 = vshrl.u32 %v655, 7
      %v657 = vsub.s32 0, %v656
      %v658 = vrot.slane %v653, %v657
      %v660 = vmul.f32 %v650, %v658
      %v661 = vmul.f32 %v651, %v658
      %v662 = vadd.f32 %v648, %v660
      %v663 = vadd.f32 %v649, %v661
      %v664 = vld [vmem:[%s492 + $0x2] sm:$0x3]
      %v665 = vld [vmem:[%s492 + $0xa] sm:$0x3]
      %s666 = scalar_lea.vmem %s3, 12
      %v667 = vld [vmem:[%s666] sm:$0x1]
      %v669 = vlaneseq
      %v670 = vshrl.u32 %v669, 7
      %v671 = vsub.s32 0, %v670
      %v672 = vrot.slane %v667, %v671
      %v674 = vmul.f32 %v664, %v672
      %v675 = vmul.f32 %v665, %v672
      %v676 = vadd.f32 %v662, %v674
      %v677 = vadd.f32 %v663, %v675
      %v678 = vld [vmem:[%s492 + $0x3] sm:$0x3]
      %v679 = vld [vmem:[%s492 + $0xb] sm:$0x3]
      %s680 = scalar_lea.vmem %s3, 13
      %v681 = vld [vmem:[%s680] sm:$0x1]
      %v683 = vlaneseq
      %v684 = vshrl.u32 %v683, 7
      %v685 = vsub.s32 0, %v684
      %v686 = vrot.slane %v681, %v685
      %v688 = vmul.f32 %v678, %v686
      %v689 = vmul.f32 %v679, %v686
      %v690 = vadd.f32 %v676, %v688
      %v691 = vadd.f32 %v677, %v689
      %v692 = vld [vmem:[%s492 + $0x4] sm:$0x3]
      %v693 = vld [vmem:[%s492 + $0xc] sm:$0x3]
      %s694 = scalar_lea.vmem %s3, 14
      %v695 = vld [vmem:[%s694] sm:$0x1]
      %v697 = vlaneseq
      %v698 = vshrl.u32 %v697, 7
      %v699 = vsub.s32 0, %v698
      %v700 = vrot.slane %v695, %v699
      %v702 = vmul.f32 %v692, %v700
      %v703 = vmul.f32 %v693, %v700
      %v704 = vadd.f32 %v690, %v702
      %v705 = vadd.f32 %v691, %v703
      %s706 = scalar_lea.vmem [#allocation2], 24
      %v707 = vld [vmem:[%s706] sm:$0x3]
      %v708 = vld [vmem:[%s706 + $0x8] sm:$0x3]
      %s709 = scalar_lea.vmem %s3, 15
      %v710 = vld [vmem:[%s709] sm:$0x1]
      %v712 = vlaneseq
      %v713 = vshrl.u32 %v712, 7
      %v714 = vsub.s32 0, %v713
      %v715 = vrot.slane %v710, %v714
      %v717 = vmul.f32 %v707, %v715
      %v718 = vmul.f32 %v708, %v715
      %v719 = vadd.f32 %v704, %v717
      %v720 = vadd.f32 %v705, %v718
      %v721 = vld [vmem:[%s706 + $0x1] sm:$0x3]
      %v722 = vld [vmem:[%s706 + $0x9] sm:$0x3]
      %s723 = scalar_lea.vmem %s3, 16
      %v724 = vld [vmem:[%s723] sm:$0x1]
      %v726 = vlaneseq
      %v727 = vshrl.u32 %v726, 7
      %v728 = vsub.s32 0, %v727
      %v729 = vrot.slane %v724, %v728
      %v731 = vmul.f32 %v721, %v729
      %v732 = vmul.f32 %v722, %v729
      %v733 = vadd.f32 %v719, %v731
      %v734 = vadd.f32 %v720, %v732
      %v735 = vld [vmem:[%s706 + $0x2] sm:$0x3]
      %v736 = vld [vmem:[%s706 + $0xa] sm:$0x3]
      %s737 = scalar_lea.vmem %s3, 17
      %v738 = vld [vmem:[%s737] sm:$0x1]
      %v740 = vlaneseq
      %v741 = vshrl.u32 %v740, 7
      %v742 = vsub.s32 0, %v741
      %v743 = vrot.slane %v738, %v742
      %v745 = vmul.f32 %v735, %v743
      %v746 = vmul.f32 %v736, %v743
      %v747 = vadd.f32 %v733, %v745
      %v748 = vadd.f32 %v734, %v746
      %v749 = vld [vmem:[%s706 + $0x3] sm:$0x3]
      %v750 = vld [vmem:[%s706 + $0xb] sm:$0x3]
      %s751 = scalar_lea.vmem %s3, 18
      %v752 = vld [vmem:[%s751] sm:$0x1]
      %v754 = vlaneseq
      %v755 = vshrl.u32 %v754, 7
      %v756 = vsub.s32 0, %v755
      %v757 = vrot.slane %v752, %v756
      %v759 = vmul.f32 %v749, %v757
      %v760 = vmul.f32 %v750, %v757
      %v761 = vadd.f32 %v747, %v759
      %v762 = vadd.f32 %v748, %v760
      %v763 = vld [vmem:[%s706 + $0x4] sm:$0x3]
      %v764 = vld [vmem:[%s706 + $0xc] sm:$0x3]
      %s765 = scalar_lea.vmem %s3, 19
      %v766 = vld [vmem:[%s765] sm:$0x1]
      %v768 = vlaneseq
      %v769 = vshrl.u32 %v768, 7
      %v770 = vsub.s32 0, %v769
      %v771 = vrot.slane %v766, %v770
      %v773 = vmul.f32 %v763, %v771
      %v774 = vmul.f32 %v764, %v771
      %v775 = vadd.f32 %v761, %v773
      %v776 = vadd.f32 %v762, %v774
      %s777 = scalar_lea.vmem [#allocation2], 32
      %v778 = vld [vmem:[%s777] sm:$0x3]
      %v779 = vld [vmem:[%s777 + $0x8] sm:$0x3]
      %s780 = scalar_lea.vmem %s3, 20
      %v781 = vld [vmem:[%s780] sm:$0x1]
      %v783 = vlaneseq
      %v784 = vshrl.u32 %v783, 7
      %v785 = vsub.s32 0, %v784
      %v786 = vrot.slane %v781, %v785
      %v788 = vmul.f32 %v778, %v786
      %v789 = vmul.f32 %v779, %v786
      %v790 = vadd.f32 %v775, %v788
      %v791 = vadd.f32 %v776, %v789
      %v792 = vld [vmem:[%s777 + $0x1] sm:$0x3]
      %v793 = vld [vmem:[%s777 + $0x9] sm:$0x3]
      %s794 = scalar_lea.vmem %s3, 21
      %v795 = vld [vmem:[%s794] sm:$0x1]
      %v797 = vlaneseq
      %v798 = vshrl.u32 %v797, 7
      %v799 = vsub.s32 0, %v798
      %v800 = vrot.slane %v795, %v799
      %v802 = vmul.f32 %v792, %v800
      %v803 = vmul.f32 %v793, %v800
      %v804 = vadd.f32 %v790, %v802
      %v805 = vadd.f32 %v791, %v803
      %v806 = vld [vmem:[%s777 + $0x2] sm:$0x3]
      %v807 = vld [vmem:[%s777 + $0xa] sm:$0x3]
      %s808 = scalar_lea.vmem %s3, 22
      %v809 = vld [vmem:[%s808] sm:$0x1]
      %v811 = vlaneseq
      %v812 = vshrl.u32 %v811, 7
      %v813 = vsub.s32 0, %v812
      %v814 = vrot.slane %v809, %v813
      %v816 = vmul.f32 %v806, %v814
      %v817 = vmul.f32 %v807, %v814
      %v818 = vadd.f32 %v804, %v816
      %v819 = vadd.f32 %v805, %v817
      %v820 = vld [vmem:[%s777 + $0x3] sm:$0x3]
      %v821 = vld [vmem:[%s777 + $0xb] sm:$0x3]
      %s822 = scalar_lea.vmem %s3, 23
      %v823 = vld [vmem:[%s822] sm:$0x1]
      %v825 = vlaneseq
      %v826 = vshrl.u32 %v825, 7
      %v827 = vsub.s32 0, %v826
      %v828 = vrot.slane %v823, %v827
      %v830 = vmul.f32 %v820, %v828
      %v831 = vmul.f32 %v821, %v828
      %v832 = vadd.f32 %v818, %v830
      %v833 = vadd.f32 %v819, %v831
      %v834 = vld [vmem:[%s777 + $0x4] sm:$0x3]
      %v835 = vld [vmem:[%s777 + $0xc] sm:$0x3]
      %s836 = scalar_lea.vmem %s3, 24
      %v837 = vld [vmem:[%s836] sm:$0x1]
      %v839 = vlaneseq
      %v840 = vshrl.u32 %v839, 7
      %v841 = vsub.s32 0, %v840
      %v842 = vrot.slane %v837, %v841
      %v844 = vmul.f32 %v834, %v842
      %v845 = vmul.f32 %v835, %v842
      %v846 = vadd.f32 %v832, %v844
      %v847 = vadd.f32 %v833, %v845
      %v848 = vld [vmem:[%s4] sm:$0x1]
      %v850 = vlaneseq
      %v851 = vshrl.u32 %v850, 7
      %v852 = vsub.s32 0, %v851
      %v853 = vrot.slane %v848, %v852
      %v855 = vadd.f32 %v846, %v853
      %v856 = vadd.f32 %v847, %v853
      %v857 = vadd.f32 %v855, 3.0
      %v858 = vadd.f32 %v856, 3.0
      %v859 = vmax.f32 %v857, 0.0
      %v860 = vmax.f32 %v858, 0.0
      %v861 = vmin.f32 %v859, 6.0
      %v862 = vmin.f32 %v860, 6.0
      %v863 = vmul.f32 %v855, %v861
      %v864 = vmul.f32 %v856, %v862
      %v865 = vmul.f32 %v863, 0.16666667
      %v866 = vmul.f32 %v864, 0.16666667
      %v869 = vcombine.low %v865, %v866
      %v871 = vunpack.c.l.s4 1983009808
      %v872 = vunpack.c.0.s8 %v871
      %v873 = vlaneseq
      %v874 = vshrl.u32 %v873, 7
      %v875 = vsub.s32 %v872, %v874
      %v876 = vrot.slane %v869, %v875
      %vm878 = vcmask 781312
      %v879 = vsel %vm878, %v876, 0.0
      %v880 = vrot.slane %v879, 4
      %v881 = vadd.f32 %v879, %v880
      %v882 = vrot.slane %v881, 2
      %v883 = vadd.f32 %v881, %v882
      %v884 = vrot.slane %v883, 1
      %v885 = vadd.f32 %v883, %v884
      %v886 = vrcp.pop 4.0
      %v887 = vmul.f32 %v885, %v886
      %v888 = vld [vmem:[%s5] sm:$0xff]
      %v889 = vld [vmem:[%s5 + $0x8] sm:$0xff]
      %v890 = vld [vmem:[%s5 + $0x10] sm:$0xff]
      %v891 = vld [vmem:[%s5 + $0x18] sm:$0xff]
      %v892 = vld [vmem:[%s5 + $0x20] sm:$0xff]
      %v893 = vld [vmem:[%s5 + $0x28] sm:$0xff]
      %v894 = vld [vmem:[%s5 + $0x30] sm:$0xff]
      %v895 = vld [vmem:[%s5 + $0x38] sm:$0xff]
      %v896 = vld [vmem:[%s5 + $0x40] sm:$0xff]
      %v897 = vld [vmem:[%s5 + $0x48] sm:$0xff]
      %v898 = vld [vmem:[%s5 + $0x50] sm:$0xff]
      %v899 = vld [vmem:[%s5 + $0x58] sm:$0xff]
      %v900 = vld [vmem:[%s6] sm:$0x1]
      %vm901 = vcmask 785408
      %v903 = vsel %vm901, %v887, 0
      %905 = vmatprep.subr.mxu0 0.0
      %906 = vmatpush1.msra.mxu0 %v888
      %907 = vmatprep.subr.mxu0 0.0
      %908 = vmatpush1.msra.mxu0 %v889
      %909 = vmatprep.subr.mxu0 0.0
      %910 = vmatpush1.msra.mxu0 %v890
      %911 = vmatprep.subr.mxu0 0.0
      %912 = vmatpush1.msra.mxu0 %v891
      %913 = vmatprep.subr.mxu0 0.0
      %914 = vmatpush1.msra.mxu0 %v892
      %915 = vmatprep.subr.mxu0 0.0
      %916 = vmatpush1.msra.mxu0 %v893
      %917 = vmatprep.subr.mxu0 0.0
      %918 = vmatpush1.msra.mxu0 %v894
      %919 = vmatprep.subr.mxu0 0.0
      %920 = vmatpush1.msra.mxu0 %v895
      %921 = vmatprep.subr.mxu0 0.0
      %922 = vmatpush1.msra.mxu0 %v896
      %923 = vmatprep.subr.mxu0 0.0
      %924 = vmatpush1.msra.mxu0 %v897
      %925 = vmatprep.subr.mxu0 0.0
      %926 = vmatpush1.msra.mxu0 %v898
      %927 = vmatprep.subr.mxu0 0.0
      %928 = vmatpush1.msra.mxu0 %v899
      %929 = vmatprep.subr.mxu0 0.0
      %930 = vmatpush1.msra.mxu0 0.0
      %931 = vmatprep.subr.mxu0 0.0
      %932 = vmatpush1.msra.mxu0 0.0
      %933 = vmatprep.subr.mxu0 0.0
      %934 = vmatpush1.msra.mxu0 0.0
      %935 = vmatprep.subr.mxu0 0.0
      %936 = vmatpush1.msra.mxu0 0.0
      %937 = vmatprep.subr.mxu0 0.0
      %938 = vmatpush1.msra.mxu0 0.0
      %939 = vmatprep.subr.mxu0 0.0
      %940 = vmatpush1.msra.mxu0 0.0
      %941 = vmatprep.subr.mxu0 0.0
      %942 = vmatpush1.msra.mxu0 0.0
      %943 = vmatprep.subr.mxu0 0.0
      %944 = vmatpush1.msra.mxu0 0.0
      %945 = vmatprep.subr.mxu0 0.0
      %946 = vmatpush1.msra.mxu0 0.0
      %947 = vmatprep.subr.mxu0 0.0
      %948 = vmatpush1.msra.mxu0 0.0
      %949 = vmatprep.subr.mxu0 0.0
      %950 = vmatpush1.msra.mxu0 0.0
      %951 = vmatprep.subr.mxu0 0.0
      %952 = vmatpush1.msra.mxu0 0.0
      %953 = vmatprep.subr.mxu0 0.0
      %954 = vmatpush1.msra.mxu0 0.0
      %955 = vmatprep.subr.mxu0 0.0
      %956 = vmatpush1.msra.mxu0 0.0
      %957 = vmatprep.subr.mxu0 0.0
      %958 = vmatpush1.msra.mxu0 0.0
      %959 = vmatprep.subr.mxu0 0.0
      %960 = vmatpush1.msra.mxu0 0.0
      %961 = vmatprep.subr.mxu0 0.0
      %962 = vmatpush1.msra.mxu0 0.0
      %963 = vmatprep.subr.mxu0 0.0
      %964 = vmatpush1.msra.mxu0 0.0
      %965 = vmatprep.subr.mxu0 0.0
      %966 = vmatpush1.msra.mxu0 0.0
      %967 = vmatprep.subr.mxu0 0.0
      %968 = vmatpush1.msra.mxu0 0.0
      %969 = vmatprep.mubr.f32.mxu0 0.0
      %970 = vmatmul.mubr.f32.gmra.mrb[0].mxu0 %v903
      %v971 = vpop.f32.mrb[0].mxu0
      %v972 = vadd.f32 %v900, %v971
      %v973 = vpop.f32.mrb[0].mxu0
      %974 = vdwg.mxu0
      %v975 = vmax.f32 %v972, 0.0
      %v976 = vld [vmem:[%s7] sm:$0xff]
      %v977 = vld [vmem:[%s7 + $0x8] sm:$0xff]
      %v978 = vld [vmem:[%s7 + $0x10] sm:$0xff]
      %v979 = vld [vmem:[%s8] sm:$0x1]
      %v981 = vsel %vm421, %v975, 0
      %983 = vmatprep.subr.mxu0 0.0
      %984 = vmatpush1.msra.mxu0 %v976
      %985 = vmatprep.subr.mxu0 0.0
      %986 = vmatpush1.msra.mxu0 %v977
      %987 = vmatprep.subr.mxu0 0.0
      %988 = vmatpush1.msra.mxu0 %v978
      %989 = vmatprep.subr.mxu0 0.0
      %990 = vmatpush1.msra.mxu0 0.0
      %991 = vmatprep.subr.mxu0 0.0
      %992 = vmatpush1.msra.mxu0 0.0
      %993 = vmatprep.subr.mxu0 0.0
      %994 = vmatpush1.msra.mxu0 0.0
      %995 = vmatprep.subr.mxu0 0.0
      %996 = vmatpush1.msra.mxu0 0.0
      %997 = vmatprep.subr.mxu0 0.0
      %998 = vmatpush1.msra.mxu0 0.0
      %999 = vmatprep.subr.mxu0 0.0
      %1000 = vmatpush1.msra.mxu0 0.0
      %1001 = vmatprep.subr.mxu0 0.0
      %1002 = vmatpush1.msra.mxu0 0.0
      %1003 = vmatprep.subr.mxu0 0.0
      %1004 = vmatpush1.msra.mxu0 0.0
      %1005 = vmatprep.subr.mxu0 0.0
      %1006 = vmatpush1.msra.mxu0 0.0
      %1007 = vmatprep.subr.mxu0 0.0
      %1008 = vmatpush1.msra.mxu0 0.0
      %1009 = vmatprep.subr.mxu0 0.0
      %1010 = vmatpush1.msra.mxu0 0.0
      %1011 = vmatprep.subr.mxu0 0.0
      %1012 = vmatpush1.msra.mxu0 0.0
      %1013 = vmatprep.subr.mxu0 0.0
      %1014 = vmatpush1.msra.mxu0 0.0
      %1015 = vmatprep.subr.mxu0 0.0
      %1016 = vmatpush1.msra.mxu0 0.0
      %1017 = vmatprep.subr.mxu0 0.0
      %1018 = vmatpush1.msra.mxu0 0.0
      %1019 = vmatprep.subr.mxu0 0.0
      %1020 = vmatpush1.msra.mxu0 0.0
      %1021 = vmatprep.subr.mxu0 0.0
      %1022 = vmatpush1.msra.mxu0 0.0
      %1023 = vmatprep.subr.mxu0 0.0
      %1024 = vmatpush1.msra.mxu0 0.0
      %1025 = vmatprep.subr.mxu0 0.0
      %1026 = vmatpush1.msra.mxu0 0.0
      %1027 = vmatprep.subr.mxu0 0.0
      %1028 = vmatpush1.msra.mxu0 0.0
      %1029 = vmatprep.subr.mxu0 0.0
      %1030 = vmatpush1.msra.mxu0 0.0
      %1031 = vmatprep.subr.mxu0 0.0
      %1032 = vmatpush1.msra.mxu0 0.0
      %1033 = vmatprep.subr.mxu0 0.0
      %1034 = vmatpush1.msra.mxu0 0.0
      %1035 = vmatprep.subr.mxu0 0.0
      %1036 = vmatpush1.msra.mxu0 0.0
      %1037 = vmatprep.subr.mxu0 0.0
      %1038 = vmatpush1.msra.mxu0 0.0
      %1039 = vmatprep.subr.mxu0 0.0
      %1040 = vmatpush1.msra.mxu0 0.0
      %1041 = vmatprep.subr.mxu0 0.0
      %1042 = vmatpush1.msra.mxu0 0.0
      %1043 = vmatprep.subr.mxu0 0.0
      %1044 = vmatpush1.msra.mxu0 0.0
      %1045 = vmatprep.subr.mxu0 0.0
      %1046 = vmatpush1.msra.mxu0 0.0
      %1047 = vmatprep.mubr.f32.mxu0 0.0
      %1048 = vmatmul.mubr.f32.gmra.mrb[0].mxu0 %v981
      %v1049 = vpop.f32.mrb[0].mxu0
      %v1050 = vadd.f32 %v979, %v1049
      %v1051 = vpop.f32.mrb[0].mxu0
      %1052 = vdwg.mxu0
      %v1053 = vadd.f32 %v1050, 3.0
      %v1054 = vmax.f32 %v1053, 0.0
      %v1055 = vmin.f32 %v1054, 6.0
      %v1056 = vmul.f32 %v1055, 0.16666667
      %v1057 = vlaneseq
      %v1058 = vshrl.u32 %v1057, 7
      %v1059 = vsub.s32 0, %v1058
      %v1060 = vrot.slane %v1056, %v1059
      %v1061 = vmul.f32 %v865, %v1060
      %v1062 = vmul.f32 %v866, %v1060
      %v1065 = vcombine.low %v1061, %v1062
      %v1067 = vunpack.c.l.s4 1983009808
      %v1068 = vunpack.c.0.s8 %v1067
      %v1069 = vlaneseq
      %v1070 = vshrl.u32 %v1069, 7
      %v1071 = vsub.s32 %v1068, %v1070
      %v1072 = vrot.slane %v1065, %v1071
      %v1074 = vpack.c.bf16 %v1072, %v1072
      %v1075 = vld [vmem:[%s9] sm:$0xf]
      %v1076 = vld [vmem:[%s9 + $0x4] sm:$0xf]
      %v1077 = vld [vmem:[%s9 + $0x8] sm:$0xf]
      %v1078 = vld [vmem:[%s9 + $0xc] sm:$0xf]
      %v1079 = vld [vmem:[%s9 + $0x10] sm:$0xf]
      %v1080 = vld [vmem:[%s9 + $0x14] sm:$0xf]
      %v1081 = vld [vmem:[%s9 + $0x18] sm:$0xf]
      %v1082 = vld [vmem:[%s9 + $0x1c] sm:$0xf]
      %v1083 = vld [vmem:[%s9 + $0x20] sm:$0xf]
      %v1084 = vld [vmem:[%s9 + $0x24] sm:$0xf]
      %v1085 = vld [vmem:[%s9 + $0x28] sm:$0xf]
      %v1086 = vld [vmem:[%s9 + $0x2c] sm:$0xf]
      %v1087 = vld [vmem:[%s10] sm:$0x1]
      %v1089 = vlaneseq
      %v1090 = vshrl.u32 %v1089, 7
      %v1091 = vsub.s32 0, %v1090
      %v1092 = vrot.slane %v1087, %v1091
      %v1106 = vunpack.c.l.b16 %v1075
      %v1107 = vunpack.c.l.b16 %v1076
      %v1108 = vunpack.c.l.b16 %v1077
      %v1109 = vunpack.c.l.b16 %v1078
      %v1110 = vunpack.c.l.b16 %v1079
      %v1111 = vunpack.c.l.b16 %v1080
      %v1112 = vunpack.c.l.b16 %v1081
      %v1113 = vunpack.c.l.b16 %v1082
      %v1114 = vunpack.c.l.b16 %v1083
      %v1115 = vunpack.c.l.b16 %v1084
      %v1116 = vunpack.c.l.b16 %v1085
      %v1117 = vunpack.c.l.b16 %v1086
      %v1118 = vpack.c.b16 %v1107, %v1106
      %v1119 = vpack.c.b16 %v1109, %v1108
      %v1120 = vpack.c.b16 %v1111, %v1110
      %v1121 = vpack.c.b16 %v1113, %v1112
      %v1122 = vpack.c.b16 %v1115, %v1114
      %v1123 = vpack.c.b16 %v1117, %v1116
      %v1131 = vsel %vm901, %v1074, 0
      %1133 = vmatprep.subr.bf16.mxu0 0
      %1134 = vmatpush1.bf16.msra.mxu0 %v1118
      %1135 = vmatprep.subr.bf16.mxu0 0
      %1136 = vmatpush1.bf16.msra.mxu0 %v1119
      %1137 = vmatprep.subr.bf16.mxu0 0
      %1138 = vmatpush1.bf16.msra.mxu0 %v1120
      %1139 = vmatprep.subr.bf16.mxu0 0
      %1140 = vmatpush1.bf16.msra.mxu0 %v1121
      %1141 = vmatprep.subr.bf16.mxu0 0
      %1142 = vmatpush1.bf16.msra.mxu0 %v1122
      %1143 = vmatprep.subr.bf16.mxu0 0
      %1144 = vmatpush1.bf16.msra.mxu0 %v1123
      %1145 = vmatprep.subr.bf16.mxu0 0
      %1146 = vmatpush1.bf16.msra.mxu0 0
      %1147 = vmatprep.subr.bf16.mxu0 0
      %1148 = vmatpush1.bf16.msra.mxu0 0
      %1149 = vmatprep.subr.bf16.mxu0 0
      %1150 = vmatpush1.bf16.msra.mxu0 0
      %1151 = vmatprep.subr.bf16.mxu0 0
      %1152 = vmatpush1.bf16.msra.mxu0 0
      %1153 = vmatprep.subr.bf16.mxu0 0
      %1154 = vmatpush1.bf16.msra.mxu0 0
      %1155 = vmatprep.subr.bf16.mxu0 0
      %1156 = vmatpush1.bf16.msra.mxu0 0
      %1157 = vmatprep.subr.bf16.mxu0 0
      %1158 = vmatpush1.bf16.msra.mxu0 0
      %1159 = vmatprep.subr.bf16.mxu0 0
      %1160 = vmatpush1.bf16.msra.mxu0 0
      %1161 = vmatprep.subr.bf16.mxu0 0
      %1162 = vmatpush1.bf16.msra.mxu0 0
      %1163 = vmatprep.subr.bf16.mxu0 0
      %1164 = vmatpush1.bf16.msra.mxu0 0
      %1165 = vmatprep.mubr.bf16.mxu0 0
      %1166 = vmatmul.mubr.bf16.gmra.mrb[0].mxu0 %v1131
      %v1167 = vpop.f32.mrb[0].mxu0
      %v1168 = vadd.f32 %v1092, %v1167
      %v1169 = vpop.f32.mrb[0].mxu0
      %v1170 = vpop.f32.mrb[0].mxu0
      %v1171 = vpop.f32.mrb[0].mxu0
      %1172 = vdwg.mxu0
      %v1175 = vunpack.c.l.s4 1983009808
      %v1176 = vunpack.c.0.s8 %v1175
      %v1177 = vlaneseq
      %v1178 = vshrl.u32 %v1177, 7
      %v1179 = vsub.s32 %v1176, %v1178
      %v1180 = vrot.slane %v1168, %v1179
      %v1181 = vcombine.high %v1180, %v1180
      %v1184 = vpack.c.bf16 %v1180, %v1180
      %v1185 = vpack.c.bf16 %v1181, %v1181
      %vm1186 = vcmask 319488
      %1187 = vst.msk [vmem:[%s381] sm:$0x1] %vm1186, %v1184
      %1188 = vst.msk [vmem:[%s381 + $0x1] sm:$0x1] %vm1186, %v1185
      %p1189 = scmp.lt.s32.totalorder %s22, 1
      %s1190 = scalar_select %p1189, %s22, 1
      %s1191 = smul.addr %s1190, 2
      %s1192 = scalar_lea.vmem %s11, %s1191
      // Predicated region
      $region65: #{_lambda_.11} parent=63 // pred_check
        %p1193 = pneg %p276
      $region66: #{_lambda_.11} parent=63 // pred_check_branch
        %1195 = sbr.rel (%p1193) target = $region68
      $region67: #{_lambda_.11} parent=63 // pred_region
        _
      $region68: #{_lambda_.11} parent=63 // pred_fallthru
        _
    $region64: #{_lambda_.11} parent=5 // pred_fallthru
      _
    %p1196 = scmp.le.s32.totalorder 2, %s17
    // Predicated region
    $region69: #{_lambda_.11} parent=5 // pred_check
      %p1197 = pneg %p1196
    $region70: #{_lambda_.11} parent=5 // pred_check_branch
      %1199 = sbr.rel (%p1197) target = $region72
    $region71: #{_lambda_.11} parent=5 // pred_region
      %s1200 = ssub.s32 %s17, 2
      // Predicated region
      $region73: #{_lambda_.11} parent=71 // pred_check
        %p1201 = pneg %p282
      $region74: #{_lambda_.11} parent=71 // pred_check_branch
        %1203 = sbr.rel (%p1201) target = $region76
      $region75: #{_lambda_.11} parent=71 // pred_region
        %p1204 = scmp.lt.s32.totalorder %s23, 1
        %s1205 = scalar_select %p1204, %s23, 1
        %s1206 = smul.addr %s1205, 2
        %s1207 = scalar_lea.vmem %s11, %s1206
      $region76: #{_lambda_.11} parent=71 // pred_fallthru
        _
    $region72: #{_lambda_.11} parent=5 // pred_fallthru
      _
  $region6: #{_lambda_.11} parent=0 // loop_footer
    %s21 = sadd.s32 1, %s17
  $region7: #{_lambda_.11} parent=0 // loop_footer_branch
    %16 = sbr.rel target = $region3
  $region8: #{_lambda_.11} parent=0 // loop_exit
    _

</llo_original>
